<compile_context>
chip_gen: v5e
topology: v5e:2x2
jax: 0.10.0
libtpu: 0.0.40
codegen_flags: <defaults>
</compile_context>

<pallas_src>
import functools
import math

import jax
import jax.numpy as jnp
from jax import lax
from jax.experimental import pallas as pl
from jax.experimental.pallas import tpu as pltpu


def _round_up(x: int, m: int) -> int:
    return ((x + m - 1) // m) * m


# ------------------------------ Pallas kernel -------------------------------

def _make_phase_vocoder_kernel(rate: float, time_block: int):
    n_chunks = time_block // 8

    def kernel(s0re_ref, s0im_ref, s1re_ref, s1im_ref, ufre_ref, ufim_ref,
               ore_ref, oim_ref, carry_re, carry_im):
        t_idx = pl.program_id(2)

        # At the first time block of each (batch, freq) slice, reset the phase
        # carry to the unit phasor of frame 0:  exp(i * angle(spec[..., 0])).
        @pl.when(t_idx == 0)
        def _init():
            carry_re[...] = ufre_ref[0]
            carry_im[...] = ufim_ref[0]

        s0re = s0re_ref[0]                        # (Tt, fb)
        s0im = s0im_ref[0]
        s1re = s1re_ref[0]
        s1im = s1im_ref[0]

        tiny = jnp.float32(1e-37)
        one = jnp.float32(1.0)
        zero = jnp.float32(0.0)

        # Squared magnitudes and unit phasors of the two gathered frames.
        n0 = s0re * s0re + s0im * s0im
        n1 = s1re * s1re + s1im * s1im
        inv0 = lax.rsqrt(jnp.maximum(n0, tiny))   # EUP rsqrt — no f32 divide
        inv1 = lax.rsqrt(jnp.maximum(n1, tiny))
        good0 = n0 >= tiny                        # angle(~0) := 0  -> unit 1
        good1 = n1 >= tiny
        u0re = jnp.where(good0, s0re * inv0, one)
        u0im = jnp.where(good0, s0im * inv0, zero)
        u1re = jnp.where(good1, s1re * inv1, one)
        u1im = jnp.where(good1, s1im * inv1, zero)

        # Per-step phase increment as a unit phasor: u = u1 * conj(u0).
        ure = u1re * u0re + u1im * u0im
        uim = u1im * u0re - u1re * u0im

        # Magnitude lerp; alphas computed in-kernel with the SAME f32 arithmetic
        # (int_frame * rate) that the wrapper used for the gather indices.
        row = lax.broadcasted_iota(jnp.int32, (time_block, 1), 0)
        ts = (t_idx * time_block + row).astype(jnp.float32) * rate   # (Tt, 1)
        alpha = ts - jnp.floor(ts)
        mag = alpha * (n1 * inv1) + (1.0 - alpha) * (n0 * inv0)

        # ---------- two-level exclusive prefix product along time ----------
        # Level 1: inclusive Hillis-Steele scan inside each 8-row chunk
        # (roll shifts 1/2/4 on the XLU, hoisted (Tt,1) masks on the VPU).
        rowmod = row & 7
        m1 = rowmod >= 1
        m2 = rowmod >= 2
        m4 = rowmod >= 4
        vre, vim = ure, uim
        for k, keep in ((1, m1), (2, m2), (4, m4)):
            rre = pltpu.roll(vre, shift=k, axis=0)
            rim = pltpu.roll(vim, shift=k, axis=0)
            pre = jnp.where(keep, rre, one)
            pim = jnp.where(keep, rim, zero)
            vre, vim = vre * pre - vim * pim, vre * pim + vim * pre

        # Within-chunk exclusive product: shift down one row, identity at row 0.
        ere = jnp.where(m1, pltpu.roll(vre, shift=1, axis=0), one)
        eim = jnp.where(m1, pltpu.roll(vim, shift=1, axis=0), zero)

        # Level 2: serial exclusive scan over the chunk totals (row 7 of every
        # chunk of v), with the cross-block carry folded in.  Each chunk's
        # prefix is applied to its 8 rows and written out immediately.
        cre = carry_re[...]                       # (1, fb)
        cim = carry_im[...]
        for c in range(n_chunks):
            lo = 8 * c
            hi = lo + 8
            e_re = ere[lo:hi, :]
            e_im = eim[lo:hi, :]
            acc_re = cre * e_re - cim * e_im      # (1,fb) x (8,fb) broadcast
            acc_im = cre * e_im + cim * e_re
            m = mag[lo:hi, :]
            ore_ref[0, lo:hi, :] = m * acc_re
            oim_ref[0, lo:hi, :] = m * acc_im
            g_re = vre[hi - 1:hi, :]              # chunk total (1, fb)
            g_im = vim[hi - 1:hi, :]
            cre, cim = cre * g_re - cim * g_im, cre * g_im + cim * g_re

        # Carry for the next time block, renormalized to unit magnitude so f32
        # rounding cannot drift |carry| over long sequences.
        cn = cre * cre + cim * cim
        inv = lax.rsqrt(jnp.maximum(cn, tiny))
        carry_re[...] = cre * inv
        carry_im[...] = cim * inv

    return kernel


def _phase_vocoder_pallas(s0re, s0im, s1re, s1im, ufre, ufim, *,
                          rate, time_block, freq_block):
    B, Tp, Fp = s0re.shape
    n_tb = Tp // time_block
    n_fb = Fp // freq_block
    spec_blk = pl.BlockSpec((1, time_block, freq_block), lambda b, f, t: (b, t, f))
    uf_blk = pl.BlockSpec((1, 1, freq_block), lambda b, f, t: (b, 0, f))
    kernel = _make_phase_vocoder_kernel(rate, time_block)
    return pl.pallas_call(
        kernel,
        out_shape=(
            jax.ShapeDtypeStruct((B, Tp, Fp), jnp.float32),
            jax.ShapeDtypeStruct((B, Tp, Fp), jnp.float32),
        ),
        grid=(B, n_fb, n_tb),
        in_specs=[spec_blk, spec_blk, spec_blk, spec_blk, uf_blk, uf_blk],
        out_specs=(spec_blk, spec_blk),
        scratch_shapes=[
            pltpu.VMEM((1, freq_block), jnp.float32),   # running phasor (real)
            pltpu.VMEM((1, freq_block), jnp.float32),   # running phasor (imag)
        ],
        compiler_params=pltpu.CompilerParams(
            dimension_semantics=("parallel", "parallel", "arbitrary")),
    )(s0re, s0im, s1re, s1im, ufre, ufim)


# ------------------------------ JAX wrapper ---------------------------------

@functools.partial(jax.jit, static_argnames=("rate", "time_block"))
def _phase_vocoder_impl(spec, *, rate, time_block):
    B, F, T = spec.shape
    sr = jnp.real(spec).astype(jnp.float32)
    si = jnp.imag(spec).astype(jnp.float32)

    # ceil(T / rate) output frames; fractional positions i*rate computed with
    # exactly the same f32 arithmetic the kernel uses for alphas.
    Tn = int(math.ceil(T / rate))
    ts = jnp.arange(Tn, dtype=jnp.int32).astype(jnp.float32) * jnp.float32(rate)
    t0 = jnp.floor(ts).astype(jnp.int32)
    t1 = jnp.floor(ts + 1.0).astype(jnp.int32)

    # Tile-aligned, lane-dense padded sizes.
    Fp = _round_up(max(F, 128), 128)
    Tt = min(int(time_block), _round_up(Tn, 8))
    Tp = _round_up(Tn, Tt)
    fb = min(Fp, 512) if B >= 2 else 128          # freq grid axis (megacore)

    # ONE transpose + pad pass over the original spectrogram: frame-major
    # (B, T+2, Fp); the +2 zero frames match torch's time padding.
    sfm_re = jnp.pad(jnp.transpose(sr, (0, 2, 1)), ((0, 0), (0, 2), (0, Fp - F)))
    sfm_im = jnp.pad(jnp.transpose(si, (0, 2, 1)), ((0, 0), (0, 2), (0, Fp - F)))

    # Padded gather indices point at the appended zero frames.
    t0p = jnp.pad(t0, (0, Tp - Tn), constant_values=T + 1)
    t1p = jnp.pad(t1, (0, Tp - Tn), constant_values=T + 1)

    # Neighbour-frame gathers straight into the kernel's layout.
    # TODO(synk): fully fusing this gather into the kernel (scalar-prefetched
    # slab DMA from HBM) would remove these intermediates entirely.
    s0re = jnp.take(sfm_re, t0p, axis=1)          # (B, Tp, Fp)
    s0im = jnp.take(sfm_im, t0p, axis=1)
    s1re = jnp.take(sfm_re, t1p, axis=1)
    s1im = jnp.take(sfm_im, t1p, axis=1)

    # Unit phasor of the very first frame: exp(i * angle(spec[..., 0])).
    r0 = sr[:, :, 0]
    i0 = si[:, :, 0]
    n00 = r0 * r0 + i0 * i0
    good = n00 >= 1e-37
    inv = lax.rsqrt(jnp.maximum(n00, 1e-37))
    ufre = jnp.where(good, r0 * inv, 1.0)         # (B, F)
    ufim = jnp.where(good, i0 * inv, 0.0)
    ufre = jnp.pad(ufre, ((0, 0), (0, Fp - F)), constant_values=1.0).reshape(B, 1, Fp)
    ufim = jnp.pad(ufim, ((0, 0), (0, Fp - F))).reshape(B, 1, Fp)

    ore, oim = _phase_vocoder_pallas(
        s0re, s0im, s1re, s1im, ufre, ufim,
        rate=rate, time_block=Tt, freq_block=fb)

    out = lax.complex(ore[:, :Tn, :F], oim[:, :Tn, :F])            # (B, Tn, F)
    return jnp.transpose(out, (0, 2, 1)).astype(spec.dtype)        # (B, F, Tn)


def phase_vocoder(complex_specgrams, rate, *, time_block=256):
    """JAX/Pallas counterpart of torchaudio.functional.phase_vocoder.

    `phase_advance` is not needed: wrap(x - phase_advance) + phase_advance
    differs from x by an exact multiple of 2*pi, which vanishes inside
    exp(i * cumsum(.)), so the complex output is independent of it.
    """
    if rate == 1.0:
        return complex_specgrams
    shape = complex_specgrams.shape
    spec = complex_specgrams.reshape((-1,) + shape[-2:])
    out = _phase_vocoder_impl(spec, rate=float(rate), time_block=int(time_block))
    return out.reshape(shape[:-1] + (out.shape[-1],))


class TimeStretch:
    """JAX/Pallas port of torchaudio.transforms.TimeStretch (forward only)."""

    def __init__(self, hop_length=None, n_freq=201, fixed_rate=None):
        self.fixed_rate = fixed_rate
        n_fft = (n_freq - 1) * 2
        self.hop_length = hop_length if hop_length is not None else n_fft // 2
        # Kept for parity with the torch module's registered buffer; analytically
        # redundant for the complex output (see phase_vocoder docstring).
        self.phase_advance = jnp.linspace(
            0.0, math.pi * self.hop_length, n_freq, dtype=jnp.float32)[:, None]

    def __call__(self, complex_specgrams, overriding_rate=None):
        rate = self.fixed_rate if overriding_rate is None else overriding_rate
        if rate is None:
            raise ValueError(
                "If no fixed_rate is specified, must pass a valid rate to forward.")
        return phase_vocoder(complex_specgrams, rate)


# -------------------- pure-JAX reference (mirrors torch) --------------------

def _phase_vocoder_reference(spec, rate, phase_advance):
    n_out = int(math.ceil(spec.shape[-1] / rate))
    # Same fractional time-step arithmetic as the kernel (torch.arange can
    # differ by at most 1 ulp, only exactly at integer ties).
    ts = jnp.arange(n_out, dtype=jnp.int32).astype(jnp.float32) * jnp.float32(rate)
    alphas = ts % 1.0
    phase_0 = jnp.angle(spec[..., :1])
    specp = jnp.pad(spec, ((0, 0), (0, 0), (0, 2)))
    t0 = jnp.floor(ts).astype(jnp.int32)
    t1 = jnp.floor(ts + 1.0).astype(jnp.int32)
    s0 = specp[..., t0]
    s1 = specp[..., t1]
    angle_0 = jnp.angle(s0)
    angle_1 = jnp.angle(s1)
    norm_0 = jnp.abs(s0)
    norm_1 = jnp.abs(s1)
    phase = angle_1 - angle_0 - phase_advance
    phase = phase - 2.0 * jnp.pi * jnp.round(phase / (2.0 * jnp.pi))
    phase = phase + phase_advance
    phase = jnp.concatenate([phase_0, phase[..., :-1]], axis=-1)
    phase_acc = jnp.cumsum(phase, axis=-1)
    mag = alphas * norm_1 + (1.0 - alphas) * norm_0
    return (mag * jnp.cos(phase_acc) + 1j * mag * jnp.sin(phase_acc)).astype(spec.dtype)


# ---------------------------------- main -------------------------------------

if __name__ == "__main__":
    B, F, T = 2, 201, 64          # (channel, n_freq, frames); torchaudio default n_freq
    rate = 1.2

    key = jax.random.PRNGKey(0)
    kr, ki = jax.random.split(key)
    spec = lax.complex(jax.random.normal(kr, (B, F, T), jnp.float32),
                       jax.random.normal(ki, (B, F, T), jnp.float32))

    # hop_length=8 keeps the f32 *reference* phase cumsum well conditioned for
    # the comparison below; the Pallas kernel itself is hop-independent.
    stretch = TimeStretch(hop_length=8, n_freq=F, fixed_rate=rate)

    out = jax.block_until_ready(stretch(spec))
    assert out.shape == (B, F, math.ceil(T / rate)), out.shape
    assert out.dtype == spec.dtype
    assert bool(jnp.all(jnp.isfinite(jnp.abs(out))))
    ref = _phase_vocoder_reference(spec, rate, stretch.phase_advance)
    err = float(jnp.max(jnp.abs(out - ref)))
    assert err < 5e-2, f"max abs error vs reference: {err}"

    # Multi-time-block path: exercises the cross-block carry + renormalization.
    out2 = jax.block_until_ready(phase_vocoder(spec, 0.9, time_block=32))
    assert out2.shape == (B, F, math.ceil(T / 0.9)), out2.shape
    assert bool(jnp.all(jnp.isfinite(jnp.abs(out2))))
    ref2 = _phase_vocoder_reference(spec, 0.9, stretch.phase_advance)
    err2 = float(jnp.max(jnp.abs(out2 - ref2)))
    assert err2 < 5e-2, f"max abs error vs reference (rate=0.9): {err2}"

    # Single-batch path: the frequency grid axis provides the parallelism.
    out3 = jax.block_until_ready(stretch(spec[:1]))
    assert out3.shape == (1, F, math.ceil(T / rate)), out3.shape
    ref3 = _phase_vocoder_reference(spec[:1], rate, stretch.phase_advance)
    err3 = float(jnp.max(jnp.abs(out3 - ref3)))
    assert err3 < 5e-2, f"max abs error vs reference (B=1): {err3}"

    print("KERNEL_OK")
</pallas_src>

<mosaic_0001>
module attributes {stable_mosaic.version = 11 : i64} {
  func.func @kernel(%arg0: i32, %arg1: i32, %arg2: i32, %arg3: memref<1x56x256xf32, #tpu.memory_space<vmem>>, %arg4: memref<1x56x256xf32, #tpu.memory_space<vmem>>, %arg5: memref<1x56x256xf32, #tpu.memory_space<vmem>>, %arg6: memref<1x56x256xf32, #tpu.memory_space<vmem>>, %arg7: memref<1x1x256xf32, #tpu.memory_space<vmem>>, %arg8: memref<1x1x256xf32, #tpu.memory_space<vmem>>, %arg9: memref<1x56x256xf32, #tpu.memory_space<vmem>>, %arg10: memref<1x56x256xf32, #tpu.memory_space<vmem>>, %arg11: memref<1x256xf32, #tpu.memory_space<vmem>>, %arg12: memref<1x256xf32, #tpu.memory_space<vmem>>) attributes {dimension_semantics = [#tpu.dimension_semantics<parallel>, #tpu.dimension_semantics<parallel>, #tpu.dimension_semantics<arbitrary>], iteration_bounds = array<i64: 2, 1, 1>, scalar_prefetch = 0 : i64, scratch_operands = 2 : i64, tpu.core_type = #tpu.core_type<tc>, window_params = [{transform_indices = @transform_0, window_bounds = array<i64: 1, 56, 256>}, {transform_indices = @transform_1, window_bounds = array<i64: 1, 56, 256>}, {transform_indices = @transform_2, window_bounds = array<i64: 1, 56, 256>}, {transform_indices = @transform_3, window_bounds = array<i64: 1, 56, 256>}, {transform_indices = @transform_4, window_bounds = array<i64: 1, 1, 256>}, {transform_indices = @transform_5, window_bounds = array<i64: 1, 1, 256>}, {transform_indices = @transform_6, window_bounds = array<i64: 1, 56, 256>}, {transform_indices = @transform_7, window_bounds = array<i64: 1, 56, 256>}]} {
    %c0_i32 = arith.constant 0 : i32
    %0 = arith.cmpi eq, %arg2, %c0_i32 : i32
    %1 = arith.extui %0 : i1 to i32
    %c0_i32_0 = arith.constant 0 : i32
    %2 = arith.cmpi ne, %1, %c0_i32_0 : i32
    scf.if %2 {
      %c0_82 = arith.constant 0 : index
      %c0_83 = arith.constant 0 : index
      %c0_84 = arith.constant 0 : index
      %344 = vector.load %arg7[%c0_82, %c0_83, %c0_84] : memref<1x1x256xf32, #tpu.memory_space<vmem>>, vector<1x1x256xf32>
      %345 = vector.shape_cast %344 : vector<1x1x256xf32> to vector<1x256xf32>
      %c0_85 = arith.constant 0 : index
      %c0_86 = arith.constant 0 : index
      %346 = vector.load %arg11[%c0_85, %c0_86] : memref<1x256xf32, #tpu.memory_space<vmem>>, vector<1x256xf32>
      tpu.vector_store %arg11[%c0_85, %c0_86], %345 {strides = array<i32>} : memref<1x256xf32, #tpu.memory_space<vmem>>, vector<1x256xf32>,
      %c0_87 = arith.constant 0 : index
      %c0_88 = arith.constant 0 : index
      %c0_89 = arith.constant 0 : index
      %347 = vector.load %arg8[%c0_87, %c0_88, %c0_89] : memref<1x1x256xf32, #tpu.memory_space<vmem>>, vector<1x1x256xf32>
      %348 = vector.shape_cast %347 : vector<1x1x256xf32> to vector<1x256xf32>
      %c0_90 = arith.constant 0 : index
      %c0_91 = arith.constant 0 : index
      %349 = vector.load %arg12[%c0_90, %c0_91] : memref<1x256xf32, #tpu.memory_space<vmem>>, vector<1x256xf32>
      tpu.vector_store %arg12[%c0_90, %c0_91], %348 {strides = array<i32>} : memref<1x256xf32, #tpu.memory_space<vmem>>, vector<1x256xf32>,
    } else {
    }
    %c0 = arith.constant 0 : index
    %c0_1 = arith.constant 0 : index
    %c0_2 = arith.constant 0 : index
    %3 = vector.load %arg3[%c0, %c0_1, %c0_2] : memref<1x56x256xf32, #tpu.memory_space<vmem>>, vector<1x56x256xf32>
    %4 = vector.shape_cast %3 : vector<1x56x256xf32> to vector<56x256xf32>
    %c0_3 = arith.constant 0 : index
    %c0_4 = arith.constant 0 : index
    %c0_5 = arith.constant 0 : index
    %5 = vector.load %arg4[%c0_3, %c0_4, %c0_5] : memref<1x56x256xf32, #tpu.memory_space<vmem>>, vector<1x56x256xf32>
    %6 = vector.shape_cast %5 : vector<1x56x256xf32> to vector<56x256xf32>
    %c0_6 = arith.constant 0 : index
    %c0_7 = arith.constant 0 : index
    %c0_8 = arith.constant 0 : index
    %7 = vector.load %arg5[%c0_6, %c0_7, %c0_8] : memref<1x56x256xf32, #tpu.memory_space<vmem>>, vector<1x56x256xf32>
    %8 = vector.shape_cast %7 : vector<1x56x256xf32> to vector<56x256xf32>
    %c0_9 = arith.constant 0 : index
    %c0_10 = arith.constant 0 : index
    %c0_11 = arith.constant 0 : index
    %9 = vector.load %arg6[%c0_9, %c0_10, %c0_11] : memref<1x56x256xf32, #tpu.memory_space<vmem>>, vector<1x56x256xf32>
    %10 = vector.shape_cast %9 : vector<1x56x256xf32> to vector<56x256xf32>
    %11 = arith.mulf %4, %4 : vector<56x256xf32>
    %12 = arith.mulf %6, %6 : vector<56x256xf32>
    %13 = arith.addf %11, %12 : vector<56x256xf32>
    %14 = arith.mulf %8, %8 : vector<56x256xf32>
    %15 = arith.mulf %10, %10 : vector<56x256xf32>
    %16 = arith.addf %14, %15 : vector<56x256xf32>
    %cst = arith.constant 9.99999991E-38 : f32
    %17 = vector.broadcast %cst : f32 to vector<56x256xf32>
    %18 = arith.maximumf %13, %17 : vector<56x256xf32>
    %19 = math.rsqrt %18 : vector<56x256xf32>
    %cst_12 = arith.constant 9.99999991E-38 : f32
    %20 = vector.broadcast %cst_12 : f32 to vector<56x256xf32>
    %21 = arith.maximumf %16, %20 : vector<56x256xf32>
    %22 = math.rsqrt %21 : vector<56x256xf32>
    %cst_13 = arith.constant 9.99999991E-38 : f32
    %23 = vector.broadcast %cst_13 : f32 to vector<56x256xf32>
    %24 = arith.cmpf oge, %13, %23 : vector<56x256xf32>
    %cst_14 = arith.constant 9.99999991E-38 : f32
    %25 = vector.broadcast %cst_14 : f32 to vector<56x256xf32>
    %26 = arith.cmpf oge, %16, %25 : vector<56x256xf32>
    %27 = arith.mulf %4, %19 : vector<56x256xf32>
    %cst_15 = arith.constant 1.000000e+00 : f32
    %28 = vector.broadcast %cst_15 : f32 to vector<56x256xf32>
    %29 = arith.select %24, %27, %28 : vector<56x256xi1>, vector<56x256xf32>
    %30 = arith.mulf %6, %19 : vector<56x256xf32>
    %cst_16 = arith.constant 0.000000e+00 : f32
    %31 = vector.broadcast %cst_16 : f32 to vector<56x256xf32>
    %32 = arith.select %24, %30, %31 : vector<56x256xi1>, vector<56x256xf32>
    %33 = arith.mulf %8, %22 : vector<56x256xf32>
    %cst_17 = arith.constant 1.000000e+00 : f32
    %34 = vector.broadcast %cst_17 : f32 to vector<56x256xf32>
    %35 = arith.select %26, %33, %34 : vector<56x256xi1>, vector<56x256xf32>
    %36 = arith.mulf %10, %22 : vector<56x256xf32>
    %cst_18 = arith.constant 0.000000e+00 : f32
    %37 = vector.broadcast %cst_18 : f32 to vector<56x256xf32>
    %38 = arith.select %26, %36, %37 : vector<56x256xi1>, vector<56x256xf32>
    %39 = arith.mulf %35, %29 : vector<56x256xf32>
    %40 = arith.mulf %38, %32 : vector<56x256xf32>
    %41 = arith.addf %39, %40 : vector<56x256xf32>
    %42 = arith.mulf %38, %29 : vector<56x256xf32>
    %43 = arith.mulf %35, %32 : vector<56x256xf32>
    %44 = arith.subf %42, %43 : vector<56x256xf32>
    %45 = tpu.iota {dimensions = array<i32: 0>} : vector<56x1xi32>
    %c56_i32 = arith.constant 56 : i32
    %46 = arith.muli %arg2, %c56_i32 : i32
    %47 = vector.broadcast %46 : i32 to vector<56x1xi32>
    %48 = arith.addi %47, %45 : vector<56x1xi32>
    %49 = arith.sitofp %48 : vector<56x1xi32> to vector<56x1xf32>
    %cst_19 = arith.constant 1.200000e+00 : f32
    %50 = vector.broadcast %cst_19 : f32 to vector<56x1xf32>
    %51 = arith.mulf %49, %50 : vector<56x1xf32>
    %52 = math.floor %51 : vector<56x1xf32>
    %53 = arith.subf %51, %52 : vector<56x1xf32>
    %54 = arith.mulf %16, %22 : vector<56x256xf32>
    %55 = vector.broadcast %53 : vector<56x1xf32> to vector<56x256xf32>
    %56 = arith.mulf %55, %54 : vector<56x256xf32>
    %cst_20 = arith.constant 1.000000e+00 : f32
    %57 = vector.broadcast %cst_20 : f32 to vector<56x1xf32>
    %58 = arith.subf %57, %53 : vector<56x1xf32>
    %59 = arith.mulf %13, %19 : vector<56x256xf32>
    %60 = vector.broadcast %58 : vector<56x1xf32> to vector<56x256xf32>
    %61 = arith.mulf %60, %59 : vector<56x256xf32>
    %62 = arith.addf %56, %61 : vector<56x256xf32>
    %c7_i32 = arith.constant 7 : i32
    %63 = vector.broadcast %c7_i32 : i32 to vector<56x1xi32>
    %64 = arith.andi %45, %63 : vector<56x1xi32>
    %c1_i32 = arith.constant 1 : i32
    %65 = vector.broadcast %c1_i32 : i32 to vector<56x1xi32>
    %66 = arith.cmpi sge, %64, %65 : vector<56x1xi32>
    %c2_i32 = arith.constant 2 : i32
    %67 = vector.broadcast %c2_i32 : i32 to vector<56x1xi32>
    %68 = arith.cmpi sge, %64, %67 : vector<56x1xi32>
    %c4_i32 = arith.constant 4 : i32
    %69 = vector.broadcast %c4_i32 : i32 to vector<56x1xi32>
    %70 = arith.cmpi sge, %64, %69 : vector<56x1xi32>
    %c1_i32_21 = arith.constant 1 : i32
    %71 = tpu.dynamic_rotate %41 by %c1_i32_21 dim 0 : vector<56x256xf32>, i32 -> vector<56x256xf32>
    %c1_i32_22 = arith.constant 1 : i32
    %72 = tpu.dynamic_rotate %44 by %c1_i32_22 dim 0 : vector<56x256xf32>, i32 -> vector<56x256xf32>
    %cst_23 = arith.constant 1.000000e+00 : f32
    %73 = vector.shape_cast %66 : vector<56x1xi1> to vector<56x1xi1>
    %74 = vector.broadcast %73 : vector<56x1xi1> to vector<56x256xi1>
    %75 = vector.broadcast %cst_23 : f32 to vector<56x256xf32>
    %76 = arith.select %74, %71, %75 : vector<56x256xi1>, vector<56x256xf32>
    %cst_24 = arith.constant 0.000000e+00 : f32
    %77 = vector.shape_cast %66 : vector<56x1xi1> to vector<56x1xi1>
    %78 = vector.broadcast %77 : vector<56x1xi1> to vector<56x256xi1>
    %79 = vector.broadcast %cst_24 : f32 to vector<56x256xf32>
    %80 = arith.select %78, %72, %79 : vector<56x256xi1>, vector<56x256xf32>
    %81 = arith.mulf %41, %76 : vector<56x256xf32>
    %82 = arith.mulf %44, %80 : vector<56x256xf32>
    %83 = arith.subf %81, %82 : vector<56x256xf32>
    %84 = arith.mulf %41, %80 : vector<56x256xf32>
    %85 = arith.mulf %44, %76 : vector<56x256xf32>
    %86 = arith.addf %84, %85 : vector<56x256xf32>
    %c2_i32_25 = arith.constant 2 : i32
    %87 = tpu.dynamic_rotate %83 by %c2_i32_25 dim 0 : vector<56x256xf32>, i32 -> vector<56x256xf32>
    %c2_i32_26 = arith.constant 2 : i32
    %88 = tpu.dynamic_rotate %86 by %c2_i32_26 dim 0 : vector<56x256xf32>, i32 -> vector<56x256xf32>
    %cst_27 = arith.constant 1.000000e+00 : f32
    %89 = vector.shape_cast %68 : vector<56x1xi1> to vector<56x1xi1>
    %90 = vector.broadcast %89 : vector<56x1xi1> to vector<56x256xi1>
    %91 = vector.broadcast %cst_27 : f32 to vector<56x256xf32>
    %92 = arith.select %90, %87, %91 : vector<56x256xi1>, vector<56x256xf32>
    %cst_28 = arith.constant 0.000000e+00 : f32
    %93 = vector.shape_cast %68 : vector<56x1xi1> to vector<56x1xi1>
    %94 = vector.broadcast %93 : vector<56x1xi1> to vector<56x256xi1>
    %95 = vector.broadcast %cst_28 : f32 to vector<56x256xf32>
    %96 = arith.select %94, %88, %95 : vector<56x256xi1>, vector<56x256xf32>
    %97 = arith.mulf %83, %92 : vector<56x256xf32>
    %98 = arith.mulf %86, %96 : vector<56x256xf32>
    %99 = arith.subf %97, %98 : vector<56x256xf32>
    %100 = arith.mulf %83, %96 : vector<56x256xf32>
    %101 = arith.mulf %86, %92 : vector<56x256xf32>
    %102 = arith.addf %100, %101 : vector<56x256xf32>
    %c4_i32_29 = arith.constant 4 : i32
    %103 = tpu.dynamic_rotate %99 by %c4_i32_29 dim 0 : vector<56x256xf32>, i32 -> vector<56x256xf32>
    %c4_i32_30 = arith.constant 4 : i32
    %104 = tpu.dynamic_rotate %102 by %c4_i32_30 dim 0 : vector<56x256xf32>, i32 -> vector<56x256xf32>
    %cst_31 = arith.constant 1.000000e+00 : f32
    %105 = vector.shape_cast %70 : vector<56x1xi1> to vector<56x1xi1>
    %106 = vector.broadcast %105 : vector<56x1xi1> to vector<56x256xi1>
    %107 = vector.broadcast %cst_31 : f32 to vector<56x256xf32>
    %108 = arith.select %106, %103, %107 : vector<56x256xi1>, vector<56x256xf32>
    %cst_32 = arith.constant 0.000000e+00 : f32
    %109 = vector.shape_cast %70 : vector<56x1xi1> to vector<56x1xi1>
    %110 = vector.broadcast %109 : vector<56x1xi1> to vector<56x256xi1>
    %111 = vector.broadcast %cst_32 : f32 to vector<56x256xf32>
    %112 = arith.select %110, %104, %111 : vector<56x256xi1>, vector<56x256xf32>
    %113 = arith.mulf %99, %108 : vector<56x256xf32>
    %114 = arith.mulf %102, %112 : vector<56x256xf32>
    %115 = arith.subf %113, %114 : vector<56x256xf32>
    %116 = arith.mulf %99, %112 : vector<56x256xf32>
    %117 = arith.mulf %102, %108 : vector<56x256xf32>
    %118 = arith.addf %116, %117 : vector<56x256xf32>
    %c1_i32_33 = arith.constant 1 : i32
    %119 = tpu.dynamic_rotate %115 by %c1_i32_33 dim 0 : vector<56x256xf32>, i32 -> vector<56x256xf32>
    %cst_34 = arith.constant 1.000000e+00 : f32
    %120 = vector.shape_cast %66 : vector<56x1xi1> to vector<56x1xi1>
    %121 = vector.broadcast %120 : vector<56x1xi1> to vector<56x256xi1>
    %122 = vector.broadcast %cst_34 : f32 to vector<56x256xf32>
    %123 = arith.select %121, %119, %122 : vector<56x256xi1>, vector<56x256xf32>
    %c1_i32_35 = arith.constant 1 : i32
    %124 = tpu.dynamic_rotate %118 by %c1_i32_35 dim 0 : vector<56x256xf32>, i32 -> vector<56x256xf32>
    %cst_36 = arith.constant 0.000000e+00 : f32
    %125 = vector.shape_cast %66 : vector<56x1xi1> to vector<56x1xi1>
    %126 = vector.broadcast %125 : vector<56x1xi1> to vector<56x256xi1>
    %127 = vector.broadcast %cst_36 : f32 to vector<56x256xf32>
    %128 = arith.select %126, %124, %127 : vector<56x256xi1>, vector<56x256xf32>
    %c0_37 = arith.constant 0 : index
    %c0_38 = arith.constant 0 : index
    %129 = vector.load %arg11[%c0_37, %c0_38] : memref<1x256xf32, #tpu.memory_space<vmem>>, vector<1x256xf32>
    %c0_39 = arith.constant 0 : index
    %c0_40 = arith.constant 0 : index
    %130 = vector.load %arg12[%c0_39, %c0_40] : memref<1x256xf32, #tpu.memory_space<vmem>>, vector<1x256xf32>
    %131 = vector.extract_strided_slice %123 {offsets = [0, 0], sizes = [8, 256], strides = [1, 1]} : vector<56x256xf32> to vector<8x256xf32>
    %132 = vector.extract_strided_slice %128 {offsets = [0, 0], sizes = [8, 256], strides = [1, 1]} : vector<56x256xf32> to vector<8x256xf32>
    %133 = vector.broadcast %129 : vector<1x256xf32> to vector<8x256xf32>
    %134 = arith.mulf %133, %131 : vector<8x256xf32>
    %135 = vector.broadcast %130 : vector<1x256xf32> to vector<8x256xf32>
    %136 = arith.mulf %135, %132 : vector<8x256xf32>
    %137 = arith.subf %134, %136 : vector<8x256xf32>
    %138 = vector.broadcast %129 : vector<1x256xf32> to vector<8x256xf32>
    %139 = arith.mulf %138, %132 : vector<8x256xf32>
    %140 = vector.broadcast %130 : vector<1x256xf32> to vector<8x256xf32>
    %141 = arith.mulf %140, %131 : vector<8x256xf32>
    %142 = arith.addf %139, %141 : vector<8x256xf32>
    %143 = vector.extract_strided_slice %62 {offsets = [0, 0], sizes = [8, 256], strides = [1, 1]} : vector<56x256xf32> to vector<8x256xf32>
    %144 = arith.mulf %143, %137 : vector<8x256xf32>
    %c0_41 = arith.constant 0 : index
    %c0_42 = arith.constant 0 : index
    %c0_43 = arith.constant 0 : index
    %145 = vector.load %arg9[%c0_41, %c0_42, %c0_43] : memref<1x56x256xf32, #tpu.memory_space<vmem>>, vector<1x8x256xf32>
    %146 = vector.shape_cast %145 : vector<1x8x256xf32> to vector<8x256xf32>
    %147 = vector.shape_cast %144 : vector<8x256xf32> to vector<1x8x256xf32>
    tpu.vector_store %arg9[%c0_41, %c0_42, %c0_43], %147 {strides = array<i32>} : memref<1x56x256xf32, #tpu.memory_space<vmem>>, vector<1x8x256xf32>,
    %148 = arith.mulf %143, %142 : vector<8x256xf32>
    %c0_44 = arith.constant 0 : index
    %c0_45 = arith.constant 0 : index
    %c0_46 = arith.constant 0 : index
    %149 = vector.load %arg10[%c0_44, %c0_45, %c0_46] : memref<1x56x256xf32, #tpu.memory_space<vmem>>, vector<1x8x256xf32>
    %150 = vector.shape_cast %149 : vector<1x8x256xf32> to vector<8x256xf32>
    %151 = vector.shape_cast %148 : vector<8x256xf32> to vector<1x8x256xf32>
    tpu.vector_store %arg10[%c0_44, %c0_45, %c0_46], %151 {strides = array<i32>} : memref<1x56x256xf32, #tpu.memory_space<vmem>>, vector<1x8x256xf32>,
    %152 = vector.extract_strided_slice %115 {offsets = [7, 0], sizes = [1, 256], strides = [1, 1]} : vector<56x256xf32> to vector<1x256xf32>
    %153 = vector.extract_strided_slice %118 {offsets = [7, 0], sizes = [1, 256], strides = [1, 1]} : vector<56x256xf32> to vector<1x256xf32>
    %154 = arith.mulf %129, %152 : vector<1x256xf32>
    %155 = arith.mulf %130, %153 : vector<1x256xf32>
    %156 = arith.subf %154, %155 : vector<1x256xf32>
    %157 = arith.mulf %129, %153 : vector<1x256xf32>
    %158 = arith.mulf %130, %152 : vector<1x256xf32>
    %159 = arith.addf %157, %158 : vector<1x256xf32>
    %160 = vector.extract_strided_slice %123 {offsets = [8, 0], sizes = [8, 256], strides = [1, 1]} : vector<56x256xf32> to vector<8x256xf32>
    %161 = vector.extract_strided_slice %128 {offsets = [8, 0], sizes = [8, 256], strides = [1, 1]} : vector<56x256xf32> to vector<8x256xf32>
    %162 = vector.broadcast %156 : vector<1x256xf32> to vector<8x256xf32>
    %163 = arith.mulf %162, %160 : vector<8x256xf32>
    %164 = vector.broadcast %159 : vector<1x256xf32> to vector<8x256xf32>
    %165 = arith.mulf %164, %161 : vector<8x256xf32>
    %166 = arith.subf %163, %165 : vector<8x256xf32>
    %167 = vector.broadcast %156 : vector<1x256xf32> to vector<8x256xf32>
    %168 = arith.mulf %167, %161 : vector<8x256xf32>
    %169 = vector.broadcast %159 : vector<1x256xf32> to vector<8x256xf32>
    %170 = arith.mulf %169, %160 : vector<8x256xf32>
    %171 = arith.addf %168, %170 : vector<8x256xf32>
    %172 = vector.extract_strided_slice %62 {offsets = [8, 0], sizes = [8, 256], strides = [1, 1]} : vector<56x256xf32> to vector<8x256xf32>
    %173 = arith.mulf %172, %166 : vector<8x256xf32>
    %c0_47 = arith.constant 0 : index
    %c8 = arith.constant 8 : index
    %c0_48 = arith.constant 0 : index
    %174 = vector.load %arg9[%c0_47, %c8, %c0_48] : memref<1x56x256xf32, #tpu.memory_space<vmem>>, vector<1x8x256xf32>
    %175 = vector.shape_cast %174 : vector<1x8x256xf32> to vector<8x256xf32>
    %176 = vector.shape_cast %173 : vector<8x256xf32> to vector<1x8x256xf32>
    tpu.vector_store %arg9[%c0_47, %c8, %c0_48], %176 {strides = array<i32>} : memref<1x56x256xf32, #tpu.memory_space<vmem>>, vector<1x8x256xf32>,
    %177 = arith.mulf %172, %171 : vector<8x256xf32>
    %c0_49 = arith.constant 0 : index
    %c8_50 = arith.constant 8 : index
    %c0_51 = arith.constant 0 : index
    %178 = vector.load %arg10[%c0_49, %c8_50, %c0_51] : memref<1x56x256xf32, #tpu.memory_space<vmem>>, vector<1x8x256xf32>
    %179 = vector.shape_cast %178 : vector<1x8x256xf32> to vector<8x256xf32>
    %180 = vector.shape_cast %177 : vector<8x256xf32> to vector<1x8x256xf32>
    tpu.vector_store %arg10[%c0_49, %c8_50, %c0_51], %180 {strides = array<i32>} : memref<1x56x256xf32, #tpu.memory_space<vmem>>, vector<1x8x256xf32>,
    %181 = vector.extract_strided_slice %115 {offsets = [15, 0], sizes = [1, 256], strides = [1, 1]} : vector<56x256xf32> to vector<1x256xf32>
    %182 = vector.extract_strided_slice %118 {offsets = [15, 0], sizes = [1, 256], strides = [1, 1]} : vector<56x256xf32> to vector<1x256xf32>
    %183 = arith.mulf %156, %181 : vector<1x256xf32>
    %184 = arith.mulf %159, %182 : vector<1x256xf32>
    %185 = arith.subf %183, %184 : vector<1x256xf32>
    %186 = arith.mulf %156, %182 : vector<1x256xf32>
    %187 = arith.mulf %159, %181 : vector<1x256xf32>
    %188 = arith.addf %186, %187 : vector<1x256xf32>
    %189 = vector.extract_strided_slice %123 {offsets = [16, 0], sizes = [8, 256], strides = [1, 1]} : vector<56x256xf32> to vector<8x256xf32>
    %190 = vector.extract_strided_slice %128 {offsets = [16, 0], sizes = [8, 256], strides = [1, 1]} : vector<56x256xf32> to vector<8x256xf32>
    %191 = vector.broadcast %185 : vector<1x256xf32> to vector<8x256xf32>
    %192 = arith.mulf %191, %189 : vector<8x256xf32>
    %193 = vector.broadcast %188 : vector<1x256xf32> to vector<8x256xf32>
    %194 = arith.mulf %193, %190 : vector<8x256xf32>
    %195 = arith.subf %192, %194 : vector<8x256xf32>
    %196 = vector.broadcast %185 : vector<1x256xf32> to vector<8x256xf32>
    %197 = arith.mulf %196, %190 : vector<8x256xf32>
    %198 = vector.broadcast %188 : vector<1x256xf32> to vector<8x256xf32>
    %199 = arith.mulf %198, %189 : vector<8x256xf32>
    %200 = arith.addf %197, %199 : vector<8x256xf32>
    %201 = vector.extract_strided_slice %62 {offsets = [16, 0], sizes = [8, 256], strides = [1, 1]} : vector<56x256xf32> to vector<8x256xf32>
    %202 = arith.mulf %201, %195 : vector<8x256xf32>
    %c0_52 = arith.constant 0 : index
    %c16 = arith.constant 16 : index
    %c0_53 = arith.constant 0 : index
    %203 = vector.load %arg9[%c0_52, %c16, %c0_53] : memref<1x56x256xf32, #tpu.memory_space<vmem>>, vector<1x8x256xf32>
    %204 = vector.shape_cast %203 : vector<1x8x256xf32> to vector<8x256xf32>
    %205 = vector.shape_cast %202 : vector<8x256xf32> to vector<1x8x256xf32>
    tpu.vector_store %arg9[%c0_52, %c16, %c0_53], %205 {strides = array<i32>} : memref<1x56x256xf32, #tpu.memory_space<vmem>>, vector<1x8x256xf32>,
    %206 = arith.mulf %201, %200 : vector<8x256xf32>
    %c0_54 = arith.constant 0 : index
    %c16_55 = arith.constant 16 : index
    %c0_56 = arith.constant 0 : index
    %207 = vector.load %arg10[%c0_54, %c16_55, %c0_56] : memref<1x56x256xf32, #tpu.memory_space<vmem>>, vector<1x8x256xf32>
    %208 = vector.shape_cast %207 : vector<1x8x256xf32> to vector<8x256xf32>
    %209 = vector.shape_cast %206 : vector<8x256xf32> to vector<1x8x256xf32>
    tpu.vector_store %arg10[%c0_54, %c16_55, %c0_56], %209 {strides = array<i32>} : memref<1x56x256xf32, #tpu.memory_space<vmem>>, vector<1x8x256xf32>,
    %210 = vector.extract_strided_slice %115 {offsets = [23, 0], sizes = [1, 256], strides = [1, 1]} : vector<56x256xf32> to vector<1x256xf32>
    %211 = vector.extract_strided_slice %118 {offsets = [23, 0], sizes = [1, 256], strides = [1, 1]} : vector<56x256xf32> to vector<1x256xf32>
    %212 = arith.mulf %185, %210 : vector<1x256xf32>
    %213 = arith.mulf %188, %211 : vector<1x256xf32>
    %214 = arith.subf %212, %213 : vector<1x256xf32>
    %215 = arith.mulf %185, %211 : vector<1x256xf32>
    %216 = arith.mulf %188, %210 : vector<1x256xf32>
    %217 = arith.addf %215, %216 : vector<1x256xf32>
    %218 = vector.extract_strided_slice %123 {offsets = [24, 0], sizes = [8, 256], strides = [1, 1]} : vector<56x256xf32> to vector<8x256xf32>
    %219 = vector.extract_strided_slice %128 {offsets = [24, 0], sizes = [8, 256], strides = [1, 1]} : vector<56x256xf32> to vector<8x256xf32>
    %220 = vector.broadcast %214 : vector<1x256xf32> to vector<8x256xf32>
    %221 = arith.mulf %220, %218 : vector<8x256xf32>
    %222 = vector.broadcast %217 : vector<1x256xf32> to vector<8x256xf32>
    %223 = arith.mulf %222, %219 : vector<8x256xf32>
    %224 = arith.subf %221, %223 : vector<8x256xf32>
    %225 = vector.broadcast %214 : vector<1x256xf32> to vector<8x256xf32>
    %226 = arith.mulf %225, %219 : vector<8x256xf32>
    %227 = vector.broadcast %217 : vector<1x256xf32> to vector<8x256xf32>
    %228 = arith.mulf %227, %218 : vector<8x256xf32>
    %229 = arith.addf %226, %228 : vector<8x256xf32>
    %230 = vector.extract_strided_slice %62 {offsets = [24, 0], sizes = [8, 256], strides = [1, 1]} : vector<56x256xf32> to vector<8x256xf32>
    %231 = arith.mulf %230, %224 : vector<8x256xf32>
    %c0_57 = arith.constant 0 : index
    %c24 = arith.constant 24 : index
    %c0_58 = arith.constant 0 : index
    %232 = vector.load %arg9[%c0_57, %c24, %c0_58] : memref<1x56x256xf32, #tpu.memory_space<vmem>>, vector<1x8x256xf32>
    %233 = vector.shape_cast %232 : vector<1x8x256xf32> to vector<8x256xf32>
    %234 = vector.shape_cast %231 : vector<8x256xf32> to vector<1x8x256xf32>
    tpu.vector_store %arg9[%c0_57, %c24, %c0_58], %234 {strides = array<i32>} : memref<1x56x256xf32, #tpu.memory_space<vmem>>, vector<1x8x256xf32>,
    %235 = arith.mulf %230, %229 : vector<8x256xf32>
    %c0_59 = arith.constant 0 : index
    %c24_60 = arith.constant 24 : index
    %c0_61 = arith.constant 0 : index
    %236 = vector.load %arg10[%c0_59, %c24_60, %c0_61] : memref<1x56x256xf32, #tpu.memory_space<vmem>>, vector<1x8x256xf32>
    %237 = vector.shape_cast %236 : vector<1x8x256xf32> to vector<8x256xf32>
    %238 = vector.shape_cast %235 : vector<8x256xf32> to vector<1x8x256xf32>
    tpu.vector_store %arg10[%c0_59, %c24_60, %c0_61], %238 {strides = array<i32>} : memref<1x56x256xf32, #tpu.memory_space<vmem>>, vector<1x8x256xf32>,
    %239 = vector.extract_strided_slice %115 {offsets = [31, 0], sizes = [1, 256], strides = [1, 1]} : vector<56x256xf32> to vector<1x256xf32>
    %240 = vector.extract_strided_slice %118 {offsets = [31, 0], sizes = [1, 256], strides = [1, 1]} : vector<56x256xf32> to vector<1x256xf32>
    %241 = arith.mulf %214, %239 : vector<1x256xf32>
    %242 = arith.mulf %217, %240 : vector<1x256xf32>
    %243 = arith.subf %241, %242 : vector<1x256xf32>
    %244 = arith.mulf %214, %240 : vector<1x256xf32>
    %245 = arith.mulf %217, %239 : vector<1x256xf32>
    %246 = arith.addf %244, %245 : vector<1x256xf32>
    %247 = vector.extract_strided_slice %123 {offsets = [32, 0], sizes = [8, 256], strides = [1, 1]} : vector<56x256xf32> to vector<8x256xf32>
    %248 = vector.extract_strided_slice %128 {offsets = [32, 0], sizes = [8, 256], strides = [1, 1]} : vector<56x256xf32> to vector<8x256xf32>
    %249 = vector.broadcast %243 : vector<1x256xf32> to vector<8x256xf32>
    %250 = arith.mulf %249, %247 : vector<8x256xf32>
    %251 = vector.broadcast %246 : vector<1x256xf32> to vector<8x256xf32>
    %252 = arith.mulf %251, %248 : vector<8x256xf32>
    %253 = arith.subf %250, %252 : vector<8x256xf32>
    %254 = vector.broadcast %243 : vector<1x256xf32> to vector<8x256xf32>
    %255 = arith.mulf %254, %248 : vector<8x256xf32>
    %256 = vector.broadcast %246 : vector<1x256xf32> to vector<8x256xf32>
    %257 = arith.mulf %256, %247 : vector<8x256xf32>
    %258 = arith.addf %255, %257 : vector<8x256xf32>
    %259 = vector.extract_strided_slice %62 {offsets = [32, 0], sizes = [8, 256], strides = [1, 1]} : vector<56x256xf32> to vector<8x256xf32>
    %260 = arith.mulf %259, %253 : vector<8x256xf32>
    %c0_62 = arith.constant 0 : index
    %c32 = arith.constant 32 : index
    %c0_63 = arith.constant 0 : index
    %261 = vector.load %arg9[%c0_62, %c32, %c0_63] : memref<1x56x256xf32, #tpu.memory_space<vmem>>, vector<1x8x256xf32>
    %262 = vector.shape_cast %261 : vector<1x8x256xf32> to vector<8x256xf32>
    %263 = vector.shape_cast %260 : vector<8x256xf32> to vector<1x8x256xf32>
    tpu.vector_store %arg9[%c0_62, %c32, %c0_63], %263 {strides = array<i32>} : memref<1x56x256xf32, #tpu.memory_space<vmem>>, vector<1x8x256xf32>,
    %264 = arith.mulf %259, %258 : vector<8x256xf32>
    %c0_64 = arith.constant 0 : index
    %c32_65 = arith.constant 32 : index
    %c0_66 = arith.constant 0 : index
    %265 = vector.load %arg10[%c0_64, %c32_65, %c0_66] : memref<1x56x256xf32, #tpu.memory_space<vmem>>, vector<1x8x256xf32>
    %266 = vector.shape_cast %265 : vector<1x8x256xf32> to vector<8x256xf32>
    %267 = vector.shape_cast %264 : vector<8x256xf32> to vector<1x8x256xf32>
    tpu.vector_store %arg10[%c0_64, %c32_65, %c0_66], %267 {strides = array<i32>} : memref<1x56x256xf32, #tpu.memory_space<vmem>>, vector<1x8x256xf32>,
    %268 = vector.extract_strided_slice %115 {offsets = [39, 0], sizes = [1, 256], strides = [1, 1]} : vector<56x256xf32> to vector<1x256xf32>
    %269 = vector.extract_strided_slice %118 {offsets = [39, 0], sizes = [1, 256], strides = [1, 1]} : vector<56x256xf32> to vector<1x256xf32>
    %270 = arith.mulf %243, %268 : vector<1x256xf32>
    %271 = arith.mulf %246, %269 : vector<1x256xf32>
    %272 = arith.subf %270, %271 : vector<1x256xf32>
    %273 = arith.mulf %243, %269 : vector<1x256xf32>
    %274 = arith.mulf %246, %268 : vector<1x256xf32>
    %275 = arith.addf %273, %274 : vector<1x256xf32>
    %276 = vector.extract_strided_slice %123 {offsets = [40, 0], sizes = [8, 256], strides = [1, 1]} : vector<56x256xf32> to vector<8x256xf32>
    %277 = vector.extract_strided_slice %128 {offsets = [40, 0], sizes = [8, 256], strides = [1, 1]} : vector<56x256xf32> to vector<8x256xf32>
    %278 = vector.broadcast %272 : vector<1x256xf32> to vector<8x256xf32>
    %279 = arith.mulf %278, %276 : vector<8x256xf32>
    %280 = vector.broadcast %275 : vector<1x256xf32> to vector<8x256xf32>
    %281 = arith.mulf %280, %277 : vector<8x256xf32>
    %282 = arith.subf %279, %281 : vector<8x256xf32>
    %283 = vector.broadcast %272 : vector<1x256xf32> to vector<8x256xf32>
    %284 = arith.mulf %283, %277 : vector<8x256xf32>
    %285 = vector.broadcast %275 : vector<1x256xf32> to vector<8x256xf32>
    %286 = arith.mulf %285, %276 : vector<8x256xf32>
    %287 = arith.addf %284, %286 : vector<8x256xf32>
    %288 = vector.extract_strided_slice %62 {offsets = [40, 0], sizes = [8, 256], strides = [1, 1]} : vector<56x256xf32> to vector<8x256xf32>
    %289 = arith.mulf %288, %282 : vector<8x256xf32>
    %c0_67 = arith.constant 0 : index
    %c40 = arith.constant 40 : index
    %c0_68 = arith.constant 0 : index
    %290 = vector.load %arg9[%c0_67, %c40, %c0_68] : memref<1x56x256xf32, #tpu.memory_space<vmem>>, vector<1x8x256xf32>
    %291 = vector.shape_cast %290 : vector<1x8x256xf32> to vector<8x256xf32>
    %292 = vector.shape_cast %289 : vector<8x256xf32> to vector<1x8x256xf32>
    tpu.vector_store %arg9[%c0_67, %c40, %c0_68], %292 {strides = array<i32>} : memref<1x56x256xf32, #tpu.memory_space<vmem>>, vector<1x8x256xf32>,
    %293 = arith.mulf %288, %287 : vector<8x256xf32>
    %c0_69 = arith.constant 0 : index
    %c40_70 = arith.constant 40 : index
    %c0_71 = arith.constant 0 : index
    %294 = vector.load %arg10[%c0_69, %c40_70, %c0_71] : memref<1x56x256xf32, #tpu.memory_space<vmem>>, vector<1x8x256xf32>
    %295 = vector.shape_cast %294 : vector<1x8x256xf32> to vector<8x256xf32>
    %296 = vector.shape_cast %293 : vector<8x256xf32> to vector<1x8x256xf32>
    tpu.vector_store %arg10[%c0_69, %c40_70, %c0_71], %296 {strides = array<i32>} : memref<1x56x256xf32, #tpu.memory_space<vmem>>, vector<1x8x256xf32>,
    %297 = vector.extract_strided_slice %115 {offsets = [47, 0], sizes = [1, 256], strides = [1, 1]} : vector<56x256xf32> to vector<1x256xf32>
    %298 = vector.extract_strided_slice %118 {offsets = [47, 0], sizes = [1, 256], strides = [1, 1]} : vector<56x256xf32> to vector<1x256xf32>
    %299 = arith.mulf %272, %297 : vector<1x256xf32>
    %300 = arith.mulf %275, %298 : vector<1x256xf32>
    %301 = arith.subf %299, %300 : vector<1x256xf32>
    %302 = arith.mulf %272, %298 : vector<1x256xf32>
    %303 = arith.mulf %275, %297 : vector<1x256xf32>
    %304 = arith.addf %302, %303 : vector<1x256xf32>
    %305 = vector.extract_strided_slice %123 {offsets = [48, 0], sizes = [8, 256], strides = [1, 1]} : vector<56x256xf32> to vector<8x256xf32>
    %306 = vector.extract_strided_slice %128 {offsets = [48, 0], sizes = [8, 256], strides = [1, 1]} : vector<56x256xf32> to vector<8x256xf32>
    %307 = vector.broadcast %301 : vector<1x256xf32> to vector<8x256xf32>
    %308 = arith.mulf %307, %305 : vector<8x256xf32>
    %309 = vector.broadcast %304 : vector<1x256xf32> to vector<8x256xf32>
    %310 = arith.mulf %309, %306 : vector<8x256xf32>
    %311 = arith.subf %308, %310 : vector<8x256xf32>
    %312 = vector.broadcast %301 : vector<1x256xf32> to vector<8x256xf32>
    %313 = arith.mulf %312, %306 : vector<8x256xf32>
    %314 = vector.broadcast %304 : vector<1x256xf32> to vector<8x256xf32>
    %315 = arith.mulf %314, %305 : vector<8x256xf32>
    %316 = arith.addf %313, %315 : vector<8x256xf32>
    %317 = vector.extract_strided_slice %62 {offsets = [48, 0], sizes = [8, 256], strides = [1, 1]} : vector<56x256xf32> to vector<8x256xf32>
    %318 = arith.mulf %317, %311 : vector<8x256xf32>
    %c0_72 = arith.constant 0 : index
    %c48 = arith.constant 48 : index
    %c0_73 = arith.constant 0 : index
    %319 = vector.load %arg9[%c0_72, %c48, %c0_73] : memref<1x56x256xf32, #tpu.memory_space<vmem>>, vector<1x8x256xf32>
    %320 = vector.shape_cast %319 : vector<1x8x256xf32> to vector<8x256xf32>
    %321 = vector.shape_cast %318 : vector<8x256xf32> to vector<1x8x256xf32>
    tpu.vector_store %arg9[%c0_72, %c48, %c0_73], %321 {strides = array<i32>} : memref<1x56x256xf32, #tpu.memory_space<vmem>>, vector<1x8x256xf32>,
    %322 = arith.mulf %317, %316 : vector<8x256xf32>
    %c0_74 = arith.constant 0 : index
    %c48_75 = arith.constant 48 : index
    %c0_76 = arith.constant 0 : index
    %323 = vector.load %arg10[%c0_74, %c48_75, %c0_76] : memref<1x56x256xf32, #tpu.memory_space<vmem>>, vector<1x8x256xf32>
    %324 = vector.shape_cast %323 : vector<1x8x256xf32> to vector<8x256xf32>
    %325 = vector.shape_cast %322 : vector<8x256xf32> to vector<1x8x256xf32>
    tpu.vector_store %arg10[%c0_74, %c48_75, %c0_76], %325 {strides = array<i32>} : memref<1x56x256xf32, #tpu.memory_space<vmem>>, vector<1x8x256xf32>,
    %326 = vector.extract_strided_slice %115 {offsets = [55, 0], sizes = [1, 256], strides = [1, 1]} : vector<56x256xf32> to vector<1x256xf32>
    %327 = vector.extract_strided_slice %118 {offsets = [55, 0], sizes = [1, 256], strides = [1, 1]} : vector<56x256xf32> to vector<1x256xf32>
    %328 = arith.mulf %301, %326 : vector<1x256xf32>
    %329 = arith.mulf %304, %327 : vector<1x256xf32>
    %330 = arith.subf %328, %329 : vector<1x256xf32>
    %331 = arith.mulf %301, %327 : vector<1x256xf32>
    %332 = arith.mulf %304, %326 : vector<1x256xf32>
    %333 = arith.addf %331, %332 : vector<1x256xf32>
    %334 = arith.mulf %330, %330 : vector<1x256xf32>
    %335 = arith.mulf %333, %333 : vector<1x256xf32>
    %336 = arith.addf %334, %335 : vector<1x256xf32>
    %cst_77 = arith.constant 9.99999991E-38 : f32
    %337 = vector.broadcast %cst_77 : f32 to vector<1x256xf32>
    %338 = arith.maximumf %336, %337 : vector<1x256xf32>
    %339 = math.rsqrt %338 : vector<1x256xf32>
    %340 = arith.mulf %330, %339 : vector<1x256xf32>
    %c0_78 = arith.constant 0 : index
    %c0_79 = arith.constant 0 : index
    %341 = vector.load %arg11[%c0_78, %c0_79] : memref<1x256xf32, #tpu.memory_space<vmem>>, vector<1x256xf32>
    tpu.vector_store %arg11[%c0_78, %c0_79], %340 {strides = array<i32>} : memref<1x256xf32, #tpu.memory_space<vmem>>, vector<1x256xf32>,
    %342 = arith.mulf %333, %339 : vector<1x256xf32>
    %c0_80 = arith.constant 0 : index
    %c0_81 = arith.constant 0 : index
    %343 = vector.load %arg12[%c0_80, %c0_81] : memref<1x256xf32, #tpu.memory_space<vmem>>, vector<1x256xf32>
    tpu.vector_store %arg12[%c0_80, %c0_81], %342 {strides = array<i32>} : memref<1x256xf32, #tpu.memory_space<vmem>>, vector<1x256xf32>,
    return
  }
  func.func @transform_0(%arg0: i32, %arg1: i32, %arg2: i32) -> (i32, i32, i32) {
    %c0_i32 = arith.constant 0 : i32
    return %arg0, %arg2, %arg1 : i32, i32, i32
  }
  func.func @transform_1(%arg0: i32, %arg1: i32, %arg2: i32) -> (i32, i32, i32) {
    %c0_i32 = arith.constant 0 : i32
    return %arg0, %arg2, %arg1 : i32, i32, i32
  }
  func.func @transform_2(%arg0: i32, %arg1: i32, %arg2: i32) -> (i32, i32, i32) {
    %c0_i32 = arith.constant 0 : i32
    return %arg0, %arg2, %arg1 : i32, i32, i32
  }
  func.func @transform_3(%arg0: i32, %arg1: i32, %arg2: i32) -> (i32, i32, i32) {
    %c0_i32 = arith.constant 0 : i32
    return %arg0, %arg2, %arg1 : i32, i32, i32
  }
  func.func @transform_4(%arg0: i32, %arg1: i32, %arg2: i32) -> (i32, i32, i32) {
    %c0_i32 = arith.constant 0 : i32
    %c0_i32_0 = arith.constant 0 : i32
    return %arg0, %c0_i32, %arg1 : i32, i32, i32
  }
  func.func @transform_5(%arg0: i32, %arg1: i32, %arg2: i32) -> (i32, i32, i32) {
    %c0_i32 = arith.constant 0 : i32
    %c0_i32_0 = arith.constant 0 : i32
    return %arg0, %c0_i32, %arg1 : i32, i32, i32
  }
  func.func @transform_6(%arg0: i32, %arg1: i32, %arg2: i32) -> (i32, i32, i32) {
    %c0_i32 = arith.constant 0 : i32
    return %arg0, %arg2, %arg1 : i32, i32, i32
  }
  func.func @transform_7(%arg0: i32, %arg1: i32, %arg2: i32) -> (i32, i32, i32) {
    %c0_i32 = arith.constant 0 : i32
    return %arg0, %arg2, %arg1 : i32, i32, i32
  }
}

</mosaic_0001>

<llo_original>
// kernel: custom-call.1
$region0: #{custom-call.1}
  %s0 = inlined_call_operand.vmem [shape: c64[2,201,64], index: 0, kind: input, shape index: {}]
  %s1 = inlined_call_operand.vmem [shape: f32[2,201,64], index: 1, kind: output, shape index: {}]
  %s2 = scalar_lea.vmem %s0, 256
  %v3 = vld [vmem:[%s2] sm:$0xff]
  %4 = vst [vmem:[%s1] sm:$0xff] %v3
  %s5 = scalar_lea.vmem %s1, 8
  %s6 = scalar_lea.vmem %s2, 8
  %v7 = vld [vmem:[%s6] sm:$0xff]
  %8 = vst [vmem:[%s5] sm:$0xff] %v7
  %s9 = scalar_lea.vmem %s1, 16
  %s10 = scalar_lea.vmem %s2, 16
  %v11 = vld [vmem:[%s10] sm:$0xff]
  %12 = vst [vmem:[%s9] sm:$0xff] %v11
  %s13 = scalar_lea.vmem %s1, 24
  %s14 = scalar_lea.vmem %s2, 24
  %v15 = vld [vmem:[%s14] sm:$0xff]
  %16 = vst [vmem:[%s13] sm:$0xff] %v15
  %s17 = scalar_lea.vmem %s1, 32
  %s18 = scalar_lea.vmem %s2, 32
  %v19 = vld [vmem:[%s18] sm:$0xff]
  %20 = vst [vmem:[%s17] sm:$0xff] %v19
  %s21 = scalar_lea.vmem %s1, 40
  %s22 = scalar_lea.vmem %s2, 40
  %v23 = vld [vmem:[%s22] sm:$0xff]
  %24 = vst [vmem:[%s21] sm:$0xff] %v23
  %s25 = scalar_lea.vmem %s1, 48
  %s26 = scalar_lea.vmem %s2, 48
  %v27 = vld [vmem:[%s26] sm:$0xff]
  %28 = vst [vmem:[%s25] sm:$0xff] %v27
  %s29 = scalar_lea.vmem %s1, 56
  %s30 = scalar_lea.vmem %s2, 56
  %v31 = vld [vmem:[%s30] sm:$0xff]
  %32 = vst [vmem:[%s29] sm:$0xff] %v31
  %s33 = scalar_lea.vmem %s1, 64
  %s34 = scalar_lea.vmem %s2, 64
  %v35 = vld [vmem:[%s34] sm:$0xff]
  %36 = vst [vmem:[%s33] sm:$0xff] %v35
  %s37 = scalar_lea.vmem %s1, 72
  %s38 = scalar_lea.vmem %s2, 72
  %v39 = vld [vmem:[%s38] sm:$0xff]
  %40 = vst [vmem:[%s37] sm:$0xff] %v39
  %s41 = scalar_lea.vmem %s1, 80
  %s42 = scalar_lea.vmem %s2, 80
  %v43 = vld [vmem:[%s42] sm:$0xff]
  %44 = vst [vmem:[%s41] sm:$0xff] %v43
  %s45 = scalar_lea.vmem %s1, 88
  %s46 = scalar_lea.vmem %s2, 88
  %v47 = vld [vmem:[%s46] sm:$0xff]
  %48 = vst [vmem:[%s45] sm:$0xff] %v47
  %s49 = scalar_lea.vmem %s1, 96
  %s50 = scalar_lea.vmem %s2, 96
  %v51 = vld [vmem:[%s50] sm:$0xff]
  %52 = vst [vmem:[%s49] sm:$0xff] %v51
  %s53 = scalar_lea.vmem %s1, 104
  %s54 = scalar_lea.vmem %s2, 104
  %v55 = vld [vmem:[%s54] sm:$0xff]
  %56 = vst [vmem:[%s53] sm:$0xff] %v55
  %s57 = scalar_lea.vmem %s1, 112
  %s58 = scalar_lea.vmem %s2, 112
  %v59 = vld [vmem:[%s58] sm:$0xff]
  %60 = vst [vmem:[%s57] sm:$0xff] %v59
  %s61 = scalar_lea.vmem %s1, 120
  %s62 = scalar_lea.vmem %s2, 120
  %v63 = vld [vmem:[%s62] sm:$0xff]
  %64 = vst [vmem:[%s61] sm:$0xff] %v63
  %s65 = scalar_lea.vmem %s1, 128
  %s66 = scalar_lea.vmem %s2, 128
  %v67 = vld [vmem:[%s66] sm:$0xff]
  %68 = vst [vmem:[%s65] sm:$0xff] %v67
  %s69 = scalar_lea.vmem %s1, 136
  %s70 = scalar_lea.vmem %s2, 136
  %v71 = vld [vmem:[%s70] sm:$0xff]
  %72 = vst [vmem:[%s69] sm:$0xff] %v71
  %s73 = scalar_lea.vmem %s1, 144
  %s74 = scalar_lea.vmem %s2, 144
  %v75 = vld [vmem:[%s74] sm:$0xff]
  %76 = vst [vmem:[%s73] sm:$0xff] %v75
  %s77 = scalar_lea.vmem %s1, 152
  %s78 = scalar_lea.vmem %s2, 152
  %v79 = vld [vmem:[%s78] sm:$0xff]
  %80 = vst [vmem:[%s77] sm:$0xff] %v79
  %s81 = scalar_lea.vmem %s1, 160
  %s82 = scalar_lea.vmem %s2, 160
  %v83 = vld [vmem:[%s82] sm:$0xff]
  %84 = vst [vmem:[%s81] sm:$0xff] %v83
  %s85 = scalar_lea.vmem %s1, 168
  %s86 = scalar_lea.vmem %s2, 168
  %v87 = vld [vmem:[%s86] sm:$0xff]
  %88 = vst [vmem:[%s85] sm:$0xff] %v87
  %s89 = scalar_lea.vmem %s1, 176
  %s90 = scalar_lea.vmem %s2, 176
  %v91 = vld [vmem:[%s90] sm:$0xff]
  %92 = vst [vmem:[%s89] sm:$0xff] %v91
  %s93 = scalar_lea.vmem %s1, 184
  %s94 = scalar_lea.vmem %s2, 184
  %v95 = vld [vmem:[%s94] sm:$0xff]
  %96 = vst [vmem:[%s93] sm:$0xff] %v95
  %s97 = scalar_lea.vmem %s1, 192
  %s98 = scalar_lea.vmem %s2, 192
  %v99 = vld [vmem:[%s98] sm:$0xff]
  %100 = vst [vmem:[%s97] sm:$0xff] %v99
  %s101 = scalar_lea.vmem %s1, 200
  %s102 = scalar_lea.vmem %s2, 200
  %v103 = vld [vmem:[%s102] sm:$0xff]
  %104 = vst [vmem:[%s101] sm:$0xff] %v103
  %s105 = scalar_lea.vmem %s1, 208
  %s106 = scalar_lea.vmem %s2, 208
  %v107 = vld [vmem:[%s106] sm:$0xff]
  %108 = vst [vmem:[%s105] sm:$0xff] %v107
  %s109 = scalar_lea.vmem %s1, 216
  %s110 = scalar_lea.vmem %s2, 216
  %v111 = vld [vmem:[%s110] sm:$0xff]
  %112 = vst [vmem:[%s109] sm:$0xff] %v111
  %s113 = scalar_lea.vmem %s1, 224
  %s114 = scalar_lea.vmem %s2, 224
  %v115 = vld [vmem:[%s114] sm:$0xff]
  %116 = vst [vmem:[%s113] sm:$0xff] %v115
  %s117 = scalar_lea.vmem %s1, 232
  %s118 = scalar_lea.vmem %s2, 232
  %v119 = vld [vmem:[%s118] sm:$0xff]
  %120 = vst [vmem:[%s117] sm:$0xff] %v119
  %s121 = scalar_lea.vmem %s1, 240
  %s122 = scalar_lea.vmem %s2, 240
  %v123 = vld [vmem:[%s122] sm:$0xff]
  %124 = vst [vmem:[%s121] sm:$0xff] %v123
  %s125 = scalar_lea.vmem %s1, 248
  %s126 = scalar_lea.vmem %s2, 248
  %v127 = vld [vmem:[%s126] sm:$0xff]
  %128 = vst [vmem:[%s125] sm:$0xff] %v127

// kernel: custom-call
$region0: #{custom-call}
  %s0 = inlined_call_operand.vmem [shape: c64[2,201,64], index: 0, kind: input, shape index: {}]
  %s1 = inlined_call_operand.vmem [shape: f32[2,201,64], index: 1, kind: output, shape index: {}]
  %v2 = vld [vmem:[%s0] sm:$0xff]
  %3 = vst [vmem:[%s1] sm:$0xff] %v2
  %s4 = scalar_lea.vmem %s1, 8
  %s5 = scalar_lea.vmem %s0, 8
  %v6 = vld [vmem:[%s5] sm:$0xff]
  %7 = vst [vmem:[%s4] sm:$0xff] %v6
  %s8 = scalar_lea.vmem %s1, 16
  %s9 = scalar_lea.vmem %s0, 16
  %v10 = vld [vmem:[%s9] sm:$0xff]
  %11 = vst [vmem:[%s8] sm:$0xff] %v10
  %s12 = scalar_lea.vmem %s1, 24
  %s13 = scalar_lea.vmem %s0, 24
  %v14 = vld [vmem:[%s13] sm:$0xff]
  %15 = vst [vmem:[%s12] sm:$0xff] %v14
  %s16 = scalar_lea.vmem %s1, 32
  %s17 = scalar_lea.vmem %s0, 32
  %v18 = vld [vmem:[%s17] sm:$0xff]
  %19 = vst [vmem:[%s16] sm:$0xff] %v18
  %s20 = scalar_lea.vmem %s1, 40
  %s21 = scalar_lea.vmem %s0, 40
  %v22 = vld [vmem:[%s21] sm:$0xff]
  %23 = vst [vmem:[%s20] sm:$0xff] %v22
  %s24 = scalar_lea.vmem %s1, 48
  %s25 = scalar_lea.vmem %s0, 48
  %v26 = vld [vmem:[%s25] sm:$0xff]
  %27 = vst [vmem:[%s24] sm:$0xff] %v26
  %s28 = scalar_lea.vmem %s1, 56
  %s29 = scalar_lea.vmem %s0, 56
  %v30 = vld [vmem:[%s29] sm:$0xff]
  %31 = vst [vmem:[%s28] sm:$0xff] %v30
  %s32 = scalar_lea.vmem %s1, 64
  %s33 = scalar_lea.vmem %s0, 64
  %v34 = vld [vmem:[%s33] sm:$0xff]
  %35 = vst [vmem:[%s32] sm:$0xff] %v34
  %s36 = scalar_lea.vmem %s1, 72
  %s37 = scalar_lea.vmem %s0, 72
  %v38 = vld [vmem:[%s37] sm:$0xff]
  %39 = vst [vmem:[%s36] sm:$0xff] %v38
  %s40 = scalar_lea.vmem %s1, 80
  %s41 = scalar_lea.vmem %s0, 80
  %v42 = vld [vmem:[%s41] sm:$0xff]
  %43 = vst [vmem:[%s40] sm:$0xff] %v42
  %s44 = scalar_lea.vmem %s1, 88
  %s45 = scalar_lea.vmem %s0, 88
  %v46 = vld [vmem:[%s45] sm:$0xff]
  %47 = vst [vmem:[%s44] sm:$0xff] %v46
  %s48 = scalar_lea.vmem %s1, 96
  %s49 = scalar_lea.vmem %s0, 96
  %v50 = vld [vmem:[%s49] sm:$0xff]
  %51 = vst [vmem:[%s48] sm:$0xff] %v50
  %s52 = scalar_lea.vmem %s1, 104
  %s53 = scalar_lea.vmem %s0, 104
  %v54 = vld [vmem:[%s53] sm:$0xff]
  %55 = vst [vmem:[%s52] sm:$0xff] %v54
  %s56 = scalar_lea.vmem %s1, 112
  %s57 = scalar_lea.vmem %s0, 112
  %v58 = vld [vmem:[%s57] sm:$0xff]
  %59 = vst [vmem:[%s56] sm:$0xff] %v58
  %s60 = scalar_lea.vmem %s1, 120
  %s61 = scalar_lea.vmem %s0, 120
  %v62 = vld [vmem:[%s61] sm:$0xff]
  %63 = vst [vmem:[%s60] sm:$0xff] %v62
  %s64 = scalar_lea.vmem %s1, 128
  %s65 = scalar_lea.vmem %s0, 128
  %v66 = vld [vmem:[%s65] sm:$0xff]
  %67 = vst [vmem:[%s64] sm:$0xff] %v66
  %s68 = scalar_lea.vmem %s1, 136
  %s69 = scalar_lea.vmem %s0, 136
  %v70 = vld [vmem:[%s69] sm:$0xff]
  %71 = vst [vmem:[%s68] sm:$0xff] %v70
  %s72 = scalar_lea.vmem %s1, 144
  %s73 = scalar_lea.vmem %s0, 144
  %v74 = vld [vmem:[%s73] sm:$0xff]
  %75 = vst [vmem:[%s72] sm:$0xff] %v74
  %s76 = scalar_lea.vmem %s1, 152
  %s77 = scalar_lea.vmem %s0, 152
  %v78 = vld [vmem:[%s77] sm:$0xff]
  %79 = vst [vmem:[%s76] sm:$0xff] %v78
  %s80 = scalar_lea.vmem %s1, 160
  %s81 = scalar_lea.vmem %s0, 160
  %v82 = vld [vmem:[%s81] sm:$0xff]
  %83 = vst [vmem:[%s80] sm:$0xff] %v82
  %s84 = scalar_lea.vmem %s1, 168
  %s85 = scalar_lea.vmem %s0, 168
  %v86 = vld [vmem:[%s85] sm:$0xff]
  %87 = vst [vmem:[%s84] sm:$0xff] %v86
  %s88 = scalar_lea.vmem %s1, 176
  %s89 = scalar_lea.vmem %s0, 176
  %v90 = vld [vmem:[%s89] sm:$0xff]
  %91 = vst [vmem:[%s88] sm:$0xff] %v90
  %s92 = scalar_lea.vmem %s1, 184
  %s93 = scalar_lea.vmem %s0, 184
  %v94 = vld [vmem:[%s93] sm:$0xff]
  %95 = vst [vmem:[%s92] sm:$0xff] %v94
  %s96 = scalar_lea.vmem %s1, 192
  %s97 = scalar_lea.vmem %s0, 192
  %v98 = vld [vmem:[%s97] sm:$0xff]
  %99 = vst [vmem:[%s96] sm:$0xff] %v98
  %s100 = scalar_lea.vmem %s1, 200
  %s101 = scalar_lea.vmem %s0, 200
  %v102 = vld [vmem:[%s101] sm:$0xff]
  %103 = vst [vmem:[%s100] sm:$0xff] %v102
  %s104 = scalar_lea.vmem %s1, 208
  %s105 = scalar_lea.vmem %s0, 208
  %v106 = vld [vmem:[%s105] sm:$0xff]
  %107 = vst [vmem:[%s104] sm:$0xff] %v106
  %s108 = scalar_lea.vmem %s1, 216
  %s109 = scalar_lea.vmem %s0, 216
  %v110 = vld [vmem:[%s109] sm:$0xff]
  %111 = vst [vmem:[%s108] sm:$0xff] %v110
  %s112 = scalar_lea.vmem %s1, 224
  %s113 = scalar_lea.vmem %s0, 224
  %v114 = vld [vmem:[%s113] sm:$0xff]
  %115 = vst [vmem:[%s112] sm:$0xff] %v114
  %s116 = scalar_lea.vmem %s1, 232
  %s117 = scalar_lea.vmem %s0, 232
  %v118 = vld [vmem:[%s117] sm:$0xff]
  %119 = vst [vmem:[%s116] sm:$0xff] %v118
  %s120 = scalar_lea.vmem %s1, 240
  %s121 = scalar_lea.vmem %s0, 240
  %v122 = vld [vmem:[%s121] sm:$0xff]
  %123 = vst [vmem:[%s120] sm:$0xff] %v122
  %s124 = scalar_lea.vmem %s1, 248
  %s125 = scalar_lea.vmem %s0, 248
  %v126 = vld [vmem:[%s125] sm:$0xff]
  %127 = vst [vmem:[%s124] sm:$0xff] %v126

// kernel: custom-call.2
$region0: #{custom-call.2}
  %s0 = inlined_call_operand.vmem [shape: f32[2,201,54], index: 0, kind: input, shape index: {}]
  %s1 = inlined_call_operand.vmem [shape: f32[2,201,54], index: 1, kind: input, shape index: {}]
  %s2 = inlined_call_operand.vmem [shape: c64[2,201,54], index: 2, kind: output, shape index: {}]
  %s3 = scalar_lea.vmem %s2, 224
  %v4 = vld [vmem:[%s0] sm:$0xff]
  %5 = vst [vmem:[%s2] sm:$0xff] %v4
  %s6 = scalar_lea.vmem %s2, 8
  %s7 = scalar_lea.vmem %s0, 8
  %v8 = vld [vmem:[%s7] sm:$0xff]
  %9 = vst [vmem:[%s6] sm:$0xff] %v8
  %s10 = scalar_lea.vmem %s2, 16
  %s11 = scalar_lea.vmem %s0, 16
  %v12 = vld [vmem:[%s11] sm:$0xff]
  %13 = vst [vmem:[%s10] sm:$0xff] %v12
  %s14 = scalar_lea.vmem %s2, 24
  %s15 = scalar_lea.vmem %s0, 24
  %v16 = vld [vmem:[%s15] sm:$0xff]
  %17 = vst [vmem:[%s14] sm:$0xff] %v16
  %s18 = scalar_lea.vmem %s2, 32
  %s19 = scalar_lea.vmem %s0, 32
  %v20 = vld [vmem:[%s19] sm:$0xff]
  %21 = vst [vmem:[%s18] sm:$0xff] %v20
  %s22 = scalar_lea.vmem %s2, 40
  %s23 = scalar_lea.vmem %s0, 40
  %v24 = vld [vmem:[%s23] sm:$0xff]
  %25 = vst [vmem:[%s22] sm:$0xff] %v24
  %s26 = scalar_lea.vmem %s2, 48
  %s27 = scalar_lea.vmem %s0, 48
  %v28 = vld [vmem:[%s27] sm:$0xff]
  %29 = vst [vmem:[%s26] sm:$0xff] %v28
  %s30 = scalar_lea.vmem %s2, 56
  %s31 = scalar_lea.vmem %s0, 56
  %v32 = vld [vmem:[%s31] sm:$0xff]
  %33 = vst [vmem:[%s30] sm:$0xff] %v32
  %s34 = scalar_lea.vmem %s2, 64
  %s35 = scalar_lea.vmem %s0, 64
  %v36 = vld [vmem:[%s35] sm:$0xff]
  %37 = vst [vmem:[%s34] sm:$0xff] %v36
  %s38 = scalar_lea.vmem %s2, 72
  %s39 = scalar_lea.vmem %s0, 72
  %v40 = vld [vmem:[%s39] sm:$0xff]
  %41 = vst [vmem:[%s38] sm:$0xff] %v40
  %s42 = scalar_lea.vmem %s2, 80
  %s43 = scalar_lea.vmem %s0, 80
  %v44 = vld [vmem:[%s43] sm:$0xff]
  %45 = vst [vmem:[%s42] sm:$0xff] %v44
  %s46 = scalar_lea.vmem %s2, 88
  %s47 = scalar_lea.vmem %s0, 88
  %v48 = vld [vmem:[%s47] sm:$0xff]
  %49 = vst [vmem:[%s46] sm:$0xff] %v48
  %s50 = scalar_lea.vmem %s2, 96
  %s51 = scalar_lea.vmem %s0, 96
  %v52 = vld [vmem:[%s51] sm:$0xff]
  %53 = vst [vmem:[%s50] sm:$0xff] %v52
  %s54 = scalar_lea.vmem %s2, 104
  %s55 = scalar_lea.vmem %s0, 104
  %v56 = vld [vmem:[%s55] sm:$0xff]
  %57 = vst [vmem:[%s54] sm:$0xff] %v56
  %s58 = scalar_lea.vmem %s2, 112
  %s59 = scalar_lea.vmem %s0, 112
  %v60 = vld [vmem:[%s59] sm:$0xff]
  %61 = vst [vmem:[%s58] sm:$0xff] %v60
  %s62 = scalar_lea.vmem %s2, 120
  %s63 = scalar_lea.vmem %s0, 120
  %v64 = vld [vmem:[%s63] sm:$0xff]
  %65 = vst [vmem:[%s62] sm:$0xff] %v64
  %s66 = scalar_lea.vmem %s2, 128
  %s67 = scalar_lea.vmem %s0, 128
  %v68 = vld [vmem:[%s67] sm:$0xff]
  %69 = vst [vmem:[%s66] sm:$0xff] %v68
  %s70 = scalar_lea.vmem %s2, 136
  %s71 = scalar_lea.vmem %s0, 136
  %v72 = vld [vmem:[%s71] sm:$0xff]
  %73 = vst [vmem:[%s70] sm:$0xff] %v72
  %s74 = scalar_lea.vmem %s2, 144
  %s75 = scalar_lea.vmem %s0, 144
  %v76 = vld [vmem:[%s75] sm:$0xff]
  %77 = vst [vmem:[%s74] sm:$0xff] %v76
  %s78 = scalar_lea.vmem %s2, 152
  %s79 = scalar_lea.vmem %s0, 152
  %v80 = vld [vmem:[%s79] sm:$0xff]
  %81 = vst [vmem:[%s78] sm:$0xff] %v80
  %s82 = scalar_lea.vmem %s2, 160
  %s83 = scalar_lea.vmem %s0, 160
  %v84 = vld [vmem:[%s83] sm:$0xff]
  %85 = vst [vmem:[%s82] sm:$0xff] %v84
  %s86 = scalar_lea.vmem %s2, 168
  %s87 = scalar_lea.vmem %s0, 168
  %v88 = vld [vmem:[%s87] sm:$0xff]
  %89 = vst [vmem:[%s86] sm:$0xff] %v88
  %s90 = scalar_lea.vmem %s2, 176
  %s91 = scalar_lea.vmem %s0, 176
  %v92 = vld [vmem:[%s91] sm:$0xff]
  %93 = vst [vmem:[%s90] sm:$0xff] %v92
  %s94 = scalar_lea.vmem %s2, 184
  %s95 = scalar_lea.vmem %s0, 184
  %v96 = vld [vmem:[%s95] sm:$0xff]
  %97 = vst [vmem:[%s94] sm:$0xff] %v96
  %s98 = scalar_lea.vmem %s2, 192
  %s99 = scalar_lea.vmem %s0, 192
  %v100 = vld [vmem:[%s99] sm:$0xff]
  %101 = vst [vmem:[%s98] sm:$0xff] %v100
  %s102 = scalar_lea.vmem %s2, 200
  %s103 = scalar_lea.vmem %s0, 200
  %v104 = vld [vmem:[%s103] sm:$0xff]
  %105 = vst [vmem:[%s102] sm:$0xff] %v104
  %s106 = scalar_lea.vmem %s2, 208
  %s107 = scalar_lea.vmem %s0, 208
  %v108 = vld [vmem:[%s107] sm:$0xff]
  %109 = vst [vmem:[%s106] sm:$0xff] %v108
  %s110 = scalar_lea.vmem %s2, 216
  %s111 = scalar_lea.vmem %s0, 216
  %v112 = vld [vmem:[%s111] sm:$0xff]
  %113 = vst [vmem:[%s110] sm:$0xff] %v112
  %v114 = vld [vmem:[%s1] sm:$0xff]
  %115 = vst [vmem:[%s3] sm:$0xff] %v114
  %s116 = scalar_lea.vmem %s3, 8
  %s117 = scalar_lea.vmem %s1, 8
  %v118 = vld [vmem:[%s117] sm:$0xff]
  %119 = vst [vmem:[%s116] sm:$0xff] %v118
  %s120 = scalar_lea.vmem %s3, 16
  %s121 = scalar_lea.vmem %s1, 16
  %v122 = vld [vmem:[%s121] sm:$0xff]
  %123 = vst [vmem:[%s120] sm:$0xff] %v122
  %s124 = scalar_lea.vmem %s3, 24
  %s125 = scalar_lea.vmem %s1, 24
  %v126 = vld [vmem:[%s125] sm:$0xff]
  %127 = vst [vmem:[%s124] sm:$0xff] %v126
  %s128 = scalar_lea.vmem %s3, 32
  %s129 = scalar_lea.vmem %s1, 32
  %v130 = vld [vmem:[%s129] sm:$0xff]
  %131 = vst [vmem:[%s128] sm:$0xff] %v130
  %s132 = scalar_lea.vmem %s3, 40
  %s133 = scalar_lea.vmem %s1, 40
  %v134 = vld [vmem:[%s133] sm:$0xff]
  %135 = vst [vmem:[%s132] sm:$0xff] %v134
  %s136 = scalar_lea.vmem %s3, 48
  %s137 = scalar_lea.vmem %s1, 48
  %v138 = vld [vmem:[%s137] sm:$0xff]
  %139 = vst [vmem:[%s136] sm:$0xff] %v138
  %s140 = scalar_lea.vmem %s3, 56
  %s141 = scalar_lea.vmem %s1, 56
  %v142 = vld [vmem:[%s141] sm:$0xff]
  %143 = vst [vmem:[%s140] sm:$0xff] %v142
  %s144 = scalar_lea.vmem %s3, 64
  %s145 = scalar_lea.vmem %s1, 64
  %v146 = vld [vmem:[%s145] sm:$0xff]
  %147 = vst [vmem:[%s144] sm:$0xff] %v146
  %s148 = scalar_lea.vmem %s3, 72
  %s149 = scalar_lea.vmem %s1, 72
  %v150 = vld [vmem:[%s149] sm:$0xff]
  %151 = vst [vmem:[%s148] sm:$0xff] %v150
  %s152 = scalar_lea.vmem %s3, 80
  %s153 = scalar_lea.vmem %s1, 80
  %v154 = vld [vmem:[%s153] sm:$0xff]
  %155 = vst [vmem:[%s152] sm:$0xff] %v154
  %s156 = scalar_lea.vmem %s3, 88
  %s157 = scalar_lea.vmem %s1, 88
  %v158 = vld [vmem:[%s157] sm:$0xff]
  %159 = vst [vmem:[%s156] sm:$0xff] %v158
  %s160 = scalar_lea.vmem %s3, 96
  %s161 = scalar_lea.vmem %s1, 96
  %v162 = vld [vmem:[%s161] sm:$0xff]
  %163 = vst [vmem:[%s160] sm:$0xff] %v162
  %s164 = scalar_lea.vmem %s3, 104
  %s165 = scalar_lea.vmem %s1, 104
  %v166 = vld [vmem:[%s165] sm:$0xff]
  %167 = vst [vmem:[%s164] sm:$0xff] %v166
  %s168 = scalar_lea.vmem %s3, 112
  %s169 = scalar_lea.vmem %s1, 112
  %v170 = vld [vmem:[%s169] sm:$0xff]
  %171 = vst [vmem:[%s168] sm:$0xff] %v170
  %s172 = scalar_lea.vmem %s3, 120
  %s173 = scalar_lea.vmem %s1, 120
  %v174 = vld [vmem:[%s173] sm:$0xff]
  %175 = vst [vmem:[%s172] sm:$0xff] %v174
  %s176 = scalar_lea.vmem %s3, 128
  %s177 = scalar_lea.vmem %s1, 128
  %v178 = vld [vmem:[%s177] sm:$0xff]
  %179 = vst [vmem:[%s176] sm:$0xff] %v178
  %s180 = scalar_lea.vmem %s3, 136
  %s181 = scalar_lea.vmem %s1, 136
  %v182 = vld [vmem:[%s181] sm:$0xff]
  %183 = vst [vmem:[%s180] sm:$0xff] %v182
  %s184 = scalar_lea.vmem %s3, 144
  %s185 = scalar_lea.vmem %s1, 144
  %v186 = vld [vmem:[%s185] sm:$0xff]
  %187 = vst [vmem:[%s184] sm:$0xff] %v186
  %s188 = scalar_lea.vmem %s3, 152
  %s189 = scalar_lea.vmem %s1, 152
  %v190 = vld [vmem:[%s189] sm:$0xff]
  %191 = vst [vmem:[%s188] sm:$0xff] %v190
  %s192 = scalar_lea.vmem %s3, 160
  %s193 = scalar_lea.vmem %s1, 160
  %v194 = vld [vmem:[%s193] sm:$0xff]
  %195 = vst [vmem:[%s192] sm:$0xff] %v194
  %s196 = scalar_lea.vmem %s3, 168
  %s197 = scalar_lea.vmem %s1, 168
  %v198 = vld [vmem:[%s197] sm:$0xff]
  %199 = vst [vmem:[%s196] sm:$0xff] %v198
  %s200 = scalar_lea.vmem %s3, 176
  %s201 = scalar_lea.vmem %s1, 176
  %v202 = vld [vmem:[%s201] sm:$0xff]
  %203 = vst [vmem:[%s200] sm:$0xff] %v202
  %s204 = scalar_lea.vmem %s3, 184
  %s205 = scalar_lea.vmem %s1, 184
  %v206 = vld [vmem:[%s205] sm:$0xff]
  %207 = vst [vmem:[%s204] sm:$0xff] %v206
  %s208 = scalar_lea.vmem %s3, 192
  %s209 = scalar_lea.vmem %s1, 192
  %v210 = vld [vmem:[%s209] sm:$0xff]
  %211 = vst [vmem:[%s208] sm:$0xff] %v210
  %s212 = scalar_lea.vmem %s3, 200
  %s213 = scalar_lea.vmem %s1, 200
  %v214 = vld [vmem:[%s213] sm:$0xff]
  %215 = vst [vmem:[%s212] sm:$0xff] %v214
  %s216 = scalar_lea.vmem %s3, 208
  %s217 = scalar_lea.vmem %s1, 208
  %v218 = vld [vmem:[%s217] sm:$0xff]
  %219 = vst [vmem:[%s216] sm:$0xff] %v218
  %s220 = scalar_lea.vmem %s3, 216
  %s221 = scalar_lea.vmem %s1, 216
  %v222 = vld [vmem:[%s221] sm:$0xff]
  %223 = vst [vmem:[%s220] sm:$0xff] %v222

// kernel: _phase_vocoder_impl.1
$region0: #{_phase_vocoder_impl.1}
  #allocation0 [shape = 'u32[]', space=smem, size = 0x4, offset = 0x4, fixed_abs, tag = 'smem constant byte address 0x4 - core index']
  #allocation1 [shape = 'u32[72,128]{1,0:T(1,128)}', space=vmem, size = 0x9000, scoped, tag = 'internal scratch']
  #allocation2 [shape = 'f32[1,256]{1,0:T(1,128)}', space=vmem, size = 0x400, scoped, tag = 'scratch operand']
  #allocation3 [shape = 'f32[1,256]{1,0:T(1,128)}', space=vmem, size = 0x400, scoped, tag = 'scratch operand']
  %s0 = inlined_call_operand.vmem [shape: f32[2,56,256], index: 0, kind: input, shape index: {}]
  %s1 = inlined_call_operand.vmem [shape: f32[2,56,256], index: 1, kind: input, shape index: {}]
  %s2 = inlined_call_operand.vmem [shape: f32[2,56,256], index: 2, kind: input, shape index: {}]
  %s3 = inlined_call_operand.vmem [shape: f32[2,56,256], index: 3, kind: input, shape index: {}]
  %s4 = inlined_call_operand.vmem [shape: f32[2,1,256], index: 4, kind: input, shape index: {}]
  %s5 = inlined_call_operand.vmem [shape: f32[2,1,256], index: 5, kind: input, shape index: {}]
  %s6 = inlined_call_operand.vmem [shape: f32[2,56,256], index: 6, kind: output, shape index: {0}]
  %s7 = inlined_call_operand.vmem [shape: f32[2,56,256], index: 7, kind: output, shape index: {1}]
  %8 = xla_tuple %s6, %s7
  %s9 = sld [smem:[#allocation0]]
  $region69: #{_phase_vocoder_impl.1} parent=0
    _
  %s11 = ssub.s32 1, %s9
  %s12 = scalar_select 0, %s11, %s9
  loop: start=0, step=1, limit=4
  $region2: #{_phase_vocoder_impl.1} parent=0 // loop_pre_header
    _
  $region3: #{_phase_vocoder_impl.1} parent=0 // loop_header
    %s14 = sphi 0, %s18
    %p15 = scmp.ge.s32.totalorder %s14, 4
    %s21 = sphi 0, %s40
    %s22 = sphi 0, %s36
    %s23 = sphi 0, %s32
    %s24 = sphi 0, %s21
    %s25 = sphi 0, %s22
    %s26 = sphi 0, %s23
    %s27 = sphi 0, %s24
    %s28 = sphi 0, %s25
    %s29 = sphi 0, %s26
    %s47 = sphi 0, %s49
    %s50 = sphi 0, %s47
    %s51 = sphi 0, %s50
    %s67 = sphi 0, %s51
    %s77 = sphi 0, %s79
    %s80 = sphi 0, %s77
    %s81 = sphi 0, %s80
    %s97 = sphi 0, %s81
    %s107 = sphi 0, %s109
    %s110 = sphi 0, %s107
    %s111 = sphi 0, %s110
    %s127 = sphi 0, %s111
    %s137 = sphi 0, %s139
    %s140 = sphi 0, %s137
    %s141 = sphi 0, %s140
    %s157 = sphi 0, %s141
    %s165 = sphi 0, %s167
    %s168 = sphi 0, %s165
    %s169 = sphi 0, %s168
    %s185 = sphi 0, %s169
    %s193 = sphi 0, %s195
    %s196 = sphi 0, %s193
    %s197 = sphi 0, %s196
    %s213 = sphi 0, %s197
    %s223 = sphi 0, %s225
    %s226 = sphi 0, %s223
    %s227 = sphi 0, %s226
    %s243 = sphi 0, %s227
    %s253 = sphi 0, %s255
    %s256 = sphi 0, %s253
    %s257 = sphi 0, %s256
    %s273 = sphi 0, %s257
  $region4: #{_phase_vocoder_impl.1} parent=0 // loop_header_branch
    %17 = sbr.rel (%p15) target = $region8
  $region5: #{_phase_vocoder_impl.1} parent=0 // loop_body
    %s19 = ssub.s32 %s14, 1
    %s20 = ssub.s32 %s14, 2
    %s30 = sadd.s32 1, %s23
    %p31 = scmp.ge.s32.totalorder %s30, 1
    %s32 = scalar_select %p31, 0, %s30
    %s33 = sadd.s32 1, %s22
    %s34 = scalar_select %p31, %s33, %s22
    %p35 = scmp.ge.s32.totalorder %s34, 1
    %s36 = scalar_select %p35, 0, %s34
    %s37 = sadd.s32 1, %s21
    %s38 = scalar_select %p35, %s37, %s21
    %p39 = scmp.ge.s32.totalorder %s38, 2
    %s40 = scalar_select %p39, 0, %s38
    %s41 = ssub.s32 %s21, %s40
    %s42 = ssub.s32 %s23, %s32
    %s43 = sor.u32 %s41, %s42
    %s44 = ssub.s32 %s22, %s36
    %s45 = sor.u32 %s43, %s44
    %p46 = scmp.eq.s32.totalorder %s45, 0
    %s48 = sadd.s32 %s47, 1
    %s49 = scalar_select %p46, %s47, %s48
    %p52 = pneg %p46
    %p53 = scmp.eq.s32.totalorder %s14, 1
    %p54 = por %p52, %p53
    %p55 = scmp.ne.s32.totalorder %s47, %s50
    %p56 = scmp.eq.s32.totalorder %s14, 0
    %p57 = por %p55, %p56
    %p58 = scmp.ne.s32.totalorder %s47, %s50
    %p59 = scmp.eq.s32.totalorder %s19, 1
    %p60 = por %p58, %p59
    %p61 = scmp.ne.s32.totalorder %s50, %s51
    %p62 = scmp.eq.s32.totalorder %s19, 0
    %p63 = por %p61, %p62
    %p64 = scmp.ne.s32.totalorder %s50, %s51
    %p65 = scmp.eq.s32.totalorder %s20, 1
    %p66 = por %p64, %p65
    %p68 = scmp.ne.s32.totalorder %s51, %s67
    %p69 = scmp.eq.s32.totalorder %s20, 0
    %p70 = por %p68, %p69
    %s71 = ssub.s32 %s21, %s40
    %s72 = ssub.s32 %s23, %s32
    %s73 = sor.u32 %s71, %s72
    %s74 = ssub.s32 %s22, %s36
    %s75 = sor.u32 %s73, %s74
    %p76 = scmp.eq.s32.totalorder %s75, 0
    %s78 = sadd.s32 %s77, 1
    %s79 = scalar_select %p76, %s77, %s78
    %p82 = pneg %p76
    %p83 = scmp.eq.s32.totalorder %s14, 1
    %p84 = por %p82, %p83
    %p85 = scmp.ne.s32.totalorder %s77, %s80
    %p86 = scmp.eq.s32.totalorder %s14, 0
    %p87 = por %p85, %p86
    %p88 = scmp.ne.s32.totalorder %s77, %s80
    %p89 = scmp.eq.s32.totalorder %s19, 1
    %p90 = por %p88, %p89
    %p91 = scmp.ne.s32.totalorder %s80, %s81
    %p92 = scmp.eq.s32.totalorder %s19, 0
    %p93 = por %p91, %p92
    %p94 = scmp.ne.s32.totalorder %s80, %s81
    %p95 = scmp.eq.s32.totalorder %s20, 1
    %p96 = por %p94, %p95
    %p98 = scmp.ne.s32.totalorder %s81, %s97
    %p99 = scmp.eq.s32.totalorder %s20, 0
    %p100 = por %p98, %p99
    %s101 = ssub.s32 %s21, %s40
    %s102 = ssub.s32 %s23, %s32
    %s103 = sor.u32 %s101, %s102
    %s104 = ssub.s32 %s22, %s36
    %s105 = sor.u32 %s103, %s104
    %p106 = scmp.eq.s32.totalorder %s105, 0
    %s108 = sadd.s32 %s107, 1
    %s109 = scalar_select %p106, %s107, %s108
    %p112 = pneg %p106
    %p113 = scmp.eq.s32.totalorder %s14, 1
    %p114 = por %p112, %p113
    %p115 = scmp.ne.s32.totalorder %s107, %s110
    %p116 = scmp.eq.s32.totalorder %s14, 0
    %p117 = por %p115, %p116
    %p118 = scmp.ne.s32.totalorder %s107, %s110
    %p119 = scmp.eq.s32.totalorder %s19, 1
    %p120 = por %p118, %p119
    %p121 = scmp.ne.s32.totalorder %s110, %s111
    %p122 = scmp.eq.s32.totalorder %s19, 0
    %p123 = por %p121, %p122
    %p124 = scmp.ne.s32.totalorder %s110, %s111
    %p125 = scmp.eq.s32.totalorder %s20, 1
    %p126 = por %p124, %p125
    %p128 = scmp.ne.s32.totalorder %s111, %s127
    %p129 = scmp.eq.s32.totalorder %s20, 0
    %p130 = por %p128, %p129
    %s131 = ssub.s32 %s21, %s40
    %s132 = ssub.s32 %s23, %s32
    %s133 = sor.u32 %s131, %s132
    %s134 = ssub.s32 %s22, %s36
    %s135 = sor.u32 %s133, %s134
    %p136 = scmp.eq.s32.totalorder %s135, 0
    %s138 = sadd.s32 %s137, 1
    %s139 = scalar_select %p136, %s137, %s138
    %p142 = pneg %p136
    %p143 = scmp.eq.s32.totalorder %s14, 1
    %p144 = por %p142, %p143
    %p145 = scmp.ne.s32.totalorder %s137, %s140
    %p146 = scmp.eq.s32.totalorder %s14, 0
    %p147 = por %p145, %p146
    %p148 = scmp.ne.s32.totalorder %s137, %s140
    %p149 = scmp.eq.s32.totalorder %s19, 1
    %p150 = por %p148, %p149
    %p151 = scmp.ne.s32.totalorder %s140, %s141
    %p152 = scmp.eq.s32.totalorder %s19, 0
    %p153 = por %p151, %p152
    %p154 = scmp.ne.s32.totalorder %s140, %s141
    %p155 = scmp.eq.s32.totalorder %s20, 1
    %p156 = por %p154, %p155
    %p158 = scmp.ne.s32.totalorder %s141, %s157
    %p159 = scmp.eq.s32.totalorder %s20, 0
    %p160 = por %p158, %p159
    %s161 = ssub.s32 %s21, %s40
    %s162 = ssub.s32 %s22, %s36
    %s163 = sor.u32 %s161, %s162
    %p164 = scmp.eq.s32.totalorder %s163, 0
    %s166 = sadd.s32 %s165, 1
    %s167 = scalar_select %p164, %s165, %s166
    %p170 = pneg %p164
    %p171 = scmp.eq.s32.totalorder %s14, 1
    %p172 = por %p170, %p171
    %p173 = scmp.ne.s32.totalorder %s165, %s168
    %p174 = scmp.eq.s32.totalorder %s14, 0
    %p175 = por %p173, %p174
    %p176 = scmp.ne.s32.totalorder %s165, %s168
    %p177 = scmp.eq.s32.totalorder %s19, 1
    %p178 = por %p176, %p177
    %p179 = scmp.ne.s32.totalorder %s168, %s169
    %p180 = scmp.eq.s32.totalorder %s19, 0
    %p181 = por %p179, %p180
    %p182 = scmp.ne.s32.totalorder %s168, %s169
    %p183 = scmp.eq.s32.totalorder %s20, 1
    %p184 = por %p182, %p183
    %p186 = scmp.ne.s32.totalorder %s169, %s185
    %p187 = scmp.eq.s32.totalorder %s20, 0
    %p188 = por %p186, %p187
    %s189 = ssub.s32 %s21, %s40
    %s190 = ssub.s32 %s22, %s36
    %s191 = sor.u32 %s189, %s190
    %p192 = scmp.eq.s32.totalorder %s191, 0
    %s194 = sadd.s32 %s193, 1
    %s195 = scalar_select %p192, %s193, %s194
    %p198 = pneg %p192
    %p199 = scmp.eq.s32.totalorder %s14, 1
    %p200 = por %p198, %p199
    %p201 = scmp.ne.s32.totalorder %s193, %s196
    %p202 = scmp.eq.s32.totalorder %s14, 0
    %p203 = por %p201, %p202
    %p204 = scmp.ne.s32.totalorder %s193, %s196
    %p205 = scmp.eq.s32.totalorder %s19, 1
    %p206 = por %p204, %p205
    %p207 = scmp.ne.s32.totalorder %s196, %s197
    %p208 = scmp.eq.s32.totalorder %s19, 0
    %p209 = por %p207, %p208
    %p210 = scmp.ne.s32.totalorder %s196, %s197
    %p211 = scmp.eq.s32.totalorder %s20, 1
    %p212 = por %p210, %p211
    %p214 = scmp.ne.s32.totalorder %s197, %s213
    %p215 = scmp.eq.s32.totalorder %s20, 0
    %p216 = por %p214, %p215
    %s217 = ssub.s32 %s21, %s40
    %s218 = ssub.s32 %s23, %s32
    %s219 = sor.u32 %s217, %s218
    %s220 = ssub.s32 %s22, %s36
    %s221 = sor.u32 %s219, %s220
    %p222 = scmp.eq.s32.totalorder %s221, 0
    %s224 = sadd.s32 %s223, 1
    %s225 = scalar_select %p222, %s223, %s224
    %p228 = pneg %p222
    %p229 = scmp.eq.s32.totalorder %s14, 1
    %p230 = por %p228, %p229
    %p231 = scmp.ne.s32.totalorder %s223, %s226
    %p232 = scmp.eq.s32.totalorder %s14, 0
    %p233 = por %p231, %p232
    %p234 = scmp.ne.s32.totalorder %s223, %s226
    %p235 = scmp.eq.s32.totalorder %s19, 1
    %p236 = por %p234, %p235
    %p237 = scmp.ne.s32.totalorder %s226, %s227
    %p238 = scmp.eq.s32.totalorder %s19, 0
    %p239 = por %p237, %p238
    %p240 = scmp.ne.s32.totalorder %s226, %s227
    %p241 = scmp.eq.s32.totalorder %s20, 1
    %p242 = por %p240, %p241
    %p244 = scmp.ne.s32.totalorder %s227, %s243
    %p245 = scmp.eq.s32.totalorder %s20, 0
    %p246 = por %p244, %p245
    %s247 = ssub.s32 %s21, %s40
    %s248 = ssub.s32 %s23, %s32
    %s249 = sor.u32 %s247, %s248
    %s250 = ssub.s32 %s22, %s36
    %s251 = sor.u32 %s249, %s250
    %p252 = scmp.eq.s32.totalorder %s251, 0
    %s254 = sadd.s32 %s253, 1
    %s255 = scalar_select %p252, %s253, %s254
    %p258 = pneg %p252
    %p259 = scmp.eq.s32.totalorder %s14, 1
    %p260 = por %p258, %p259
    %p261 = scmp.ne.s32.totalorder %s253, %s256
    %p262 = scmp.eq.s32.totalorder %s14, 0
    %p263 = por %p261, %p262
    %p264 = scmp.ne.s32.totalorder %s253, %s256
    %p265 = scmp.eq.s32.totalorder %s19, 1
    %p266 = por %p264, %p265
    %p267 = scmp.ne.s32.totalorder %s256, %s257
    %p268 = scmp.eq.s32.totalorder %s19, 0
    %p269 = por %p267, %p268
    %p270 = scmp.ne.s32.totalorder %s256, %s257
    %p271 = scmp.eq.s32.totalorder %s20, 1
    %p272 = por %p270, %p271
    %p274 = scmp.ne.s32.totalorder %s257, %s273
    %p275 = scmp.eq.s32.totalorder %s20, 0
    %p276 = por %p274, %p275
    %p277 = scmp.le.s32.totalorder 1, %s14
    %p278 = scmp.lt.s32.totalorder %s14, 3
    %p279 = pnand %p277, %p278
    %p280 = pneg %p279
    // Predicated region
    $region9: #{_phase_vocoder_impl.1} parent=5 // pred_check
      _
    $region10: #{_phase_vocoder_impl.1} parent=5 // pred_check_branch
      %282 = sbr.rel (%p279) target = $region12
    $region11: #{_phase_vocoder_impl.1} parent=5 // pred_region
      %s283 = ssub.s32 %s14, 1
    $region12: #{_phase_vocoder_impl.1} parent=5 // pred_fallthru
      _
    %p284 = scmp.lt.s32.totalorder %s14, 2
    // Predicated region
    $region13: #{_phase_vocoder_impl.1} parent=5 // pred_check
      %p285 = pneg %p284
    $region14: #{_phase_vocoder_impl.1} parent=5 // pred_check_branch
      %287 = sbr.rel (%p285) target = $region16
    $region15: #{_phase_vocoder_impl.1} parent=5 // pred_region
      // Predicated region
      $region17: #{_phase_vocoder_impl.1} parent=15 // pred_check
        %p288 = pneg %p57
      $region18: #{_phase_vocoder_impl.1} parent=15 // pred_check_branch
        %290 = sbr.rel (%p288) target = $region20
      $region19: #{_phase_vocoder_impl.1} parent=15 // pred_region
        %s291 = smul.u32 7, %s23
        %s292 = smul.u32 2, %s22
        %p293 = scmp.lt.s32.totalorder %s21, 1
        %s294 = scalar_select %p293, %s21, 1
        %p295 = scmp.lt.s32.totalorder %s291, 6
        %s296 = scalar_select %p295, %s291, 6
        %p297 = scmp.lt.s32.totalorder %s292, 1
        %s298 = scalar_select %p297, %s292, 1
        %s299 = smul.addr %s296, 2
        %s300 = sadd.s32 %s298, %s299
        %s301 = smul.addr %s294, 14
        %s302 = sadd.s32 %s300, %s301
        %s303 = smul.addr %s302, 8
        %s304 = scalar_lea.vmem %s0, %s303
        %s305 = smul.u32 7, %s23
        %s306 = smul.u32 2, %s22
      $region20: #{_phase_vocoder_impl.1} parent=15 // pred_fallthru
        _
      // Predicated region
      $region21: #{_phase_vocoder_impl.1} parent=15 // pred_check
        %p307 = pneg %p87
      $region22: #{_phase_vocoder_impl.1} parent=15 // pred_check_branch
        %309 = sbr.rel (%p307) target = $region24
      $region23: #{_phase_vocoder_impl.1} parent=15 // pred_region
        %s310 = smul.u32 7, %s23
        %s311 = smul.u32 2, %s22
        %p312 = scmp.lt.s32.totalorder %s21, 1
        %s313 = scalar_select %p312, %s21, 1
        %p314 = scmp.lt.s32.totalorder %s310, 6
        %s315 = scalar_select %p314, %s310, 6
        %p316 = scmp.lt.s32.totalorder %s311, 1
        %s317 = scalar_select %p316, %s311, 1
        %s318 = smul.addr %s315, 2
        %s319 = sadd.s32 %s317, %s318
        %s320 = smul.addr %s313, 14
        %s321 = sadd.s32 %s319, %s320
        %s322 = smul.addr %s321, 8
        %s323 = scalar_lea.vmem %s1, %s322
        %s324 = smul.u32 7, %s23
        %s325 = smul.u32 2, %s22
      $region24: #{_phase_vocoder_impl.1} parent=15 // pred_fallthru
        _
      // Predicated region
      $region25: #{_phase_vocoder_impl.1} parent=15 // pred_check
        %p326 = pneg %p117
      $region26: #{_phase_vocoder_impl.1} parent=15 // pred_check_branch
        %328 = sbr.rel (%p326) target = $region28
      $region27: #{_phase_vocoder_impl.1} parent=15 // pred_region
        %s329 = smul.u32 7, %s23
        %s330 = smul.u32 2, %s22
        %p331 = scmp.lt.s32.totalorder %s21, 1
        %s332 = scalar_select %p331, %s21, 1
        %p333 = scmp.lt.s32.totalorder %s329, 6
        %s334 = scalar_select %p333, %s329, 6
        %p335 = scmp.lt.s32.totalorder %s330, 1
        %s336 = scalar_select %p335, %s330, 1
        %s337 = smul.addr %s334, 2
        %s338 = sadd.s32 %s336, %s337
        %s339 = smul.addr %s332, 14
        %s340 = sadd.s32 %s338, %s339
        %s341 = smul.addr %s340, 8
        %s342 = scalar_lea.vmem %s2, %s341
        %s343 = smul.u32 7, %s23
        %s344 = smul.u32 2, %s22
      $region28: #{_phase_vocoder_impl.1} parent=15 // pred_fallthru
        _
      // Predicated region
      $region29: #{_phase_vocoder_impl.1} parent=15 // pred_check
        %p345 = pneg %p147
      $region30: #{_phase_vocoder_impl.1} parent=15 // pred_check_branch
        %347 = sbr.rel (%p345) target = $region32
      $region31: #{_phase_vocoder_impl.1} parent=15 // pred_region
        %s348 = smul.u32 7, %s23
        %s349 = smul.u32 2, %s22
        %p350 = scmp.lt.s32.totalorder %s21, 1
        %s351 = scalar_select %p350, %s21, 1
        %p352 = scmp.lt.s32.totalorder %s348, 6
        %s353 = scalar_select %p352, %s348, 6
        %p354 = scmp.lt.s32.totalorder %s349, 1
        %s355 = scalar_select %p354, %s349, 1
        %s356 = smul.addr %s353, 2
        %s357 = sadd.s32 %s355, %s356
        %s358 = smul.addr %s351, 14
        %s359 = sadd.s32 %s357, %s358
        %s360 = smul.addr %s359, 8
        %s361 = scalar_lea.vmem %s3, %s360
        %s362 = smul.u32 7, %s23
        %s363 = smul.u32 2, %s22
      $region32: #{_phase_vocoder_impl.1} parent=15 // pred_fallthru
        _
      // Predicated region
      $region33: #{_phase_vocoder_impl.1} parent=15 // pred_check
        %p364 = pneg %p175
      $region34: #{_phase_vocoder_impl.1} parent=15 // pred_check_branch
        %366 = sbr.rel (%p364) target = $region36
      $region35: #{_phase_vocoder_impl.1} parent=15 // pred_region
        %s367 = smul.u32 2, %s22
        %p368 = scmp.lt.s32.totalorder %s21, 1
        %s369 = scalar_select %p368, %s21, 1
        %p370 = scmp.lt.s32.totalorder %s367, 1
        %s371 = scalar_select %p370, %s367, 1
        %s372 = smul.addr %s369, 2
        %s373 = sadd.s32 %s371, %s372
        %s374 = scalar_lea.vmem %s4, %s373
        %s375 = smul.u32 2, %s22
      $region36: #{_phase_vocoder_impl.1} parent=15 // pred_fallthru
        _
      // Predicated region
      $region37: #{_phase_vocoder_impl.1} parent=15 // pred_check
        %p376 = pneg %p203
      $region38: #{_phase_vocoder_impl.1} parent=15 // pred_check_branch
        %378 = sbr.rel (%p376) target = $region40
      $region39: #{_phase_vocoder_impl.1} parent=15 // pred_region
        %s379 = smul.u32 2, %s22
        %p380 = scmp.lt.s32.totalorder %s21, 1
        %s381 = scalar_select %p380, %s21, 1
        %p382 = scmp.lt.s32.totalorder %s379, 1
        %s383 = scalar_select %p382, %s379, 1
        %s384 = smul.addr %s381, 2
        %s385 = sadd.s32 %s383, %s384
        %s386 = scalar_lea.vmem %s5, %s385
        %s387 = smul.u32 2, %s22
      $region40: #{_phase_vocoder_impl.1} parent=15 // pred_fallthru
        _
    $region16: #{_phase_vocoder_impl.1} parent=5 // pred_fallthru
      _
    %p388 = scmp.le.s32.totalorder 1, %s14
    %p389 = scmp.lt.s32.totalorder %s14, 3
    %p390 = pnand %p388, %p389
    %p391 = pneg %p390
    // Predicated region
    $region41: #{_phase_vocoder_impl.1} parent=5 // pred_check
      _
    $region42: #{_phase_vocoder_impl.1} parent=5 // pred_check_branch
      %393 = sbr.rel (%p390) target = $region44
    $region43: #{_phase_vocoder_impl.1} parent=5 // pred_region
      %s394 = ssub.s32 %s14, 1
      %s395 = smul.u32 7, %s26
      %s396 = smul.u32 2, %s25
      %p397 = scmp.lt.s32.totalorder %s24, 1
      %s398 = scalar_select %p397, %s24, 1
      %p399 = scmp.lt.s32.totalorder %s395, 6
      %s400 = scalar_select %p399, %s395, 6
      %p401 = scmp.lt.s32.totalorder %s396, 1
      %s402 = scalar_select %p401, %s396, 1
      %s403 = smul.addr %s400, 2
      %s404 = sadd.s32 %s402, %s403
      %s405 = smul.addr %s398, 14
      %s406 = sadd.s32 %s404, %s405
      %s407 = smul.addr %s406, 8
      %s408 = scalar_lea.vmem %s0, %s407
      %p409 = pneg %p63
      %p410 = pneg %p60
      %s411 = smul.u32 7, %s26
      %s412 = smul.u32 2, %s25
      %p413 = scmp.lt.s32.totalorder %s24, 1
      %s414 = scalar_select %p413, %s24, 1
      %p415 = scmp.lt.s32.totalorder %s411, 6
      %s416 = scalar_select %p415, %s411, 6
      %p417 = scmp.lt.s32.totalorder %s412, 1
      %s418 = scalar_select %p417, %s412, 1
      %s419 = smul.addr %s416, 2
      %s420 = sadd.s32 %s418, %s419
      %s421 = smul.addr %s414, 14
      %s422 = sadd.s32 %s420, %s421
      %s423 = smul.addr %s422, 8
      %s424 = scalar_lea.vmem %s1, %s423
      %p425 = pneg %p93
      %p426 = pneg %p90
      %s427 = smul.u32 7, %s26
      %s428 = smul.u32 2, %s25
      %p429 = scmp.lt.s32.totalorder %s24, 1
      %s430 = scalar_select %p429, %s24, 1
      %p431 = scmp.lt.s32.totalorder %s427, 6
      %s432 = scalar_select %p431, %s427, 6
      %p433 = scmp.lt.s32.totalorder %s428, 1
      %s434 = scalar_select %p433, %s428, 1
      %s435 = smul.addr %s432, 2
      %s436 = sadd.s32 %s434, %s435
      %s437 = smul.addr %s430, 14
      %s438 = sadd.s32 %s436, %s437
      %s439 = smul.addr %s438, 8
      %s440 = scalar_lea.vmem %s2, %s439
      %p441 = pneg %p123
      %p442 = pneg %p120
      %s443 = smul.u32 7, %s26
      %s444 = smul.u32 2, %s25
      %p445 = scmp.lt.s32.totalorder %s24, 1
      %s446 = scalar_select %p445, %s24, 1
      %p447 = scmp.lt.s32.totalorder %s443, 6
      %s448 = scalar_select %p447, %s443, 6
      %p449 = scmp.lt.s32.totalorder %s444, 1
      %s450 = scalar_select %p449, %s444, 1
      %s451 = smul.addr %s448, 2
      %s452 = sadd.s32 %s450, %s451
      %s453 = smul.addr %s446, 14
      %s454 = sadd.s32 %s452, %s453
      %s455 = smul.addr %s454, 8
      %s456 = scalar_lea.vmem %s3, %s455
      %p457 = pneg %p153
      %p458 = pneg %p150
      %s459 = smul.u32 2, %s25
      %p460 = scmp.lt.s32.totalorder %s24, 1
      %s461 = scalar_select %p460, %s24, 1
      %p462 = scmp.lt.s32.totalorder %s459, 1
      %s463 = scalar_select %p462, %s459, 1
      %s464 = smul.addr %s461, 2
      %s465 = sadd.s32 %s463, %s464
      %s466 = scalar_lea.vmem %s4, %s465
      %p467 = pneg %p181
      %p468 = pneg %p178
      %s469 = smul.u32 2, %s25
      %p470 = scmp.lt.s32.totalorder %s24, 1
      %s471 = scalar_select %p470, %s24, 1
      %p472 = scmp.lt.s32.totalorder %s469, 1
      %s473 = scalar_select %p472, %s469, 1
      %s474 = smul.addr %s471, 2
      %s475 = sadd.s32 %s473, %s474
      %s476 = scalar_lea.vmem %s5, %s475
      %p477 = pneg %p209
      %p478 = pneg %p206
      %p479 = pneg %p239
      %p480 = pneg %p236
      %s481 = smul.u32 7, %s26
      %s482 = smul.u32 2, %s25
      %p483 = scmp.lt.s32.totalorder %s24, 1
      %s484 = scalar_select %p483, %s24, 1
      %p485 = scmp.lt.s32.totalorder %s481, 6
      %s486 = scalar_select %p485, %s481, 6
      %p487 = scmp.lt.s32.totalorder %s482, 1
      %s488 = scalar_select %p487, %s482, 1
      %s489 = smul.addr %s486, 2
      %s490 = sadd.s32 %s488, %s489
      %s491 = smul.addr %s484, 14
      %s492 = sadd.s32 %s490, %s491
      %s493 = smul.addr %s492, 8
      %s494 = scalar_lea.vmem %s6, %s493
      %p495 = pneg %p269
      %p496 = pneg %p266
      %s497 = smul.u32 7, %s26
      %s498 = smul.u32 2, %s25
      %p499 = scmp.lt.s32.totalorder %s24, 1
      %s500 = scalar_select %p499, %s24, 1
      %p501 = scmp.lt.s32.totalorder %s497, 6
      %s502 = scalar_select %p501, %s497, 6
      %p503 = scmp.lt.s32.totalorder %s498, 1
      %s504 = scalar_select %p503, %s498, 1
      %s505 = smul.addr %s502, 2
      %s506 = sadd.s32 %s504, %s505
      %s507 = smul.addr %s500, 14
      %s508 = sadd.s32 %s506, %s507
      %s509 = smul.addr %s508, 8
      %s510 = scalar_lea.vmem %s7, %s509
      %s511 = smul.u32 7, %s26
      %s512 = smul.u32 2, %s25
      %p513 = scmp.lt.s32.totalorder %s24, 1
      %s514 = scalar_select %p513, %s24, 1
      %p515 = scmp.lt.s32.totalorder %s511, 6
      %s516 = scalar_select %p515, %s511, 6
      %p517 = scmp.lt.s32.totalorder %s512, 1
      %s518 = scalar_select %p517, %s512, 1
      %s519 = smul.addr %s516, 2
      %s520 = sadd.s32 %s518, %s519
      %s521 = smul.addr %s514, 14
      %s522 = sadd.s32 %s520, %s521
      %s523 = smul.addr %s522, 8
      %s524 = scalar_lea.vmem %s0, %s523
      %s525 = smul.u32 7, %s26
      %s526 = smul.u32 2, %s25
      %s527 = smul.u32 7, %s26
      %s528 = smul.u32 2, %s25
      %p529 = scmp.lt.s32.totalorder %s24, 1
      %s530 = scalar_select %p529, %s24, 1
      %p531 = scmp.lt.s32.totalorder %s527, 6
      %s532 = scalar_select %p531, %s527, 6
      %p533 = scmp.lt.s32.totalorder %s528, 1
      %s534 = scalar_select %p533, %s528, 1
      %s535 = smul.addr %s532, 2
      %s536 = sadd.s32 %s534, %s535
      %s537 = smul.addr %s530, 14
      %s538 = sadd.s32 %s536, %s537
      %s539 = smul.addr %s538, 8
      %s540 = scalar_lea.vmem %s1, %s539
      %s541 = smul.u32 7, %s26
      %s542 = smul.u32 2, %s25
      %s543 = smul.u32 7, %s26
      %s544 = smul.u32 2, %s25
      %p545 = scmp.lt.s32.totalorder %s24, 1
      %s546 = scalar_select %p545, %s24, 1
      %p547 = scmp.lt.s32.totalorder %s543, 6
      %s548 = scalar_select %p547, %s543, 6
      %p549 = scmp.lt.s32.totalorder %s544, 1
      %s550 = scalar_select %p549, %s544, 1
      %s551 = smul.addr %s548, 2
      %s552 = sadd.s32 %s550, %s551
      %s553 = smul.addr %s546, 14
      %s554 = sadd.s32 %s552, %s553
      %s555 = smul.addr %s554, 8
      %s556 = scalar_lea.vmem %s2, %s555
      %s557 = smul.u32 7, %s26
      %s558 = smul.u32 2, %s25
      %s559 = smul.u32 7, %s26
      %s560 = smul.u32 2, %s25
      %p561 = scmp.lt.s32.totalorder %s24, 1
      %s562 = scalar_select %p561, %s24, 1
      %p563 = scmp.lt.s32.totalorder %s559, 6
      %s564 = scalar_select %p563, %s559, 6
      %p565 = scmp.lt.s32.totalorder %s560, 1
      %s566 = scalar_select %p565, %s560, 1
      %s567 = smul.addr %s564, 2
      %s568 = sadd.s32 %s566, %s567
      %s569 = smul.addr %s562, 14
      %s570 = sadd.s32 %s568, %s569
      %s571 = smul.addr %s570, 8
      %s572 = scalar_lea.vmem %s3, %s571
      %s573 = smul.u32 7, %s26
      %s574 = smul.u32 2, %s25
      %s575 = smul.u32 2, %s25
      %p576 = scmp.lt.s32.totalorder %s24, 1
      %s577 = scalar_select %p576, %s24, 1
      %p578 = scmp.lt.s32.totalorder %s575, 1
      %s579 = scalar_select %p578, %s575, 1
      %s580 = smul.addr %s577, 2
      %s581 = sadd.s32 %s579, %s580
      %s582 = scalar_lea.vmem %s4, %s581
      %s583 = smul.u32 2, %s25
      %s584 = smul.u32 2, %s25
      %p585 = scmp.lt.s32.totalorder %s24, 1
      %s586 = scalar_select %p585, %s24, 1
      %p587 = scmp.lt.s32.totalorder %s584, 1
      %s588 = scalar_select %p587, %s584, 1
      %s589 = smul.addr %s586, 2
      %s590 = sadd.s32 %s588, %s589
      %s591 = scalar_lea.vmem %s5, %s590
      %s592 = smul.u32 2, %s25
      %s593 = smul.u32 7, %s26
      %s594 = smul.u32 2, %s25
      %p595 = scmp.lt.s32.totalorder %s24, 1
      %s596 = scalar_select %p595, %s24, 1
      %p597 = scmp.lt.s32.totalorder %s593, 6
      %s598 = scalar_select %p597, %s593, 6
      %p599 = scmp.lt.s32.totalorder %s594, 1
      %s600 = scalar_select %p599, %s594, 1
      %s601 = smul.addr %s598, 2
      %s602 = sadd.s32 %s600, %s601
      %s603 = smul.addr %s596, 14
      %s604 = sadd.s32 %s602, %s603
      %s605 = smul.addr %s604, 8
      %s606 = scalar_lea.vmem %s6, %s605
      %s607 = smul.u32 7, %s26
      %s608 = smul.u32 2, %s25
      %s609 = smul.u32 7, %s26
      %s610 = smul.u32 2, %s25
      %p611 = scmp.lt.s32.totalorder %s24, 1
      %s612 = scalar_select %p611, %s24, 1
      %p613 = scmp.lt.s32.totalorder %s609, 6
      %s614 = scalar_select %p613, %s609, 6
      %p615 = scmp.lt.s32.totalorder %s610, 1
      %s616 = scalar_select %p615, %s610, 1
      %s617 = smul.addr %s614, 2
      %s618 = sadd.s32 %s616, %s617
      %s619 = smul.addr %s612, 14
      %s620 = sadd.s32 %s618, %s619
      %s621 = smul.addr %s620, 8
      %s622 = scalar_lea.vmem %s7, %s621
      %s623 = smul.u32 7, %s26
      %s624 = smul.u32 2, %s25
      %p625 = scmp.eq.s32.totalorder %s26, 0
      // Predicated region
      $region45: #{_phase_vocoder_impl.1} parent=43 // pred_check
        %p626 = pneg %p625
      $region46: #{_phase_vocoder_impl.1} parent=43 // pred_check_branch
        %628 = sbr.rel (%p626) target = $region48
      $region47: #{_phase_vocoder_impl.1} parent=43 // pred_region
        %v629 = vld [vmem:[%s582] sm:$0x3]
        %v630 = vlaneseq
        %vm631 = vcmp.ge.s32.totalorder %v630, 0
        %vm632 = vcmp.lt.s32.totalorder %v630, 256
        %vm633 = vmand %vm631, %vm632
        %634 = vst.msk [vmem:[#allocation2] sm:$0x3] %vm633, %v629
        %v635 = vld [vmem:[%s591] sm:$0x3]
        %636 = vst.msk [vmem:[#allocation3] sm:$0x3] %vm633, %v635
      $region48: #{_phase_vocoder_impl.1} parent=43 // pred_fallthru
        _
      %v637 = vld [vmem:[%s524] sm:$0xff]
      %v638 = vld [vmem:[%s524 + $0x8] sm:$0xff]
      %v639 = vld [vmem:[%s524 + $0x10] sm:$0xff]
      %v640 = vld [vmem:[%s524 + $0x18] sm:$0xff]
      %v641 = vld [vmem:[%s524 + $0x20] sm:$0xff]
      %v642 = vld [vmem:[%s524 + $0x28] sm:$0xff]
      %v643 = vld [vmem:[%s524 + $0x30] sm:$0xff]
      %v644 = vld [vmem:[%s524 + $0x38] sm:$0xff]
      %v645 = vld [vmem:[%s524 + $0x40] sm:$0xff]
      %v646 = vld [vmem:[%s524 + $0x48] sm:$0xff]
      %v647 = vld [vmem:[%s524 + $0x50] sm:$0xff]
      %v648 = vld [vmem:[%s524 + $0x58] sm:$0xff]
      %v649 = vld [vmem:[%s524 + $0x60] sm:$0xff]
      %v650 = vld [vmem:[%s524 + $0x68] sm:$0xff]
      %v651 = vld [vmem:[%s540] sm:$0xff]
      %v652 = vld [vmem:[%s540 + $0x8] sm:$0xff]
      %v653 = vld [vmem:[%s540 + $0x10] sm:$0xff]
      %v654 = vld [vmem:[%s540 + $0x18] sm:$0xff]
      %v655 = vld [vmem:[%s540 + $0x20] sm:$0xff]
      %v656 = vld [vmem:[%s540 + $0x28] sm:$0xff]
      %v657 = vld [vmem:[%s540 + $0x30] sm:$0xff]
      %v658 = vld [vmem:[%s540 + $0x38] sm:$0xff]
      %v659 = vld [vmem:[%s540 + $0x40] sm:$0xff]
      %v660 = vld [vmem:[%s540 + $0x48] sm:$0xff]
      %v661 = vld [vmem:[%s540 + $0x50] sm:$0xff]
      %v662 = vld [vmem:[%s540 + $0x58] sm:$0xff]
      %v663 = vld [vmem:[%s540 + $0x60] sm:$0xff]
      %v664 = vld [vmem:[%s540 + $0x68] sm:$0xff]
      %v665 = vld [vmem:[%s556] sm:$0xff]
      %v666 = vld [vmem:[%s556 + $0x8] sm:$0xff]
      %v667 = vld [vmem:[%s556 + $0x10] sm:$0xff]
      %v668 = vld [vmem:[%s556 + $0x18] sm:$0xff]
      %v669 = vld [vmem:[%s556 + $0x20] sm:$0xff]
      %v670 = vld [vmem:[%s556 + $0x28] sm:$0xff]
      %v671 = vld [vmem:[%s556 + $0x30] sm:$0xff]
      %v672 = vld [vmem:[%s556 + $0x38] sm:$0xff]
      %v673 = vld [vmem:[%s556 + $0x40] sm:$0xff]
      %v674 = vld [vmem:[%s556 + $0x48] sm:$0xff]
      %v675 = vld [vmem:[%s556 + $0x50] sm:$0xff]
      %v676 = vld [vmem:[%s556 + $0x58] sm:$0xff]
      %v677 = vld [vmem:[%s556 + $0x60] sm:$0xff]
      %v678 = vld [vmem:[%s556 + $0x68] sm:$0xff]
      %v679 = vld [vmem:[%s572] sm:$0xff]
      %v680 = vld [vmem:[%s572 + $0x8] sm:$0xff]
      %v681 = vld [vmem:[%s572 + $0x10] sm:$0xff]
      %v682 = vld [vmem:[%s572 + $0x18] sm:$0xff]
      %v683 = vld [vmem:[%s572 + $0x20] sm:$0xff]
      %v684 = vld [vmem:[%s572 + $0x28] sm:$0xff]
      %v685 = vld [vmem:[%s572 + $0x30] sm:$0xff]
      %v686 = vld [vmem:[%s572 + $0x38] sm:$0xff]
      %v687 = vld [vmem:[%s572 + $0x40] sm:$0xff]
      %v688 = vld [vmem:[%s572 + $0x48] sm:$0xff]
      %v689 = vld [vmem:[%s572 + $0x50] sm:$0xff]
      %v690 = vld [vmem:[%s572 + $0x58] sm:$0xff]
      %v691 = vld [vmem:[%s572 + $0x60] sm:$0xff]
      %v692 = vld [vmem:[%s572 + $0x68] sm:$0xff]
      %v693 = vmul.f32 %v637, %v637
      %v694 = vmul.f32 %v638, %v638
      %v695 = vmul.f32 %v639, %v639
      %v696 = vmul.f32 %v640, %v640
      %v697 = vmul.f32 %v641, %v641
      %v698 = vmul.f32 %v642, %v642
      %v699 = vmul.f32 %v643, %v643
      %v700 = vmul.f32 %v644, %v644
      %v701 = vmul.f32 %v645, %v645
      %v702 = vmul.f32 %v646, %v646
      %v703 = vmul.f32 %v647, %v647
      %v704 = vmul.f32 %v648, %v648
      %v705 = vmul.f32 %v649, %v649
      %v706 = vmul.f32 %v650, %v650
      %v707 = vmul.f32 %v651, %v651
      %v708 = vmul.f32 %v652, %v652
      %v709 = vmul.f32 %v653, %v653
      %v710 = vmul.f32 %v654, %v654
      %v711 = vmul.f32 %v655, %v655
      %v712 = vmul.f32 %v656, %v656
      %v713 = vmul.f32 %v657, %v657
      %v714 = vmul.f32 %v658, %v658
      %v715 = vmul.f32 %v659, %v659
      %v716 = vmul.f32 %v660, %v660
      %v717 = vmul.f32 %v661, %v661
      %v718 = vmul.f32 %v662, %v662
      %v719 = vmul.f32 %v663, %v663
      %v720 = vmul.f32 %v664, %v664
      %v721 = vadd.f32 %v693, %v707
      %v722 = vadd.f32 %v694, %v708
      %v723 = vadd.f32 %v695, %v709
      %v724 = vadd.f32 %v696, %v710
      %v725 = vadd.f32 %v697, %v711
      %v726 = vadd.f32 %v698, %v712
      %v727 = vadd.f32 %v699, %v713
      %v728 = vadd.f32 %v700, %v714
      %v729 = vadd.f32 %v701, %v715
      %v730 = vadd.f32 %v702, %v716
      %v731 = vadd.f32 %v703, %v717
      %v732 = vadd.f32 %v704, %v718
      %v733 = vadd.f32 %v705, %v719
      %v734 = vadd.f32 %v706, %v720
      %v735 = vmul.f32 %v665, %v665
      %v736 = vmul.f32 %v666, %v666
      %v737 = vmul.f32 %v667, %v667
      %v738 = vmul.f32 %v668, %v668
      %v739 = vmul.f32 %v669, %v669
      %v740 = vmul.f32 %v670, %v670
      %v741 = vmul.f32 %v671, %v671
      %v742 = vmul.f32 %v672, %v672
      %v743 = vmul.f32 %v673, %v673
      %v744 = vmul.f32 %v674, %v674
      %v745 = vmul.f32 %v675, %v675
      %v746 = vmul.f32 %v676, %v676
      %v747 = vmul.f32 %v677, %v677
      %v748 = vmul.f32 %v678, %v678
      %v749 = vmul.f32 %v679, %v679
      %v750 = vmul.f32 %v680, %v680
      %v751 = vmul.f32 %v681, %v681
      %v752 = vmul.f32 %v682, %v682
      %v753 = vmul.f32 %v683, %v683
      %v754 = vmul.f32 %v684, %v684
      %v755 = vmul.f32 %v685, %v685
      %v756 = vmul.f32 %v686, %v686
      %v757 = vmul.f32 %v687, %v687
      %v758 = vmul.f32 %v688, %v688
      %v759 = vmul.f32 %v689, %v689
      %v760 = vmul.f32 %v690, %v690
      %v761 = vmul.f32 %v691, %v691
      %v762 = vmul.f32 %v692, %v692
      %v763 = vadd.f32 %v735, %v749
      %v764 = vadd.f32 %v736, %v750
      %v765 = vadd.f32 %v737, %v751
      %v766 = vadd.f32 %v738, %v752
      %v767 = vadd.f32 %v739, %v753
      %v768 = vadd.f32 %v740, %v754
      %v769 = vadd.f32 %v741, %v755
      %v770 = vadd.f32 %v742, %v756
      %v771 = vadd.f32 %v743, %v757
      %v772 = vadd.f32 %v744, %v758
      %v773 = vadd.f32 %v745, %v759
      %v774 = vadd.f32 %v746, %v760
      %v775 = vadd.f32 %v747, %v761
      %v776 = vadd.f32 %v748, %v762
      %v777 = vmax.f32 %v721, 1e-37
      %v778 = vmax.f32 %v722, 1e-37
      %v779 = vmax.f32 %v723, 1e-37
      %v780 = vmax.f32 %v724, 1e-37
      %v781 = vmax.f32 %v725, 1e-37
      %v782 = vmax.f32 %v726, 1e-37
      %v783 = vmax.f32 %v727, 1e-37
      %v784 = vmax.f32 %v728, 1e-37
      %v785 = vmax.f32 %v729, 1e-37
      %v786 = vmax.f32 %v730, 1e-37
      %v787 = vmax.f32 %v731, 1e-37
      %v788 = vmax.f32 %v732, 1e-37
      %v789 = vmax.f32 %v733, 1e-37
      %v790 = vmax.f32 %v734, 1e-37
      %v791 = vrsqrt.pop %v777
      %v792 = vmul.f32 %v791, %v777
      %v793 = vmul.f32 %v792, %v791
      %v794 = vmul.f32 0.5, %v793
      %v795 = vsub.f32 1.5, %v794
      %v796 = vmul.f32 %v791, %v795
      %vm797 = vweird.f32 %v777
      %vm798 = vweird.f32 %v791
      %vm799 = vmor %vm797, %vm798
      %v800 = vsel %vm799, %v791, %v796
      %v801 = vrsqrt.pop %v778
      %v802 = vmul.f32 %v801, %v778
      %v803 = vmul.f32 %v802, %v801
      %v804 = vmul.f32 0.5, %v803
      %v805 = vsub.f32 1.5, %v804
      %v806 = vmul.f32 %v801, %v805
      %vm807 = vweird.f32 %v778
      %vm808 = vweird.f32 %v801
      %vm809 = vmor %vm807, %vm808
      %v810 = vsel %vm809, %v801, %v806
      %v811 = vrsqrt.pop %v779
      %v812 = vmul.f32 %v811, %v779
      %v813 = vmul.f32 %v812, %v811
      %v814 = vmul.f32 0.5, %v813
      %v815 = vsub.f32 1.5, %v814
      %v816 = vmul.f32 %v811, %v815
      %vm817 = vweird.f32 %v779
      %vm818 = vweird.f32 %v811
      %vm819 = vmor %vm817, %vm818
      %v820 = vsel %vm819, %v811, %v816
      %v821 = vrsqrt.pop %v780
      %v822 = vmul.f32 %v821, %v780
      %v823 = vmul.f32 %v822, %v821
      %v824 = vmul.f32 0.5, %v823
      %v825 = vsub.f32 1.5, %v824
      %v826 = vmul.f32 %v821, %v825
      %vm827 = vweird.f32 %v780
      %vm828 = vweird.f32 %v821
      %vm829 = vmor %vm827, %vm828
      %v830 = vsel %vm829, %v821, %v826
      %v831 = vrsqrt.pop %v781
      %v832 = vmul.f32 %v831, %v781
      %v833 = vmul.f32 %v832, %v831
      %v834 = vmul.f32 0.5, %v833
      %v835 = vsub.f32 1.5, %v834
      %v836 = vmul.f32 %v831, %v835
      %vm837 = vweird.f32 %v781
      %vm838 = vweird.f32 %v831
      %vm839 = vmor %vm837, %vm838
      %v840 = vsel %vm839, %v831, %v836
      %v841 = vrsqrt.pop %v782
      %v842 = vmul.f32 %v841, %v782
      %v843 = vmul.f32 %v842, %v841
      %v844 = vmul.f32 0.5, %v843
      %v845 = vsub.f32 1.5, %v844
      %v846 = vmul.f32 %v841, %v845
      %vm847 = vweird.f32 %v782
      %vm848 = vweird.f32 %v841
      %vm849 = vmor %vm847, %vm848
      %v850 = vsel %vm849, %v841, %v846
      %v851 = vrsqrt.pop %v783
      %v852 = vmul.f32 %v851, %v783
      %v853 = vmul.f32 %v852, %v851
      %v854 = vmul.f32 0.5, %v853
      %v855 = vsub.f32 1.5, %v854
      %v856 = vmul.f32 %v851, %v855
      %vm857 = vweird.f32 %v783
      %vm858 = vweird.f32 %v851
      %vm859 = vmor %vm857, %vm858
      %v860 = vsel %vm859, %v851, %v856
      %v861 = vrsqrt.pop %v784
      %v862 = vmul.f32 %v861, %v784
      %v863 = vmul.f32 %v862, %v861
      %v864 = vmul.f32 0.5, %v863
      %v865 = vsub.f32 1.5, %v864
      %v866 = vmul.f32 %v861, %v865
      %vm867 = vweird.f32 %v784
      %vm868 = vweird.f32 %v861
      %vm869 = vmor %vm867, %vm868
      %v870 = vsel %vm869, %v861, %v866
      %v871 = vrsqrt.pop %v785
      %v872 = vmul.f32 %v871, %v785
      %v873 = vmul.f32 %v872, %v871
      %v874 = vmul.f32 0.5, %v873
      %v875 = vsub.f32 1.5, %v874
      %v876 = vmul.f32 %v871, %v875
      %vm877 = vweird.f32 %v785
      %vm878 = vweird.f32 %v871
      %vm879 = vmor %vm877, %vm878
      %v880 = vsel %vm879, %v871, %v876
      %v881 = vrsqrt.pop %v786
      %v882 = vmul.f32 %v881, %v786
      %v883 = vmul.f32 %v882, %v881
      %v884 = vmul.f32 0.5, %v883
      %v885 = vsub.f32 1.5, %v884
      %v886 = vmul.f32 %v881, %v885
      %vm887 = vweird.f32 %v786
      %vm888 = vweird.f32 %v881
      %vm889 = vmor %vm887, %vm888
      %v890 = vsel %vm889, %v881, %v886
      %v891 = vrsqrt.pop %v787
      %v892 = vmul.f32 %v891, %v787
      %v893 = vmul.f32 %v892, %v891
      %v894 = vmul.f32 0.5, %v893
      %v895 = vsub.f32 1.5, %v894
      %v896 = vmul.f32 %v891, %v895
      %vm897 = vweird.f32 %v787
      %vm898 = vweird.f32 %v891
      %vm899 = vmor %vm897, %vm898
      %v900 = vsel %vm899, %v891, %v896
      %v901 = vrsqrt.pop %v788
      %v902 = vmul.f32 %v901, %v788
      %v903 = vmul.f32 %v902, %v901
      %v904 = vmul.f32 0.5, %v903
      %v905 = vsub.f32 1.5, %v904
      %v906 = vmul.f32 %v901, %v905
      %vm907 = vweird.f32 %v788
      %vm908 = vweird.f32 %v901
      %vm909 = vmor %vm907, %vm908
      %v910 = vsel %vm909, %v901, %v906
      %v911 = vrsqrt.pop %v789
      %v912 = vmul.f32 %v911, %v789
      %v913 = vmul.f32 %v912, %v911
      %v914 = vmul.f32 0.5, %v913
      %v915 = vsub.f32 1.5, %v914
      %v916 = vmul.f32 %v911, %v915
      %vm917 = vweird.f32 %v789
      %vm918 = vweird.f32 %v911
      %vm919 = vmor %vm917, %vm918
      %v920 = vsel %vm919, %v911, %v916
      %v921 = vrsqrt.pop %v790
      %v922 = vmul.f32 %v921, %v790
      %v923 = vmul.f32 %v922, %v921
      %v924 = vmul.f32 0.5, %v923
      %v925 = vsub.f32 1.5, %v924
      %v926 = vmul.f32 %v921, %v925
      %vm927 = vweird.f32 %v790
      %vm928 = vweird.f32 %v921
      %vm929 = vmor %vm927, %vm928
      %v930 = vsel %vm929, %v921, %v926
      %v931 = vmax.f32 %v763, 1e-37
      %v932 = vmax.f32 %v764, 1e-37
      %v933 = vmax.f32 %v765, 1e-37
      %v934 = vmax.f32 %v766, 1e-37
      %v935 = vmax.f32 %v767, 1e-37
      %v936 = vmax.f32 %v768, 1e-37
      %v937 = vmax.f32 %v769, 1e-37
      %v938 = vmax.f32 %v770, 1e-37
      %v939 = vmax.f32 %v771, 1e-37
      %v940 = vmax.f32 %v772, 1e-37
      %v941 = vmax.f32 %v773, 1e-37
      %v942 = vmax.f32 %v774, 1e-37
      %v943 = vmax.f32 %v775, 1e-37
      %v944 = vmax.f32 %v776, 1e-37
      %v945 = vrsqrt.pop %v931
      %v946 = vmul.f32 %v945, %v931
      %v947 = vmul.f32 %v946, %v945
      %v948 = vmul.f32 0.5, %v947
      %v949 = vsub.f32 1.5, %v948
      %v950 = vmul.f32 %v945, %v949
      %vm951 = vweird.f32 %v931
      %vm952 = vweird.f32 %v945
      %vm953 = vmor %vm951, %vm952
      %v954 = vsel %vm953, %v945, %v950
      %v955 = vrsqrt.pop %v932
      %v956 = vmul.f32 %v955, %v932
      %v957 = vmul.f32 %v956, %v955
      %v958 = vmul.f32 0.5, %v957
      %v959 = vsub.f32 1.5, %v958
      %v960 = vmul.f32 %v955, %v959
      %vm961 = vweird.f32 %v932
      %vm962 = vweird.f32 %v955
      %vm963 = vmor %vm961, %vm962
      %v964 = vsel %vm963, %v955, %v960
      %v965 = vrsqrt.pop %v933
      %v966 = vmul.f32 %v965, %v933
      %v967 = vmul.f32 %v966, %v965
      %v968 = vmul.f32 0.5, %v967
      %v969 = vsub.f32 1.5, %v968
      %v970 = vmul.f32 %v965, %v969
      %vm971 = vweird.f32 %v933
      %vm972 = vweird.f32 %v965
      %vm973 = vmor %vm971, %vm972
      %v974 = vsel %vm973, %v965, %v970
      %v975 = vrsqrt.pop %v934
      %v976 = vmul.f32 %v975, %v934
      %v977 = vmul.f32 %v976, %v975
      %v978 = vmul.f32 0.5, %v977
      %v979 = vsub.f32 1.5, %v978
      %v980 = vmul.f32 %v975, %v979
      %vm981 = vweird.f32 %v934
      %vm982 = vweird.f32 %v975
      %vm983 = vmor %vm981, %vm982
      %v984 = vsel %vm983, %v975, %v980
      %v985 = vrsqrt.pop %v935
      %v986 = vmul.f32 %v985, %v935
      %v987 = vmul.f32 %v986, %v985
      %v988 = vmul.f32 0.5, %v987
      %v989 = vsub.f32 1.5, %v988
      %v990 = vmul.f32 %v985, %v989
      %vm991 = vweird.f32 %v935
      %vm992 = vweird.f32 %v985
      %vm993 = vmor %vm991, %vm992
      %v994 = vsel %vm993, %v985, %v990
      %v995 = vrsqrt.pop %v936
      %v996 = vmul.f32 %v995, %v936
      %v997 = vmul.f32 %v996, %v995
      %v998 = vmul.f32 0.5, %v997
      %v999 = vsub.f32 1.5, %v998
      %v1000 = vmul.f32 %v995, %v999
      %vm1001 = vweird.f32 %v936
      %vm1002 = vweird.f32 %v995
      %vm1003 = vmor %vm1001, %vm1002
      %v1004 = vsel %vm1003, %v995, %v1000
      %v1005 = vrsqrt.pop %v937
      %v1006 = vmul.f32 %v1005, %v937
      %v1007 = vmul.f32 %v1006, %v1005
      %v1008 = vmul.f32 0.5, %v1007
      %v1009 = vsub.f32 1.5, %v1008
      %v1010 = vmul.f32 %v1005, %v1009
      %vm1011 = vweird.f32 %v937
      %vm1012 = vweird.f32 %v1005
      %vm1013 = vmor %vm1011, %vm1012
      %v1014 = vsel %vm1013, %v1005, %v1010
      %v1015 = vrsqrt.pop %v938
      %v1016 = vmul.f32 %v1015, %v938
      %v1017 = vmul.f32 %v1016, %v1015
      %v1018 = vmul.f32 0.5, %v1017
      %v1019 = vsub.f32 1.5, %v1018
      %v1020 = vmul.f32 %v1015, %v1019
      %vm1021 = vweird.f32 %v938
      %vm1022 = vweird.f32 %v1015
      %vm1023 = vmor %vm1021, %vm1022
      %v1024 = vsel %vm1023, %v1015, %v1020
      %v1025 = vrsqrt.pop %v939
      %v1026 = vmul.f32 %v1025, %v939
      %v1027 = vmul.f32 %v1026, %v1025
      %v1028 = vmul.f32 0.5, %v1027
      %v1029 = vsub.f32 1.5, %v1028
      %v1030 = vmul.f32 %v1025, %v1029
      %vm1031 = vweird.f32 %v939
      %vm1032 = vweird.f32 %v1025
      %vm1033 = vmor %vm1031, %vm1032
      %v1034 = vsel %vm1033, %v1025, %v1030
      %v1035 = vrsqrt.pop %v940
      %v1036 = vmul.f32 %v1035, %v940
      %v1037 = vmul.f32 %v1036, %v1035
      %v1038 = vmul.f32 0.5, %v1037
      %v1039 = vsub.f32 1.5, %v1038
      %v1040 = vmul.f32 %v1035, %v1039
      %vm1041 = vweird.f32 %v940
      %vm1042 = vweird.f32 %v1035
      %vm1043 = vmor %vm1041, %vm1042
      %v1044 = vsel %vm1043, %v1035, %v1040
      %v1045 = vrsqrt.pop %v941
      %v1046 = vmul.f32 %v1045, %v941
      %v1047 = vmul.f32 %v1046, %v1045
      %v1048 = vmul.f32 0.5, %v1047
      %v1049 = vsub.f32 1.5, %v1048
      %v1050 = vmul.f32 %v1045, %v1049
      %vm1051 = vweird.f32 %v941
      %vm1052 = vweird.f32 %v1045
      %vm1053 = vmor %vm1051, %vm1052
      %v1054 = vsel %vm1053, %v1045, %v1050
      %v1055 = vrsqrt.pop %v942
      %v1056 = vmul.f32 %v1055, %v942
      %v1057 = vmul.f32 %v1056, %v1055
      %v1058 = vmul.f32 0.5, %v1057
      %v1059 = vsub.f32 1.5, %v1058
      %v1060 = vmul.f32 %v1055, %v1059
      %vm1061 = vweird.f32 %v942
      %vm1062 = vweird.f32 %v1055
      %vm1063 = vmor %vm1061, %vm1062
      %v1064 = vsel %vm1063, %v1055, %v1060
      %v1065 = vrsqrt.pop %v943
      %v1066 = vmul.f32 %v1065, %v943
      %v1067 = vmul.f32 %v1066, %v1065
      %v1068 = vmul.f32 0.5, %v1067
      %v1069 = vsub.f32 1.5, %v1068
      %v1070 = vmul.f32 %v1065, %v1069
      %vm1071 = vweird.f32 %v943
      %vm1072 = vweird.f32 %v1065
      %vm1073 = vmor %vm1071, %vm1072
      %v1074 = vsel %vm1073, %v1065, %v1070
      %v1075 = vrsqrt.pop %v944
      %v1076 = vmul.f32 %v1075, %v944
      %v1077 = vmul.f32 %v1076, %v1075
      %v1078 = vmul.f32 0.5, %v1077
      %v1079 = vsub.f32 1.5, %v1078
      %v1080 = vmul.f32 %v1075, %v1079
      %vm1081 = vweird.f32 %v944
      %vm1082 = vweird.f32 %v1075
      %vm1083 = vmor %vm1081, %vm1082
      %v1084 = vsel %vm1083, %v1075, %v1080
      %vm1085 = vcmp.ge.f32.partialorder %v721, 1e-37
      %vm1086 = vcmp.ge.f32.partialorder %v722, 1e-37
      %vm1087 = vcmp.ge.f32.partialorder %v723, 1e-37
      %vm1088 = vcmp.ge.f32.partialorder %v724, 1e-37
      %vm1089 = vcmp.ge.f32.partialorder %v725, 1e-37
      %vm1090 = vcmp.ge.f32.partialorder %v726, 1e-37
      %vm1091 = vcmp.ge.f32.partialorder %v727, 1e-37
      %vm1092 = vcmp.ge.f32.partialorder %v728, 1e-37
      %vm1093 = vcmp.ge.f32.partialorder %v729, 1e-37
      %vm1094 = vcmp.ge.f32.partialorder %v730, 1e-37
      %vm1095 = vcmp.ge.f32.partialorder %v731, 1e-37
      %vm1096 = vcmp.ge.f32.partialorder %v732, 1e-37
      %vm1097 = vcmp.ge.f32.partialorder %v733, 1e-37
      %vm1098 = vcmp.ge.f32.partialorder %v734, 1e-37
      %vm1099 = vcmp.ge.f32.partialorder %v763, 1e-37
      %vm1100 = vcmp.ge.f32.partialorder %v764, 1e-37
      %vm1101 = vcmp.ge.f32.partialorder %v765, 1e-37
      %vm1102 = vcmp.ge.f32.partialorder %v766, 1e-37
      %vm1103 = vcmp.ge.f32.partialorder %v767, 1e-37
      %vm1104 = vcmp.ge.f32.partialorder %v768, 1e-37
      %vm1105 = vcmp.ge.f32.partialorder %v769, 1e-37
      %vm1106 = vcmp.ge.f32.partialorder %v770, 1e-37
      %vm1107 = vcmp.ge.f32.partialorder %v771, 1e-37
      %vm1108 = vcmp.ge.f32.partialorder %v772, 1e-37
      %vm1109 = vcmp.ge.f32.partialorder %v773, 1e-37
      %vm1110 = vcmp.ge.f32.partialorder %v774, 1e-37
      %vm1111 = vcmp.ge.f32.partialorder %v775, 1e-37
      %vm1112 = vcmp.ge.f32.partialorder %v776, 1e-37
      %v1113 = vmul.f32 %v637, %v800
      %v1114 = vmul.f32 %v638, %v810
      %v1115 = vmul.f32 %v639, %v820
      %v1116 = vmul.f32 %v640, %v830
      %v1117 = vmul.f32 %v641, %v840
      %v1118 = vmul.f32 %v642, %v850
      %v1119 = vmul.f32 %v643, %v860
      %v1120 = vmul.f32 %v644, %v870
      %v1121 = vmul.f32 %v645, %v880
      %v1122 = vmul.f32 %v646, %v890
      %v1123 = vmul.f32 %v647, %v900
      %v1124 = vmul.f32 %v648, %v910
      %v1125 = vmul.f32 %v649, %v920
      %v1126 = vmul.f32 %v650, %v930
      %v1127 = vsel %vm1085, %v1113, 1.0
      %v1128 = vsel %vm1086, %v1114, 1.0
      %v1129 = vsel %vm1087, %v1115, 1.0
      %v1130 = vsel %vm1088, %v1116, 1.0
      %v1131 = vsel %vm1089, %v1117, 1.0
      %v1132 = vsel %vm1090, %v1118, 1.0
      %v1133 = vsel %vm1091, %v1119, 1.0
      %v1134 = vsel %vm1092, %v1120, 1.0
      %v1135 = vsel %vm1093, %v1121, 1.0
      %v1136 = vsel %vm1094, %v1122, 1.0
      %v1137 = vsel %vm1095, %v1123, 1.0
      %v1138 = vsel %vm1096, %v1124, 1.0
      %v1139 = vsel %vm1097, %v1125, 1.0
      %v1140 = vsel %vm1098, %v1126, 1.0
      %v1141 = vmul.f32 %v651, %v800
      %v1142 = vmul.f32 %v652, %v810
      %v1143 = vmul.f32 %v653, %v820
      %v1144 = vmul.f32 %v654, %v830
      %v1145 = vmul.f32 %v655, %v840
      %v1146 = vmul.f32 %v656, %v850
      %v1147 = vmul.f32 %v657, %v860
      %v1148 = vmul.f32 %v658, %v870
      %v1149 = vmul.f32 %v659, %v880
      %v1150 = vmul.f32 %v660, %v890
      %v1151 = vmul.f32 %v661, %v900
      %v1152 = vmul.f32 %v662, %v910
      %v1153 = vmul.f32 %v663, %v920
      %v1154 = vmul.f32 %v664, %v930
      %v1155 = vsel %vm1085, %v1141, 0.0
      %v1156 = vsel %vm1086, %v1142, 0.0
      %v1157 = vsel %vm1087, %v1143, 0.0
      %v1158 = vsel %vm1088, %v1144, 0.0
      %v1159 = vsel %vm1089, %v1145, 0.0
      %v1160 = vsel %vm1090, %v1146, 0.0
      %v1161 = vsel %vm1091, %v1147, 0.0
      %v1162 = vsel %vm1092, %v1148, 0.0
      %v1163 = vsel %vm1093, %v1149, 0.0
      %v1164 = vsel %vm1094, %v1150, 0.0
      %v1165 = vsel %vm1095, %v1151, 0.0
      %v1166 = vsel %vm1096, %v1152, 0.0
      %v1167 = vsel %vm1097, %v1153, 0.0
      %v1168 = vsel %vm1098, %v1154, 0.0
      %v1169 = vmul.f32 %v665, %v954
      %v1170 = vmul.f32 %v666, %v964
      %v1171 = vmul.f32 %v667, %v974
      %v1172 = vmul.f32 %v668, %v984
      %v1173 = vmul.f32 %v669, %v994
      %v1174 = vmul.f32 %v670, %v1004
      %v1175 = vmul.f32 %v671, %v1014
      %v1176 = vmul.f32 %v672, %v1024
      %v1177 = vmul.f32 %v673, %v1034
      %v1178 = vmul.f32 %v674, %v1044
      %v1179 = vmul.f32 %v675, %v1054
      %v1180 = vmul.f32 %v676, %v1064
      %v1181 = vmul.f32 %v677, %v1074
      %v1182 = vmul.f32 %v678, %v1084
      %v1183 = vsel %vm1099, %v1169, 1.0
      %v1184 = vsel %vm1100, %v1170, 1.0
      %v1185 = vsel %vm1101, %v1171, 1.0
      %v1186 = vsel %vm1102, %v1172, 1.0
      %v1187 = vsel %vm1103, %v1173, 1.0
      %v1188 = vsel %vm1104, %v1174, 1.0
      %v1189 = vsel %vm1105, %v1175, 1.0
      %v1190 = vsel %vm1106, %v1176, 1.0
      %v1191 = vsel %vm1107, %v1177, 1.0
      %v1192 = vsel %vm1108, %v1178, 1.0
      %v1193 = vsel %vm1109, %v1179, 1.0
      %v1194 = vsel %vm1110, %v1180, 1.0
      %v1195 = vsel %vm1111, %v1181, 1.0
      %v1196 = vsel %vm1112, %v1182, 1.0
      %v1197 = vmul.f32 %v679, %v954
      %v1198 = vmul.f32 %v680, %v964
      %v1199 = vmul.f32 %v681, %v974
      %v1200 = vmul.f32 %v682, %v984
      %v1201 = vmul.f32 %v683, %v994
      %v1202 = vmul.f32 %v684, %v1004
      %v1203 = vmul.f32 %v685, %v1014
      %v1204 = vmul.f32 %v686, %v1024
      %v1205 = vmul.f32 %v687, %v1034
      %v1206 = vmul.f32 %v688, %v1044
      %v1207 = vmul.f32 %v689, %v1054
      %v1208 = vmul.f32 %v690, %v1064
      %v1209 = vmul.f32 %v691, %v1074
      %v1210 = vmul.f32 %v692, %v1084
      %v1211 = vsel %vm1099, %v1197, 0.0
      %v1212 = vsel %vm1100, %v1198, 0.0
      %v1213 = vsel %vm1101, %v1199, 0.0
      %v1214 = vsel %vm1102, %v1200, 0.0
      %v1215 = vsel %vm1103, %v1201, 0.0
      %v1216 = vsel %vm1104, %v1202, 0.0
      %v1217 = vsel %vm1105, %v1203, 0.0
      %v1218 = vsel %vm1106, %v1204, 0.0
      %v1219 = vsel %vm1107, %v1205, 0.0
      %v1220 = vsel %vm1108, %v1206, 0.0
      %v1221 = vsel %vm1109, %v1207, 0.0
      %v1222 = vsel %vm1110, %v1208, 0.0
      %v1223 = vsel %vm1111, %v1209, 0.0
      %v1224 = vsel %vm1112, %v1210, 0.0
      %v1225 = vmul.f32 %v1183, %v1127
      %v1226 = vmul.f32 %v1184, %v1128
      %v1227 = vmul.f32 %v1185, %v1129
      %v1228 = vmul.f32 %v1186, %v1130
      %v1229 = vmul.f32 %v1187, %v1131
      %v1230 = vmul.f32 %v1188, %v1132
      %v1231 = vmul.f32 %v1189, %v1133
      %v1232 = vmul.f32 %v1190, %v1134
      %v1233 = vmul.f32 %v1191, %v1135
      %v1234 = vmul.f32 %v1192, %v1136
      %v1235 = vmul.f32 %v1193, %v1137
      %v1236 = vmul.f32 %v1194, %v1138
      %v1237 = vmul.f32 %v1195, %v1139
      %v1238 = vmul.f32 %v1196, %v1140
      %v1239 = vmul.f32 %v1211, %v1155
      %v1240 = vmul.f32 %v1212, %v1156
      %v1241 = vmul.f32 %v1213, %v1157
      %v1242 = vmul.f32 %v1214, %v1158
      %v1243 = vmul.f32 %v1215, %v1159
      %v1244 = vmul.f32 %v1216, %v1160
      %v1245 = vmul.f32 %v1217, %v1161
      %v1246 = vmul.f32 %v1218, %v1162
      %v1247 = vmul.f32 %v1219, %v1163
      %v1248 = vmul.f32 %v1220, %v1164
      %v1249 = vmul.f32 %v1221, %v1165
      %v1250 = vmul.f32 %v1222, %v1166
      %v1251 = vmul.f32 %v1223, %v1167
      %v1252 = vmul.f32 %v1224, %v1168
      %v1253 = vadd.f32 %v1225, %v1239
      %v1254 = vadd.f32 %v1226, %v1240
      %v1255 = vadd.f32 %v1227, %v1241
      %v1256 = vadd.f32 %v1228, %v1242
      %v1257 = vadd.f32 %v1229, %v1243
      %v1258 = vadd.f32 %v1230, %v1244
      %v1259 = vadd.f32 %v1231, %v1245
      %v1260 = vadd.f32 %v1232, %v1246
      %v1261 = vadd.f32 %v1233, %v1247
      %v1262 = vadd.f32 %v1234, %v1248
      %v1263 = vadd.f32 %v1235, %v1249
      %v1264 = vadd.f32 %v1236, %v1250
      %v1265 = vadd.f32 %v1237, %v1251
      %v1266 = vadd.f32 %v1238, %v1252
      %v1267 = vmul.f32 %v1211, %v1127
      %v1268 = vmul.f32 %v1212, %v1128
      %v1269 = vmul.f32 %v1213, %v1129
      %v1270 = vmul.f32 %v1214, %v1130
      %v1271 = vmul.f32 %v1215, %v1131
      %v1272 = vmul.f32 %v1216, %v1132
      %v1273 = vmul.f32 %v1217, %v1133
      %v1274 = vmul.f32 %v1218, %v1134
      %v1275 = vmul.f32 %v1219, %v1135
      %v1276 = vmul.f32 %v1220, %v1136
      %v1277 = vmul.f32 %v1221, %v1137
      %v1278 = vmul.f32 %v1222, %v1138
      %v1279 = vmul.f32 %v1223, %v1139
      %v1280 = vmul.f32 %v1224, %v1140
      %v1281 = vmul.f32 %v1183, %v1155
      %v1282 = vmul.f32 %v1184, %v1156
      %v1283 = vmul.f32 %v1185, %v1157
      %v1284 = vmul.f32 %v1186, %v1158
      %v1285 = vmul.f32 %v1187, %v1159
      %v1286 = vmul.f32 %v1188, %v1160
      %v1287 = vmul.f32 %v1189, %v1161
      %v1288 = vmul.f32 %v1190, %v1162
      %v1289 = vmul.f32 %v1191, %v1163
      %v1290 = vmul.f32 %v1192, %v1164
      %v1291 = vmul.f32 %v1193, %v1165
      %v1292 = vmul.f32 %v1194, %v1166
      %v1293 = vmul.f32 %v1195, %v1167
      %v1294 = vmul.f32 %v1196, %v1168
      %v1295 = vsub.f32 %v1267, %v1281
      %v1296 = vsub.f32 %v1268, %v1282
      %v1297 = vsub.f32 %v1269, %v1283
      %v1298 = vsub.f32 %v1270, %v1284
      %v1299 = vsub.f32 %v1271, %v1285
      %v1300 = vsub.f32 %v1272, %v1286
      %v1301 = vsub.f32 %v1273, %v1287
      %v1302 = vsub.f32 %v1274, %v1288
      %v1303 = vsub.f32 %v1275, %v1289
      %v1304 = vsub.f32 %v1276, %v1290
      %v1305 = vsub.f32 %v1277, %v1291
      %v1306 = vsub.f32 %v1278, %v1292
      %v1307 = vsub.f32 %v1279, %v1293
      %v1308 = vsub.f32 %v1280, %v1294
      %v1309 = vlaneseq
      %v1310 = vshrl.u32 %v1309, 7
      %v1311 = vadd.s32 %v1310, 8
      %v1312 = vadd.s32 %v1310, 16
      %v1313 = vadd.s32 %v1310, 24
      %v1314 = vadd.s32 %v1310, 32
      %v1315 = vadd.s32 %v1310, 40
      %v1316 = vadd.s32 %v1310, 48
      %s1317 = smul.u32 %s26, 56
      %v1318 = vstv %s1317
      %v1319 = vadd.s32 %v1318, %v1310
      %v1320 = vadd.s32 %v1318, %v1311
      %v1321 = vadd.s32 %v1318, %v1312
      %v1322 = vadd.s32 %v1318, %v1313
      %v1323 = vadd.s32 %v1318, %v1314
      %v1324 = vadd.s32 %v1318, %v1315
      %v1325 = vadd.s32 %v1318, %v1316
      %v1326 = vcvt.s32.f32 %v1319
      %v1327 = vcvt.s32.f32 %v1320
      %v1328 = vcvt.s32.f32 %v1321
      %v1329 = vcvt.s32.f32 %v1322
      %v1330 = vcvt.s32.f32 %v1323
      %v1331 = vcvt.s32.f32 %v1324
      %v1332 = vcvt.s32.f32 %v1325
      %v1333 = vmul.f32 %v1326, 1.2
      %v1334 = vmul.f32 %v1327, 1.2
      %v1335 = vmul.f32 %v1328, 1.2
      %v1336 = vmul.f32 %v1329, 1.2
      %v1337 = vmul.f32 %v1330, 1.2
      %v1338 = vmul.f32 %v1331, 1.2
      %v1339 = vmul.f32 %v1332, 1.2
      %v1340 = vfloor.f32 %v1333
      %v1341 = vfloor.f32 %v1334
      %v1342 = vfloor.f32 %v1335
      %v1343 = vfloor.f32 %v1336
      %v1344 = vfloor.f32 %v1337
      %v1345 = vfloor.f32 %v1338
      %v1346 = vfloor.f32 %v1339
      %v1347 = vsub.f32 %v1333, %v1340
      %v1348 = vsub.f32 %v1334, %v1341
      %v1349 = vsub.f32 %v1335, %v1342
      %v1350 = vsub.f32 %v1336, %v1343
      %v1351 = vsub.f32 %v1337, %v1344
      %v1352 = vsub.f32 %v1338, %v1345
      %v1353 = vsub.f32 %v1339, %v1346
      %v1354 = vmul.f32 %v763, %v954
      %v1355 = vmul.f32 %v764, %v964
      %v1356 = vmul.f32 %v765, %v974
      %v1357 = vmul.f32 %v766, %v984
      %v1358 = vmul.f32 %v767, %v994
      %v1359 = vmul.f32 %v768, %v1004
      %v1360 = vmul.f32 %v769, %v1014
      %v1361 = vmul.f32 %v770, %v1024
      %v1362 = vmul.f32 %v771, %v1034
      %v1363 = vmul.f32 %v772, %v1044
      %v1364 = vmul.f32 %v773, %v1054
      %v1365 = vmul.f32 %v774, %v1064
      %v1366 = vmul.f32 %v775, %v1074
      %v1367 = vmul.f32 %v776, %v1084
      %v1368 = vmul.f32 %v1347, %v1354
      %v1369 = vmul.f32 %v1347, %v1355
      %v1370 = vmul.f32 %v1348, %v1356
      %v1371 = vmul.f32 %v1348, %v1357
      %v1372 = vmul.f32 %v1349, %v1358
      %v1373 = vmul.f32 %v1349, %v1359
      %v1374 = vmul.f32 %v1350, %v1360
      %v1375 = vmul.f32 %v1350, %v1361
      %v1376 = vmul.f32 %v1351, %v1362
      %v1377 = vmul.f32 %v1351, %v1363
      %v1378 = vmul.f32 %v1352, %v1364
      %v1379 = vmul.f32 %v1352, %v1365
      %v1380 = vmul.f32 %v1353, %v1366
      %v1381 = vmul.f32 %v1353, %v1367
      %v1382 = vsub.f32 1.0, %v1347
      %v1383 = vsub.f32 1.0, %v1348
      %v1384 = vsub.f32 1.0, %v1349
      %v1385 = vsub.f32 1.0, %v1350
      %v1386 = vsub.f32 1.0, %v1351
      %v1387 = vsub.f32 1.0, %v1352
      %v1388 = vsub.f32 1.0, %v1353
      %v1389 = vmul.f32 %v721, %v800
      %v1390 = vmul.f32 %v722, %v810
      %v1391 = vmul.f32 %v723, %v820
      %v1392 = vmul.f32 %v724, %v830
      %v1393 = vmul.f32 %v725, %v840
      %v1394 = vmul.f32 %v726, %v850
      %v1395 = vmul.f32 %v727, %v860
      %v1396 = vmul.f32 %v728, %v870
      %v1397 = vmul.f32 %v729, %v880
      %v1398 = vmul.f32 %v730, %v890
      %v1399 = vmul.f32 %v731, %v900
      %v1400 = vmul.f32 %v732, %v910
      %v1401 = vmul.f32 %v733, %v920
      %v1402 = vmul.f32 %v734, %v930
      %v1403 = vmul.f32 %v1382, %v1389
      %v1404 = vmul.f32 %v1382, %v1390
      %v1405 = vmul.f32 %v1383, %v1391
      %v1406 = vmul.f32 %v1383, %v1392
      %v1407 = vmul.f32 %v1384, %v1393
      %v1408 = vmul.f32 %v1384, %v1394
      %v1409 = vmul.f32 %v1385, %v1395
      %v1410 = vmul.f32 %v1385, %v1396
      %v1411 = vmul.f32 %v1386, %v1397
      %v1412 = vmul.f32 %v1386, %v1398
      %v1413 = vmul.f32 %v1387, %v1399
      %v1414 = vmul.f32 %v1387, %v1400
      %v1415 = vmul.f32 %v1388, %v1401
      %v1416 = vmul.f32 %v1388, %v1402
      %v1417 = vadd.f32 %v1368, %v1403
      %v1418 = vadd.f32 %v1369, %v1404
      %v1419 = vadd.f32 %v1370, %v1405
      %v1420 = vadd.f32 %v1371, %v1406
      %v1421 = vadd.f32 %v1372, %v1407
      %v1422 = vadd.f32 %v1373, %v1408
      %v1423 = vadd.f32 %v1374, %v1409
      %v1424 = vadd.f32 %v1375, %v1410
      %v1425 = vadd.f32 %v1376, %v1411
      %v1426 = vadd.f32 %v1377, %v1412
      %v1427 = vadd.f32 %v1378, %v1413
      %v1428 = vadd.f32 %v1379, %v1414
      %v1429 = vadd.f32 %v1380, %v1415
      %v1430 = vadd.f32 %v1381, %v1416
      %v1431 = vand.u32 %v1310, 7
      %v1432 = vand.u32 %v1311, 7
      %v1433 = vand.u32 %v1312, 7
      %v1434 = vand.u32 %v1313, 7
      %v1435 = vand.u32 %v1314, 7
      %v1436 = vand.u32 %v1315, 7
      %v1437 = vand.u32 %v1316, 7
      %vm1438 = vcmp.ge.s32.totalorder %v1431, 1
      %vm1439 = vcmp.ge.s32.totalorder %v1432, 1
      %vm1440 = vcmp.ge.s32.totalorder %v1433, 1
      %vm1441 = vcmp.ge.s32.totalorder %v1434, 1
      %vm1442 = vcmp.ge.s32.totalorder %v1435, 1
      %vm1443 = vcmp.ge.s32.totalorder %v1436, 1
      %vm1444 = vcmp.ge.s32.totalorder %v1437, 1
      %vm1445 = vcmp.ge.s32.totalorder %v1431, 2
      %vm1446 = vcmp.ge.s32.totalorder %v1432, 2
      %vm1447 = vcmp.ge.s32.totalorder %v1433, 2
      %vm1448 = vcmp.ge.s32.totalorder %v1434, 2
      %vm1449 = vcmp.ge.s32.totalorder %v1435, 2
      %vm1450 = vcmp.ge.s32.totalorder %v1436, 2
      %vm1451 = vcmp.ge.s32.totalorder %v1437, 2
      %vm1452 = vcmp.ge.s32.totalorder %v1431, 4
      %vm1453 = vcmp.ge.s32.totalorder %v1432, 4
      %vm1454 = vcmp.ge.s32.totalorder %v1433, 4
      %vm1455 = vcmp.ge.s32.totalorder %v1434, 4
      %vm1456 = vcmp.ge.s32.totalorder %v1435, 4
      %vm1457 = vcmp.ge.s32.totalorder %v1436, 4
      %vm1458 = vcmp.ge.s32.totalorder %v1437, 4
      %v1459 = vrot.slane %v1253, 7
      %v1460 = vrot.slane %v1254, 7
      %v1461 = vrot.slane %v1255, 7
      %v1462 = vrot.slane %v1256, 7
      %v1463 = vrot.slane %v1257, 7
      %v1464 = vrot.slane %v1258, 7
      %v1465 = vrot.slane %v1259, 7
      %v1466 = vrot.slane %v1260, 7
      %v1467 = vrot.slane %v1261, 7
      %v1468 = vrot.slane %v1262, 7
      %v1469 = vrot.slane %v1263, 7
      %v1470 = vrot.slane %v1264, 7
      %v1471 = vrot.slane %v1265, 7
      %v1472 = vrot.slane %v1266, 7
      %vm1473 = vcmp.lt.s32.totalorder %v1310, 1
      %v1474 = vsel %vm1473, %v1469, %v1471
      %v1475 = vsel %vm1473, %v1470, %v1472
      %v1476 = vsel %vm1473, %v1467, %v1469
      %v1477 = vsel %vm1473, %v1468, %v1470
      %v1478 = vsel %vm1473, %v1465, %v1467
      %v1479 = vsel %vm1473, %v1466, %v1468
      %v1480 = vsel %vm1473, %v1463, %v1465
      %v1481 = vsel %vm1473, %v1464, %v1466
      %v1482 = vsel %vm1473, %v1461, %v1463
      %v1483 = vsel %vm1473, %v1462, %v1464
      %v1484 = vsel %vm1473, %v1459, %v1461
      %v1485 = vsel %vm1473, %v1460, %v1462
      %v1486 = vsel %vm1473, %v1471, %v1459
      %v1487 = vsel %vm1473, %v1472, %v1460
      %v1488 = vrot.slane %v1295, 7
      %v1489 = vrot.slane %v1296, 7
      %v1490 = vrot.slane %v1297, 7
      %v1491 = vrot.slane %v1298, 7
      %v1492 = vrot.slane %v1299, 7
      %v1493 = vrot.slane %v1300, 7
      %v1494 = vrot.slane %v1301, 7
      %v1495 = vrot.slane %v1302, 7
      %v1496 = vrot.slane %v1303, 7
      %v1497 = vrot.slane %v1304, 7
      %v1498 = vrot.slane %v1305, 7
      %v1499 = vrot.slane %v1306, 7
      %v1500 = vrot.slane %v1307, 7
      %v1501 = vrot.slane %v1308, 7
      %v1502 = vsel %vm1473, %v1498, %v1500
      %v1503 = vsel %vm1473, %v1499, %v1501
      %v1504 = vsel %vm1473, %v1496, %v1498
      %v1505 = vsel %vm1473, %v1497, %v1499
      %v1506 = vsel %vm1473, %v1494, %v1496
      %v1507 = vsel %vm1473, %v1495, %v1497
      %v1508 = vsel %vm1473, %v1492, %v1494
      %v1509 = vsel %vm1473, %v1493, %v1495
      %v1510 = vsel %vm1473, %v1490, %v1492
      %v1511 = vsel %vm1473, %v1491, %v1493
      %v1512 = vsel %vm1473, %v1488, %v1490
      %v1513 = vsel %vm1473, %v1489, %v1491
      %v1514 = vsel %vm1473, %v1500, %v1488
      %v1515 = vsel %vm1473, %v1501, %v1489
      %v1516 = vsel %vm1438, 1, 0
      %v1517 = vsel %vm1439, 1, 0
      %v1518 = vsel %vm1440, 1, 0
      %v1519 = vsel %vm1441, 1, 0
      %v1520 = vsel %vm1442, 1, 0
      %v1521 = vsel %vm1443, 1, 0
      %v1522 = vsel %vm1444, 1, 0
      %vm1523 = vcmp.eq.s32.totalorder %v1516, 1
      %vm1524 = vcmp.eq.s32.totalorder %v1517, 1
      %vm1525 = vcmp.eq.s32.totalorder %v1518, 1
      %vm1526 = vcmp.eq.s32.totalorder %v1519, 1
      %vm1527 = vcmp.eq.s32.totalorder %v1520, 1
      %vm1528 = vcmp.eq.s32.totalorder %v1521, 1
      %vm1529 = vcmp.eq.s32.totalorder %v1522, 1
      %v1530 = vsel %vm1523, %v1486, 1.0
      %v1531 = vsel %vm1523, %v1487, 1.0
      %v1532 = vsel %vm1524, %v1484, 1.0
      %v1533 = vsel %vm1524, %v1485, 1.0
      %v1534 = vsel %vm1525, %v1482, 1.0
      %v1535 = vsel %vm1525, %v1483, 1.0
      %v1536 = vsel %vm1526, %v1480, 1.0
      %v1537 = vsel %vm1526, %v1481, 1.0
      %v1538 = vsel %vm1527, %v1478, 1.0
      %v1539 = vsel %vm1527, %v1479, 1.0
      %v1540 = vsel %vm1528, %v1476, 1.0
      %v1541 = vsel %vm1528, %v1477, 1.0
      %v1542 = vsel %vm1529, %v1474, 1.0
      %v1543 = vsel %vm1529, %v1475, 1.0
      %v1544 = vsel %vm1523, %v1514, 0.0
      %v1545 = vsel %vm1523, %v1515, 0.0
      %v1546 = vsel %vm1524, %v1512, 0.0
      %v1547 = vsel %vm1524, %v1513, 0.0
      %v1548 = vsel %vm1525, %v1510, 0.0
      %v1549 = vsel %vm1525, %v1511, 0.0
      %v1550 = vsel %vm1526, %v1508, 0.0
      %v1551 = vsel %vm1526, %v1509, 0.0
      %v1552 = vsel %vm1527, %v1506, 0.0
      %v1553 = vsel %vm1527, %v1507, 0.0
      %v1554 = vsel %vm1528, %v1504, 0.0
      %v1555 = vsel %vm1528, %v1505, 0.0
      %v1556 = vsel %vm1529, %v1502, 0.0
      %v1557 = vsel %vm1529, %v1503, 0.0
      %v1558 = vmul.f32 %v1253, %v1530
      %v1559 = vmul.f32 %v1254, %v1531
      %v1560 = vmul.f32 %v1255, %v1532
      %v1561 = vmul.f32 %v1256, %v1533
      %v1562 = vmul.f32 %v1257, %v1534
      %v1563 = vmul.f32 %v1258, %v1535
      %v1564 = vmul.f32 %v1259, %v1536
      %v1565 = vmul.f32 %v1260, %v1537
      %v1566 = vmul.f32 %v1261, %v1538
      %v1567 = vmul.f32 %v1262, %v1539
      %v1568 = vmul.f32 %v1263, %v1540
      %v1569 = vmul.f32 %v1264, %v1541
      %v1570 = vmul.f32 %v1265, %v1542
      %v1571 = vmul.f32 %v1266, %v1543
      %v1572 = vmul.f32 %v1295, %v1544
      %v1573 = vmul.f32 %v1296, %v1545
      %v1574 = vmul.f32 %v1297, %v1546
      %v1575 = vmul.f32 %v1298, %v1547
      %v1576 = vmul.f32 %v1299, %v1548
      %v1577 = vmul.f32 %v1300, %v1549
      %v1578 = vmul.f32 %v1301, %v1550
      %v1579 = vmul.f32 %v1302, %v1551
      %v1580 = vmul.f32 %v1303, %v1552
      %v1581 = vmul.f32 %v1304, %v1553
      %v1582 = vmul.f32 %v1305, %v1554
      %v1583 = vmul.f32 %v1306, %v1555
      %v1584 = vmul.f32 %v1307, %v1556
      %v1585 = vmul.f32 %v1308, %v1557
      %v1586 = vsub.f32 %v1558, %v1572
      %v1587 = vsub.f32 %v1559, %v1573
      %v1588 = vsub.f32 %v1560, %v1574
      %v1589 = vsub.f32 %v1561, %v1575
      %v1590 = vsub.f32 %v1562, %v1576
      %v1591 = vsub.f32 %v1563, %v1577
      %v1592 = vsub.f32 %v1564, %v1578
      %v1593 = vsub.f32 %v1565, %v1579
      %v1594 = vsub.f32 %v1566, %v1580
      %v1595 = vsub.f32 %v1567, %v1581
      %v1596 = vsub.f32 %v1568, %v1582
      %v1597 = vsub.f32 %v1569, %v1583
      %v1598 = vsub.f32 %v1570, %v1584
      %v1599 = vsub.f32 %v1571, %v1585
      %v1600 = vmul.f32 %v1253, %v1544
      %v1601 = vmul.f32 %v1254, %v1545
      %v1602 = vmul.f32 %v1255, %v1546
      %v1603 = vmul.f32 %v1256, %v1547
      %v1604 = vmul.f32 %v1257, %v1548
      %v1605 = vmul.f32 %v1258, %v1549
      %v1606 = vmul.f32 %v1259, %v1550
      %v1607 = vmul.f32 %v1260, %v1551
      %v1608 = vmul.f32 %v1261, %v1552
      %v1609 = vmul.f32 %v1262, %v1553
      %v1610 = vmul.f32 %v1263, %v1554
      %v1611 = vmul.f32 %v1264, %v1555
      %v1612 = vmul.f32 %v1265, %v1556
      %v1613 = vmul.f32 %v1266, %v1557
      %v1614 = vmul.f32 %v1295, %v1530
      %v1615 = vmul.f32 %v1296, %v1531
      %v1616 = vmul.f32 %v1297, %v1532
      %v1617 = vmul.f32 %v1298, %v1533
      %v1618 = vmul.f32 %v1299, %v1534
      %v1619 = vmul.f32 %v1300, %v1535
      %v1620 = vmul.f32 %v1301, %v1536
      %v1621 = vmul.f32 %v1302, %v1537
      %v1622 = vmul.f32 %v1303, %v1538
      %v1623 = vmul.f32 %v1304, %v1539
      %v1624 = vmul.f32 %v1305, %v1540
      %v1625 = vmul.f32 %v1306, %v1541
      %v1626 = vmul.f32 %v1307, %v1542
      %v1627 = vmul.f32 %v1308, %v1543
      %v1628 = vadd.f32 %v1600, %v1614
      %v1629 = vadd.f32 %v1601, %v1615
      %v1630 = vadd.f32 %v1602, %v1616
      %v1631 = vadd.f32 %v1603, %v1617
      %v1632 = vadd.f32 %v1604, %v1618
      %v1633 = vadd.f32 %v1605, %v1619
      %v1634 = vadd.f32 %v1606, %v1620
      %v1635 = vadd.f32 %v1607, %v1621
      %v1636 = vadd.f32 %v1608, %v1622
      %v1637 = vadd.f32 %v1609, %v1623
      %v1638 = vadd.f32 %v1610, %v1624
      %v1639 = vadd.f32 %v1611, %v1625
      %v1640 = vadd.f32 %v1612, %v1626
      %v1641 = vadd.f32 %v1613, %v1627
      %v1642 = vrot.slane %v1586, 6
      %v1643 = vrot.slane %v1587, 6
      %v1644 = vrot.slane %v1588, 6
      %v1645 = vrot.slane %v1589, 6
      %v1646 = vrot.slane %v1590, 6
      %v1647 = vrot.slane %v1591, 6
      %v1648 = vrot.slane %v1592, 6
      %v1649 = vrot.slane %v1593, 6
      %v1650 = vrot.slane %v1594, 6
      %v1651 = vrot.slane %v1595, 6
      %v1652 = vrot.slane %v1596, 6
      %v1653 = vrot.slane %v1597, 6
      %v1654 = vrot.slane %v1598, 6
      %v1655 = vrot.slane %v1599, 6
      %vm1656 = vcmp.lt.s32.totalorder %v1310, 2
      %v1657 = vsel %vm1656, %v1652, %v1654
      %v1658 = vsel %vm1656, %v1653, %v1655
      %v1659 = vsel %vm1656, %v1650, %v1652
      %v1660 = vsel %vm1656, %v1651, %v1653
      %v1661 = vsel %vm1656, %v1648, %v1650
      %v1662 = vsel %vm1656, %v1649, %v1651
      %v1663 = vsel %vm1656, %v1646, %v1648
      %v1664 = vsel %vm1656, %v1647, %v1649
      %v1665 = vsel %vm1656, %v1644, %v1646
      %v1666 = vsel %vm1656, %v1645, %v1647
      %v1667 = vsel %vm1656, %v1642, %v1644
      %v1668 = vsel %vm1656, %v1643, %v1645
      %v1669 = vsel %vm1656, %v1654, %v1642
      %v1670 = vsel %vm1656, %v1655, %v1643
      %v1671 = vrot.slane %v1628, 6
      %v1672 = vrot.slane %v1629, 6
      %v1673 = vrot.slane %v1630, 6
      %v1674 = vrot.slane %v1631, 6
      %v1675 = vrot.slane %v1632, 6
      %v1676 = vrot.slane %v1633, 6
      %v1677 = vrot.slane %v1634, 6
      %v1678 = vrot.slane %v1635, 6
      %v1679 = vrot.slane %v1636, 6
      %v1680 = vrot.slane %v1637, 6
      %v1681 = vrot.slane %v1638, 6
      %v1682 = vrot.slane %v1639, 6
      %v1683 = vrot.slane %v1640, 6
      %v1684 = vrot.slane %v1641, 6
      %v1685 = vsel %vm1656, %v1681, %v1683
      %v1686 = vsel %vm1656, %v1682, %v1684
      %v1687 = vsel %vm1656, %v1679, %v1681
      %v1688 = vsel %vm1656, %v1680, %v1682
      %v1689 = vsel %vm1656, %v1677, %v1679
      %v1690 = vsel %vm1656, %v1678, %v1680
      %v1691 = vsel %vm1656, %v1675, %v1677
      %v1692 = vsel %vm1656, %v1676, %v1678
      %v1693 = vsel %vm1656, %v1673, %v1675
      %v1694 = vsel %vm1656, %v1674, %v1676
      %v1695 = vsel %vm1656, %v1671, %v1673
      %v1696 = vsel %vm1656, %v1672, %v1674
      %v1697 = vsel %vm1656, %v1683, %v1671
      %v1698 = vsel %vm1656, %v1684, %v1672
      %v1699 = vsel %vm1445, 1, 0
      %v1700 = vsel %vm1446, 1, 0
      %v1701 = vsel %vm1447, 1, 0
      %v1702 = vsel %vm1448, 1, 0
      %v1703 = vsel %vm1449, 1, 0
      %v1704 = vsel %vm1450, 1, 0
      %v1705 = vsel %vm1451, 1, 0
      %vm1706 = vcmp.eq.s32.totalorder %v1699, 1
      %vm1707 = vcmp.eq.s32.totalorder %v1700, 1
      %vm1708 = vcmp.eq.s32.totalorder %v1701, 1
      %vm1709 = vcmp.eq.s32.totalorder %v1702, 1
      %vm1710 = vcmp.eq.s32.totalorder %v1703, 1
      %vm1711 = vcmp.eq.s32.totalorder %v1704, 1
      %vm1712 = vcmp.eq.s32.totalorder %v1705, 1
      %v1713 = vsel %vm1706, %v1669, 1.0
      %v1714 = vsel %vm1706, %v1670, 1.0
      %v1715 = vsel %vm1707, %v1667, 1.0
      %v1716 = vsel %vm1707, %v1668, 1.0
      %v1717 = vsel %vm1708, %v1665, 1.0
      %v1718 = vsel %vm1708, %v1666, 1.0
      %v1719 = vsel %vm1709, %v1663, 1.0
      %v1720 = vsel %vm1709, %v1664, 1.0
      %v1721 = vsel %vm1710, %v1661, 1.0
      %v1722 = vsel %vm1710, %v1662, 1.0
      %v1723 = vsel %vm1711, %v1659, 1.0
      %v1724 = vsel %vm1711, %v1660, 1.0
      %v1725 = vsel %vm1712, %v1657, 1.0
      %v1726 = vsel %vm1712, %v1658, 1.0
      %v1727 = vsel %vm1706, %v1697, 0.0
      %v1728 = vsel %vm1706, %v1698, 0.0
      %v1729 = vsel %vm1707, %v1695, 0.0
      %v1730 = vsel %vm1707, %v1696, 0.0
      %v1731 = vsel %vm1708, %v1693, 0.0
      %v1732 = vsel %vm1708, %v1694, 0.0
      %v1733 = vsel %vm1709, %v1691, 0.0
      %v1734 = vsel %vm1709, %v1692, 0.0
      %v1735 = vsel %vm1710, %v1689, 0.0
      %v1736 = vsel %vm1710, %v1690, 0.0
      %v1737 = vsel %vm1711, %v1687, 0.0
      %v1738 = vsel %vm1711, %v1688, 0.0
      %v1739 = vsel %vm1712, %v1685, 0.0
      %v1740 = vsel %vm1712, %v1686, 0.0
      %v1741 = vmul.f32 %v1586, %v1713
      %v1742 = vmul.f32 %v1587, %v1714
      %v1743 = vmul.f32 %v1588, %v1715
      %v1744 = vmul.f32 %v1589, %v1716
      %v1745 = vmul.f32 %v1590, %v1717
      %v1746 = vmul.f32 %v1591, %v1718
      %v1747 = vmul.f32 %v1592, %v1719
      %v1748 = vmul.f32 %v1593, %v1720
      %v1749 = vmul.f32 %v1594, %v1721
      %v1750 = vmul.f32 %v1595, %v1722
      %v1751 = vmul.f32 %v1596, %v1723
      %v1752 = vmul.f32 %v1597, %v1724
      %v1753 = vmul.f32 %v1598, %v1725
      %v1754 = vmul.f32 %v1599, %v1726
      %v1755 = vmul.f32 %v1628, %v1727
      %v1756 = vmul.f32 %v1629, %v1728
      %v1757 = vmul.f32 %v1630, %v1729
      %v1758 = vmul.f32 %v1631, %v1730
      %v1759 = vmul.f32 %v1632, %v1731
      %v1760 = vmul.f32 %v1633, %v1732
      %v1761 = vmul.f32 %v1634, %v1733
      %v1762 = vmul.f32 %v1635, %v1734
      %v1763 = vmul.f32 %v1636, %v1735
      %v1764 = vmul.f32 %v1637, %v1736
      %v1765 = vmul.f32 %v1638, %v1737
      %v1766 = vmul.f32 %v1639, %v1738
      %v1767 = vmul.f32 %v1640, %v1739
      %v1768 = vmul.f32 %v1641, %v1740
      %v1769 = vsub.f32 %v1741, %v1755
      %v1770 = vsub.f32 %v1742, %v1756
      %v1771 = vsub.f32 %v1743, %v1757
      %v1772 = vsub.f32 %v1744, %v1758
      %v1773 = vsub.f32 %v1745, %v1759
      %v1774 = vsub.f32 %v1746, %v1760
      %v1775 = vsub.f32 %v1747, %v1761
      %v1776 = vsub.f32 %v1748, %v1762
      %v1777 = vsub.f32 %v1749, %v1763
      %v1778 = vsub.f32 %v1750, %v1764
      %v1779 = vsub.f32 %v1751, %v1765
      %v1780 = vsub.f32 %v1752, %v1766
      %v1781 = vsub.f32 %v1753, %v1767
      %v1782 = vsub.f32 %v1754, %v1768
      %v1783 = vmul.f32 %v1586, %v1727
      %v1784 = vmul.f32 %v1587, %v1728
      %v1785 = vmul.f32 %v1588, %v1729
      %v1786 = vmul.f32 %v1589, %v1730
      %v1787 = vmul.f32 %v1590, %v1731
      %v1788 = vmul.f32 %v1591, %v1732
      %v1789 = vmul.f32 %v1592, %v1733
      %v1790 = vmul.f32 %v1593, %v1734
      %v1791 = vmul.f32 %v1594, %v1735
      %v1792 = vmul.f32 %v1595, %v1736
      %v1793 = vmul.f32 %v1596, %v1737
      %v1794 = vmul.f32 %v1597, %v1738
      %v1795 = vmul.f32 %v1598, %v1739
      %v1796 = vmul.f32 %v1599, %v1740
      %v1797 = vmul.f32 %v1628, %v1713
      %v1798 = vmul.f32 %v1629, %v1714
      %v1799 = vmul.f32 %v1630, %v1715
      %v1800 = vmul.f32 %v1631, %v1716
      %v1801 = vmul.f32 %v1632, %v1717
      %v1802 = vmul.f32 %v1633, %v1718
      %v1803 = vmul.f32 %v1634, %v1719
      %v1804 = vmul.f32 %v1635, %v1720
      %v1805 = vmul.f32 %v1636, %v1721
      %v1806 = vmul.f32 %v1637, %v1722
      %v1807 = vmul.f32 %v1638, %v1723
      %v1808 = vmul.f32 %v1639, %v1724
      %v1809 = vmul.f32 %v1640, %v1725
      %v1810 = vmul.f32 %v1641, %v1726
      %v1811 = vadd.f32 %v1783, %v1797
      %v1812 = vadd.f32 %v1784, %v1798
      %v1813 = vadd.f32 %v1785, %v1799
      %v1814 = vadd.f32 %v1786, %v1800
      %v1815 = vadd.f32 %v1787, %v1801
      %v1816 = vadd.f32 %v1788, %v1802
      %v1817 = vadd.f32 %v1789, %v1803
      %v1818 = vadd.f32 %v1790, %v1804
      %v1819 = vadd.f32 %v1791, %v1805
      %v1820 = vadd.f32 %v1792, %v1806
      %v1821 = vadd.f32 %v1793, %v1807
      %v1822 = vadd.f32 %v1794, %v1808
      %v1823 = vadd.f32 %v1795, %v1809
      %v1824 = vadd.f32 %v1796, %v1810
      %v1825 = vrot.slane %v1769, 4
      %v1826 = vrot.slane %v1770, 4
      %v1827 = vrot.slane %v1771, 4
      %v1828 = vrot.slane %v1772, 4
      %v1829 = vrot.slane %v1773, 4
      %v1830 = vrot.slane %v1774, 4
      %v1831 = vrot.slane %v1775, 4
      %v1832 = vrot.slane %v1776, 4
      %v1833 = vrot.slane %v1777, 4
      %v1834 = vrot.slane %v1778, 4
      %v1835 = vrot.slane %v1779, 4
      %v1836 = vrot.slane %v1780, 4
      %v1837 = vrot.slane %v1781, 4
      %v1838 = vrot.slane %v1782, 4
      %vm1839 = vcmp.lt.s32.totalorder %v1310, 4
      %v1840 = vsel %vm1839, %v1835, %v1837
      %v1841 = vsel %vm1839, %v1836, %v1838
      %v1842 = vsel %vm1839, %v1833, %v1835
      %v1843 = vsel %vm1839, %v1834, %v1836
      %v1844 = vsel %vm1839, %v1831, %v1833
      %v1845 = vsel %vm1839, %v1832, %v1834
      %v1846 = vsel %vm1839, %v1829, %v1831
      %v1847 = vsel %vm1839, %v1830, %v1832
      %v1848 = vsel %vm1839, %v1827, %v1829
      %v1849 = vsel %vm1839, %v1828, %v1830
      %v1850 = vsel %vm1839, %v1825, %v1827
      %v1851 = vsel %vm1839, %v1826, %v1828
      %v1852 = vsel %vm1839, %v1837, %v1825
      %v1853 = vsel %vm1839, %v1838, %v1826
      %v1854 = vrot.slane %v1811, 4
      %v1855 = vrot.slane %v1812, 4
      %v1856 = vrot.slane %v1813, 4
      %v1857 = vrot.slane %v1814, 4
      %v1858 = vrot.slane %v1815, 4
      %v1859 = vrot.slane %v1816, 4
      %v1860 = vrot.slane %v1817, 4
      %v1861 = vrot.slane %v1818, 4
      %v1862 = vrot.slane %v1819, 4
      %v1863 = vrot.slane %v1820, 4
      %v1864 = vrot.slane %v1821, 4
      %v1865 = vrot.slane %v1822, 4
      %v1866 = vrot.slane %v1823, 4
      %v1867 = vrot.slane %v1824, 4
      %v1868 = vsel %vm1839, %v1864, %v1866
      %v1869 = vsel %vm1839, %v1865, %v1867
      %v1870 = vsel %vm1839, %v1862, %v1864
      %v1871 = vsel %vm1839, %v1863, %v1865
      %v1872 = vsel %vm1839, %v1860, %v1862
      %v1873 = vsel %vm1839, %v1861, %v1863
      %v1874 = vsel %vm1839, %v1858, %v1860
      %v1875 = vsel %vm1839, %v1859, %v1861
      %v1876 = vsel %vm1839, %v1856, %v1858
      %v1877 = vsel %vm1839, %v1857, %v1859
      %v1878 = vsel %vm1839, %v1854, %v1856
      %v1879 = vsel %vm1839, %v1855, %v1857
      %v1880 = vsel %vm1839, %v1866, %v1854
      %v1881 = vsel %vm1839, %v1867, %v1855
      %v1882 = vsel %vm1452, 1, 0
      %v1883 = vsel %vm1453, 1, 0
      %v1884 = vsel %vm1454, 1, 0
      %v1885 = vsel %vm1455, 1, 0
      %v1886 = vsel %vm1456, 1, 0
      %v1887 = vsel %vm1457, 1, 0
      %v1888 = vsel %vm1458, 1, 0
      %vm1889 = vcmp.eq.s32.totalorder %v1882, 1
      %vm1890 = vcmp.eq.s32.totalorder %v1883, 1
      %vm1891 = vcmp.eq.s32.totalorder %v1884, 1
      %vm1892 = vcmp.eq.s32.totalorder %v1885, 1
      %vm1893 = vcmp.eq.s32.totalorder %v1886, 1
      %vm1894 = vcmp.eq.s32.totalorder %v1887, 1
      %vm1895 = vcmp.eq.s32.totalorder %v1888, 1
      %v1896 = vsel %vm1889, %v1852, 1.0
      %v1897 = vsel %vm1889, %v1853, 1.0
      %v1898 = vsel %vm1890, %v1850, 1.0
      %v1899 = vsel %vm1890, %v1851, 1.0
      %v1900 = vsel %vm1891, %v1848, 1.0
      %v1901 = vsel %vm1891, %v1849, 1.0
      %v1902 = vsel %vm1892, %v1846, 1.0
      %v1903 = vsel %vm1892, %v1847, 1.0
      %v1904 = vsel %vm1893, %v1844, 1.0
      %v1905 = vsel %vm1893, %v1845, 1.0
      %v1906 = vsel %vm1894, %v1842, 1.0
      %v1907 = vsel %vm1894, %v1843, 1.0
      %v1908 = vsel %vm1895, %v1840, 1.0
      %v1909 = vsel %vm1895, %v1841, 1.0
      %v1910 = vsel %vm1889, %v1880, 0.0
      %v1911 = vsel %vm1889, %v1881, 0.0
      %v1912 = vsel %vm1890, %v1878, 0.0
      %v1913 = vsel %vm1890, %v1879, 0.0
      %v1914 = vsel %vm1891, %v1876, 0.0
      %v1915 = vsel %vm1891, %v1877, 0.0
      %v1916 = vsel %vm1892, %v1874, 0.0
      %v1917 = vsel %vm1892, %v1875, 0.0
      %v1918 = vsel %vm1893, %v1872, 0.0
      %v1919 = vsel %vm1893, %v1873, 0.0
      %v1920 = vsel %vm1894, %v1870, 0.0
      %v1921 = vsel %vm1894, %v1871, 0.0
      %v1922 = vsel %vm1895, %v1868, 0.0
      %v1923 = vsel %vm1895, %v1869, 0.0
      %v1924 = vmul.f32 %v1769, %v1896
      %v1925 = vmul.f32 %v1770, %v1897
      %v1926 = vmul.f32 %v1771, %v1898
      %v1927 = vmul.f32 %v1772, %v1899
      %v1928 = vmul.f32 %v1773, %v1900
      %v1929 = vmul.f32 %v1774, %v1901
      %v1930 = vmul.f32 %v1775, %v1902
      %v1931 = vmul.f32 %v1776, %v1903
      %v1932 = vmul.f32 %v1777, %v1904
      %v1933 = vmul.f32 %v1778, %v1905
      %v1934 = vmul.f32 %v1779, %v1906
      %v1935 = vmul.f32 %v1780, %v1907
      %v1936 = vmul.f32 %v1781, %v1908
      %v1937 = vmul.f32 %v1782, %v1909
      %v1938 = vmul.f32 %v1811, %v1910
      %v1939 = vmul.f32 %v1812, %v1911
      %v1940 = vmul.f32 %v1813, %v1912
      %v1941 = vmul.f32 %v1814, %v1913
      %v1942 = vmul.f32 %v1815, %v1914
      %v1943 = vmul.f32 %v1816, %v1915
      %v1944 = vmul.f32 %v1817, %v1916
      %v1945 = vmul.f32 %v1818, %v1917
      %v1946 = vmul.f32 %v1819, %v1918
      %v1947 = vmul.f32 %v1820, %v1919
      %v1948 = vmul.f32 %v1821, %v1920
      %v1949 = vmul.f32 %v1822, %v1921
      %v1950 = vmul.f32 %v1823, %v1922
      %v1951 = vmul.f32 %v1824, %v1923
      %v1952 = vsub.f32 %v1924, %v1938
      %v1953 = vsub.f32 %v1925, %v1939
      %v1954 = vsub.f32 %v1926, %v1940
      %v1955 = vsub.f32 %v1927, %v1941
      %v1956 = vsub.f32 %v1928, %v1942
      %v1957 = vsub.f32 %v1929, %v1943
      %v1958 = vsub.f32 %v1930, %v1944
      %v1959 = vsub.f32 %v1931, %v1945
      %v1960 = vsub.f32 %v1932, %v1946
      %v1961 = vsub.f32 %v1933, %v1947
      %v1962 = vsub.f32 %v1934, %v1948
      %v1963 = vsub.f32 %v1935, %v1949
      %v1964 = vsub.f32 %v1936, %v1950
      %v1965 = vsub.f32 %v1937, %v1951
      %v1966 = vmul.f32 %v1769, %v1910
      %v1967 = vmul.f32 %v1770, %v1911
      %v1968 = vmul.f32 %v1771, %v1912
      %v1969 = vmul.f32 %v1772, %v1913
      %v1970 = vmul.f32 %v1773, %v1914
      %v1971 = vmul.f32 %v1774, %v1915
      %v1972 = vmul.f32 %v1775, %v1916
      %v1973 = vmul.f32 %v1776, %v1917
      %v1974 = vmul.f32 %v1777, %v1918
      %v1975 = vmul.f32 %v1778, %v1919
      %v1976 = vmul.f32 %v1779, %v1920
      %v1977 = vmul.f32 %v1780, %v1921
      %v1978 = vmul.f32 %v1781, %v1922
      %v1979 = vmul.f32 %v1782, %v1923
      %v1980 = vmul.f32 %v1811, %v1896
      %v1981 = vmul.f32 %v1812, %v1897
      %v1982 = vmul.f32 %v1813, %v1898
      %v1983 = vmul.f32 %v1814, %v1899
      %v1984 = vmul.f32 %v1815, %v1900
      %v1985 = vmul.f32 %v1816, %v1901
      %v1986 = vmul.f32 %v1817, %v1902
      %v1987 = vmul.f32 %v1818, %v1903
      %v1988 = vmul.f32 %v1819, %v1904
      %v1989 = vmul.f32 %v1820, %v1905
      %v1990 = vmul.f32 %v1821, %v1906
      %v1991 = vmul.f32 %v1822, %v1907
      %v1992 = vmul.f32 %v1823, %v1908
      %v1993 = vmul.f32 %v1824, %v1909
      %v1994 = vadd.f32 %v1966, %v1980
      %v1995 = vadd.f32 %v1967, %v1981
      %v1996 = vadd.f32 %v1968, %v1982
      %v1997 = vadd.f32 %v1969, %v1983
      %v1998 = vadd.f32 %v1970, %v1984
      %v1999 = vadd.f32 %v1971, %v1985
      %v2000 = vadd.f32 %v1972, %v1986
      %v2001 = vadd.f32 %v1973, %v1987
      %v2002 = vadd.f32 %v1974, %v1988
      %v2003 = vadd.f32 %v1975, %v1989
      %v2004 = vadd.f32 %v1976, %v1990
      %v2005 = vadd.f32 %v1977, %v1991
      %v2006 = vadd.f32 %v1978, %v1992
      %v2007 = vadd.f32 %v1979, %v1993
      %v2008 = vrot.slane %v1952, 7
      %v2009 = vrot.slane %v1953, 7
      %v2010 = vrot.slane %v1954, 7
      %v2011 = vrot.slane %v1955, 7
      %v2012 = vrot.slane %v1956, 7
      %v2013 = vrot.slane %v1957, 7
      %v2014 = vrot.slane %v1958, 7
      %v2015 = vrot.slane %v1959, 7
      %v2016 = vrot.slane %v1960, 7
      %v2017 = vrot.slane %v1961, 7
      %v2018 = vrot.slane %v1962, 7
      %v2019 = vrot.slane %v1963, 7
      %v2020 = vrot.slane %v1964, 7
      %v2021 = vrot.slane %v1965, 7
      %v2022 = vsel %vm1473, %v2018, %v2020
      %v2023 = vsel %vm1473, %v2019, %v2021
      %v2024 = vsel %vm1473, %v2016, %v2018
      %v2025 = vsel %vm1473, %v2017, %v2019
      %v2026 = vsel %vm1473, %v2014, %v2016
      %v2027 = vsel %vm1473, %v2015, %v2017
      %v2028 = vsel %vm1473, %v2012, %v2014
      %v2029 = vsel %vm1473, %v2013, %v2015
      %v2030 = vsel %vm1473, %v2010, %v2012
      %v2031 = vsel %vm1473, %v2011, %v2013
      %v2032 = vsel %vm1473, %v2008, %v2010
      %v2033 = vsel %vm1473, %v2009, %v2011
      %v2034 = vsel %vm1473, %v2020, %v2008
      %v2035 = vsel %vm1473, %v2021, %v2009
      %v2036 = vsel %vm1523, %v2034, 1.0
      %v2037 = vsel %vm1523, %v2035, 1.0
      %v2038 = vsel %vm1524, %v2032, 1.0
      %v2039 = vsel %vm1524, %v2033, 1.0
      %v2040 = vsel %vm1525, %v2030, 1.0
      %v2041 = vsel %vm1525, %v2031, 1.0
      %v2042 = vsel %vm1526, %v2028, 1.0
      %v2043 = vsel %vm1526, %v2029, 1.0
      %v2044 = vsel %vm1527, %v2026, 1.0
      %v2045 = vsel %vm1527, %v2027, 1.0
      %v2046 = vsel %vm1528, %v2024, 1.0
      %v2047 = vsel %vm1528, %v2025, 1.0
      %v2048 = vsel %vm1529, %v2022, 1.0
      %v2049 = vsel %vm1529, %v2023, 1.0
      %v2050 = vrot.slane %v1994, 7
      %v2051 = vrot.slane %v1995, 7
      %v2052 = vrot.slane %v1996, 7
      %v2053 = vrot.slane %v1997, 7
      %v2054 = vrot.slane %v1998, 7
      %v2055 = vrot.slane %v1999, 7
      %v2056 = vrot.slane %v2000, 7
      %v2057 = vrot.slane %v2001, 7
      %v2058 = vrot.slane %v2002, 7
      %v2059 = vrot.slane %v2003, 7
      %v2060 = vrot.slane %v2004, 7
      %v2061 = vrot.slane %v2005, 7
      %v2062 = vrot.slane %v2006, 7
      %v2063 = vrot.slane %v2007, 7
      %v2064 = vsel %vm1473, %v2060, %v2062
      %v2065 = vsel %vm1473, %v2061, %v2063
      %v2066 = vsel %vm1473, %v2058, %v2060
      %v2067 = vsel %vm1473, %v2059, %v2061
      %v2068 = vsel %vm1473, %v2056, %v2058
      %v2069 = vsel %vm1473, %v2057, %v2059
      %v2070 = vsel %vm1473, %v2054, %v2056
      %v2071 = vsel %vm1473, %v2055, %v2057
      %v2072 = vsel %vm1473, %v2052, %v2054
      %v2073 = vsel %vm1473, %v2053, %v2055
      %v2074 = vsel %vm1473, %v2050, %v2052
      %v2075 = vsel %vm1473, %v2051, %v2053
      %v2076 = vsel %vm1473, %v2062, %v2050
      %v2077 = vsel %vm1473, %v2063, %v2051
      %v2078 = vsel %vm1523, %v2076, 0.0
      %v2079 = vsel %vm1523, %v2077, 0.0
      %v2080 = vsel %vm1524, %v2074, 0.0
      %v2081 = vsel %vm1524, %v2075, 0.0
      %v2082 = vsel %vm1525, %v2072, 0.0
      %v2083 = vsel %vm1525, %v2073, 0.0
      %v2084 = vsel %vm1526, %v2070, 0.0
      %v2085 = vsel %vm1526, %v2071, 0.0
      %v2086 = vsel %vm1527, %v2068, 0.0
      %v2087 = vsel %vm1527, %v2069, 0.0
      %v2088 = vsel %vm1528, %v2066, 0.0
      %v2089 = vsel %vm1528, %v2067, 0.0
      %v2090 = vsel %vm1529, %v2064, 0.0
      %v2091 = vsel %vm1529, %v2065, 0.0
      %v2092 = vld [vmem:[#allocation2] sm:$0x3]
      %v2093 = vld [vmem:[#allocation3] sm:$0x3]
      %v2095 = vperm.slane %v2092, 0
      %v2096 = vperm.slane %v2092, 1
      %v2099 = vmul.f32 %v2095, %v2036
      %v2100 = vmul.f32 %v2096, %v2037
      %v2102 = vperm.slane %v2093, 0
      %v2103 = vperm.slane %v2093, 1
      %v2106 = vmul.f32 %v2102, %v2078
      %v2107 = vmul.f32 %v2103, %v2079
      %v2108 = vsub.f32 %v2099, %v2106
      %v2109 = vsub.f32 %v2100, %v2107
      %v2110 = vmul.f32 %v2095, %v2078
      %v2111 = vmul.f32 %v2096, %v2079
      %v2112 = vmul.f32 %v2102, %v2036
      %v2113 = vmul.f32 %v2103, %v2037
      %v2114 = vadd.f32 %v2110, %v2112
      %v2115 = vadd.f32 %v2111, %v2113
      %v2116 = vmul.f32 %v1417, %v2108
      %v2117 = vmul.f32 %v1418, %v2109
      %2118 = vst [vmem:[%s606] sm:$0xff] %v2116
      %2119 = vst [vmem:[%s606 + $0x8] sm:$0xff] %v2117
      %v2120 = vmul.f32 %v1417, %v2114
      %v2121 = vmul.f32 %v1418, %v2115
      %2122 = vst [vmem:[%s622] sm:$0xff] %v2120
      %2123 = vst [vmem:[%s622 + $0x8] sm:$0xff] %v2121
      %2126 = vst [vmem:[#allocation1] sm:$0xff] %v1952
      %2127 = vst [vmem:[#allocation1 + $0x9] sm:$0xff] %v1953
      %s2128 = scalar_lea.vmem [#allocation1], 7
      %v2129 = vld [vmem:[%s2128] ss:$9 sm:$0xff]
      %v2131 = vmul.f32 %v2092, %v2129
      %2134 = vst [vmem:[#allocation1] sm:$0xff] %v1994
      %2135 = vst [vmem:[#allocation1 + $0x9] sm:$0xff] %v1995
      %s2136 = scalar_lea.vmem [#allocation1], 7
      %v2137 = vld [vmem:[%s2136] ss:$9 sm:$0xff]
      %v2139 = vmul.f32 %v2093, %v2137
      %v2140 = vsub.f32 %v2131, %v2139
      %2141 = vst [vmem:[#allocation1] sm:$0xff] %v1994
      %2142 = vst [vmem:[#allocation1 + $0x9] sm:$0xff] %v1995
      %s2143 = scalar_lea.vmem [#allocation1], 7
      %v2144 = vld [vmem:[%s2143] ss:$9 sm:$0xff]
      %v2146 = vmul.f32 %v2092, %v2144
      %2147 = vst [vmem:[#allocation1] sm:$0xff] %v1952
      %2148 = vst [vmem:[#allocation1 + $0x9] sm:$0xff] %v1953
      %s2149 = scalar_lea.vmem [#allocation1], 7
      %v2150 = vld [vmem:[%s2149] ss:$9 sm:$0xff]
      %v2152 = vmul.f32 %v2093, %v2150
      %v2153 = vadd.f32 %v2146, %v2152
      %v2155 = vperm.slane %v2140, 0
      %v2156 = vperm.slane %v2140, 1
      %v2159 = vmul.f32 %v2155, %v2038
      %v2160 = vmul.f32 %v2156, %v2039
      %v2162 = vperm.slane %v2153, 0
      %v2163 = vperm.slane %v2153, 1
      %v2166 = vmul.f32 %v2162, %v2080
      %v2167 = vmul.f32 %v2163, %v2081
      %v2168 = vsub.f32 %v2159, %v2166
      %v2169 = vsub.f32 %v2160, %v2167
      %v2170 = vmul.f32 %v2155, %v2080
      %v2171 = vmul.f32 %v2156, %v2081
      %v2172 = vmul.f32 %v2162, %v2038
      %v2173 = vmul.f32 %v2163, %v2039
      %v2174 = vadd.f32 %v2170, %v2172
      %v2175 = vadd.f32 %v2171, %v2173
      %v2176 = vmul.f32 %v1419, %v2168
      %v2177 = vmul.f32 %v1420, %v2169
      %2178 = vst [vmem:[%s606 + $0x10] sm:$0xff] %v2176
      %2179 = vst [vmem:[%s606 + $0x18] sm:$0xff] %v2177
      %v2180 = vmul.f32 %v1419, %v2174
      %v2181 = vmul.f32 %v1420, %v2175
      %2182 = vst [vmem:[%s622 + $0x10] sm:$0xff] %v2180
      %2183 = vst [vmem:[%s622 + $0x18] sm:$0xff] %v2181
      %2186 = vst [vmem:[#allocation1] sm:$0xff] %v1954
      %2187 = vst [vmem:[#allocation1 + $0x9] sm:$0xff] %v1955
      %s2188 = scalar_lea.vmem [#allocation1], 7
      %v2189 = vld [vmem:[%s2188] ss:$9 sm:$0xff]
      %v2191 = vmul.f32 %v2140, %v2189
      %2194 = vst [vmem:[#allocation1] sm:$0xff] %v1996
      %2195 = vst [vmem:[#allocation1 + $0x9] sm:$0xff] %v1997
      %s2196 = scalar_lea.vmem [#allocation1], 7
      %v2197 = vld [vmem:[%s2196] ss:$9 sm:$0xff]
      %v2199 = vmul.f32 %v2153, %v2197
      %v2200 = vsub.f32 %v2191, %v2199
      %2201 = vst [vmem:[#allocation1] sm:$0xff] %v1996
      %2202 = vst [vmem:[#allocation1 + $0x9] sm:$0xff] %v1997
      %s2203 = scalar_lea.vmem [#allocation1], 7
      %v2204 = vld [vmem:[%s2203] ss:$9 sm:$0xff]
      %v2206 = vmul.f32 %v2140, %v2204
      %2207 = vst [vmem:[#allocation1] sm:$0xff] %v1954
      %2208 = vst [vmem:[#allocation1 + $0x9] sm:$0xff] %v1955
      %s2209 = scalar_lea.vmem [#allocation1], 7
      %v2210 = vld [vmem:[%s2209] ss:$9 sm:$0xff]
      %v2212 = vmul.f32 %v2153, %v2210
      %v2213 = vadd.f32 %v2206, %v2212
      %v2215 = vperm.slane %v2200, 0
      %v2216 = vperm.slane %v2200, 1
      %v2219 = vmul.f32 %v2215, %v2040
      %v2220 = vmul.f32 %v2216, %v2041
      %v2222 = vperm.slane %v2213, 0
      %v2223 = vperm.slane %v2213, 1
      %v2226 = vmul.f32 %v2222, %v2082
      %v2227 = vmul.f32 %v2223, %v2083
      %v2228 = vsub.f32 %v2219, %v2226
      %v2229 = vsub.f32 %v2220, %v2227
      %v2230 = vmul.f32 %v2215, %v2082
      %v2231 = vmul.f32 %v2216, %v2083
      %v2232 = vmul.f32 %v2222, %v2040
      %v2233 = vmul.f32 %v2223, %v2041
      %v2234 = vadd.f32 %v2230, %v2232
      %v2235 = vadd.f32 %v2231, %v2233
      %v2236 = vmul.f32 %v1421, %v2228
      %v2237 = vmul.f32 %v1422, %v2229
      %2238 = vst [vmem:[%s606 + $0x20] sm:$0xff] %v2236
      %2239 = vst [vmem:[%s606 + $0x28] sm:$0xff] %v2237
      %v2240 = vmul.f32 %v1421, %v2234
      %v2241 = vmul.f32 %v1422, %v2235
      %2242 = vst [vmem:[%s622 + $0x20] sm:$0xff] %v2240
      %2243 = vst [vmem:[%s622 + $0x28] sm:$0xff] %v2241
      %2246 = vst [vmem:[#allocation1] sm:$0xff] %v1956
      %2247 = vst [vmem:[#allocation1 + $0x9] sm:$0xff] %v1957
      %s2248 = scalar_lea.vmem [#allocation1], 7
      %v2249 = vld [vmem:[%s2248] ss:$9 sm:$0xff]
      %v2251 = vmul.f32 %v2200, %v2249
      %2254 = vst [vmem:[#allocation1] sm:$0xff] %v1998
      %2255 = vst [vmem:[#allocation1 + $0x9] sm:$0xff] %v1999
      %s2256 = scalar_lea.vmem [#allocation1], 7
      %v2257 = vld [vmem:[%s2256] ss:$9 sm:$0xff]
      %v2259 = vmul.f32 %v2213, %v2257
      %v2260 = vsub.f32 %v2251, %v2259
      %2261 = vst [vmem:[#allocation1] sm:$0xff] %v1998
      %2262 = vst [vmem:[#allocation1 + $0x9] sm:$0xff] %v1999
      %s2263 = scalar_lea.vmem [#allocation1], 7
      %v2264 = vld [vmem:[%s2263] ss:$9 sm:$0xff]
      %v2266 = vmul.f32 %v2200, %v2264
      %2267 = vst [vmem:[#allocation1] sm:$0xff] %v1956
      %2268 = vst [vmem:[#allocation1 + $0x9] sm:$0xff] %v1957
      %s2269 = scalar_lea.vmem [#allocation1], 7
      %v2270 = vld [vmem:[%s2269] ss:$9 sm:$0xff]
      %v2272 = vmul.f32 %v2213, %v2270
      %v2273 = vadd.f32 %v2266, %v2272
      %v2275 = vperm.slane %v2260, 0
      %v2276 = vperm.slane %v2260, 1
      %v2279 = vmul.f32 %v2275, %v2042
      %v2280 = vmul.f32 %v2276, %v2043
      %v2282 = vperm.slane %v2273, 0
      %v2283 = vperm.slane %v2273, 1
      %v2286 = vmul.f32 %v2282, %v2084
      %v2287 = vmul.f32 %v2283, %v2085
      %v2288 = vsub.f32 %v2279, %v2286
      %v2289 = vsub.f32 %v2280, %v2287
      %v2290 = vmul.f32 %v2275, %v2084
      %v2291 = vmul.f32 %v2276, %v2085
      %v2292 = vmul.f32 %v2282, %v2042
      %v2293 = vmul.f32 %v2283, %v2043
      %v2294 = vadd.f32 %v2290, %v2292
      %v2295 = vadd.f32 %v2291, %v2293
      %v2296 = vmul.f32 %v1423, %v2288
      %v2297 = vmul.f32 %v1424, %v2289
      %2298 = vst [vmem:[%s606 + $0x30] sm:$0xff] %v2296
      %2299 = vst [vmem:[%s606 + $0x38] sm:$0xff] %v2297
      %v2300 = vmul.f32 %v1423, %v2294
      %v2301 = vmul.f32 %v1424, %v2295
      %2302 = vst [vmem:[%s622 + $0x30] sm:$0xff] %v2300
      %2303 = vst [vmem:[%s622 + $0x38] sm:$0xff] %v2301
      %2306 = vst [vmem:[#allocation1] sm:$0xff] %v1958
      %2307 = vst [vmem:[#allocation1 + $0x9] sm:$0xff] %v1959
      %s2308 = scalar_lea.vmem [#allocation1], 7
      %v2309 = vld [vmem:[%s2308] ss:$9 sm:$0xff]
      %v2311 = vmul.f32 %v2260, %v2309
      %2314 = vst [vmem:[#allocation1] sm:$0xff] %v2000
      %2315 = vst [vmem:[#allocation1 + $0x9] sm:$0xff] %v2001
      %s2316 = scalar_lea.vmem [#allocation1], 7
      %v2317 = vld [vmem:[%s2316] ss:$9 sm:$0xff]
      %v2319 = vmul.f32 %v2273, %v2317
      %v2320 = vsub.f32 %v2311, %v2319
      %2321 = vst [vmem:[#allocation1] sm:$0xff] %v2000
      %2322 = vst [vmem:[#allocation1 + $0x9] sm:$0xff] %v2001
      %s2323 = scalar_lea.vmem [#allocation1], 7
      %v2324 = vld [vmem:[%s2323] ss:$9 sm:$0xff]
      %v2326 = vmul.f32 %v2260, %v2324
      %2327 = vst [vmem:[#allocation1] sm:$0xff] %v1958
      %2328 = vst [vmem:[#allocation1 + $0x9] sm:$0xff] %v1959
      %s2329 = scalar_lea.vmem [#allocation1], 7
      %v2330 = vld [vmem:[%s2329] ss:$9 sm:$0xff]
      %v2332 = vmul.f32 %v2273, %v2330
      %v2333 = vadd.f32 %v2326, %v2332
      %v2335 = vperm.slane %v2320, 0
      %v2336 = vperm.slane %v2320, 1
      %v2339 = vmul.f32 %v2335, %v2044
      %v2340 = vmul.f32 %v2336, %v2045
      %v2342 = vperm.slane %v2333, 0
      %v2343 = vperm.slane %v2333, 1
      %v2346 = vmul.f32 %v2342, %v2086
      %v2347 = vmul.f32 %v2343, %v2087
      %v2348 = vsub.f32 %v2339, %v2346
      %v2349 = vsub.f32 %v2340, %v2347
      %v2350 = vmul.f32 %v2335, %v2086
      %v2351 = vmul.f32 %v2336, %v2087
      %v2352 = vmul.f32 %v2342, %v2044
      %v2353 = vmul.f32 %v2343, %v2045
      %v2354 = vadd.f32 %v2350, %v2352
      %v2355 = vadd.f32 %v2351, %v2353
      %v2356 = vmul.f32 %v1425, %v2348
      %v2357 = vmul.f32 %v1426, %v2349
      %2358 = vst [vmem:[%s606 + $0x40] sm:$0xff] %v2356
      %2359 = vst [vmem:[%s606 + $0x48] sm:$0xff] %v2357
      %v2360 = vmul.f32 %v1425, %v2354
      %v2361 = vmul.f32 %v1426, %v2355
      %2362 = vst [vmem:[%s622 + $0x40] sm:$0xff] %v2360
      %2363 = vst [vmem:[%s622 + $0x48] sm:$0xff] %v2361
      %2366 = vst [vmem:[#allocation1] sm:$0xff] %v1960
      %2367 = vst [vmem:[#allocation1 + $0x9] sm:$0xff] %v1961
      %s2368 = scalar_lea.vmem [#allocation1], 7
      %v2369 = vld [vmem:[%s2368] ss:$9 sm:$0xff]
      %v2371 = vmul.f32 %v2320, %v2369
      %2374 = vst [vmem:[#allocation1] sm:$0xff] %v2002
      %2375 = vst [vmem:[#allocation1 + $0x9] sm:$0xff] %v2003
      %s2376 = scalar_lea.vmem [#allocation1], 7
      %v2377 = vld [vmem:[%s2376] ss:$9 sm:$0xff]
      %v2379 = vmul.f32 %v2333, %v2377
      %v2380 = vsub.f32 %v2371, %v2379
      %2381 = vst [vmem:[#allocation1] sm:$0xff] %v2002
      %2382 = vst [vmem:[#allocation1 + $0x9] sm:$0xff] %v2003
      %s2383 = scalar_lea.vmem [#allocation1], 7
      %v2384 = vld [vmem:[%s2383] ss:$9 sm:$0xff]
      %v2386 = vmul.f32 %v2320, %v2384
      %2387 = vst [vmem:[#allocation1] sm:$0xff] %v1960
      %2388 = vst [vmem:[#allocation1 + $0x9] sm:$0xff] %v1961
      %s2389 = scalar_lea.vmem [#allocation1], 7
      %v2390 = vld [vmem:[%s2389] ss:$9 sm:$0xff]
      %v2392 = vmul.f32 %v2333, %v2390
      %v2393 = vadd.f32 %v2386, %v2392
      %v2395 = vperm.slane %v2380, 0
      %v2396 = vperm.slane %v2380, 1
      %v2399 = vmul.f32 %v2395, %v2046
      %v2400 = vmul.f32 %v2396, %v2047
      %v2402 = vperm.slane %v2393, 0
      %v2403 = vperm.slane %v2393, 1
      %v2406 = vmul.f32 %v2402, %v2088
      %v2407 = vmul.f32 %v2403, %v2089
      %v2408 = vsub.f32 %v2399, %v2406
      %v2409 = vsub.f32 %v2400, %v2407
      %v2410 = vmul.f32 %v2395, %v2088
      %v2411 = vmul.f32 %v2396, %v2089
      %v2412 = vmul.f32 %v2402, %v2046
      %v2413 = vmul.f32 %v2403, %v2047
      %v2414 = vadd.f32 %v2410, %v2412
      %v2415 = vadd.f32 %v2411, %v2413
      %v2416 = vmul.f32 %v1427, %v2408
      %v2417 = vmul.f32 %v1428, %v2409
      %2418 = vst [vmem:[%s606 + $0x50] sm:$0xff] %v2416
      %2419 = vst [vmem:[%s606 + $0x58] sm:$0xff] %v2417
      %v2420 = vmul.f32 %v1427, %v2414
      %v2421 = vmul.f32 %v1428, %v2415
      %2422 = vst [vmem:[%s622 + $0x50] sm:$0xff] %v2420
      %2423 = vst [vmem:[%s622 + $0x58] sm:$0xff] %v2421
      %2426 = vst [vmem:[#allocation1] sm:$0xff] %v1962
      %2427 = vst [vmem:[#allocation1 + $0x9] sm:$0xff] %v1963
      %s2428 = scalar_lea.vmem [#allocation1], 7
      %v2429 = vld [vmem:[%s2428] ss:$9 sm:$0xff]
      %v2431 = vmul.f32 %v2380, %v2429
      %2434 = vst [vmem:[#allocation1] sm:$0xff] %v2004
      %2435 = vst [vmem:[#allocation1 + $0x9] sm:$0xff] %v2005
      %s2436 = scalar_lea.vmem [#allocation1], 7
      %v2437 = vld [vmem:[%s2436] ss:$9 sm:$0xff]
      %v2439 = vmul.f32 %v2393, %v2437
      %v2440 = vsub.f32 %v2431, %v2439
      %2441 = vst [vmem:[#allocation1] sm:$0xff] %v2004
      %2442 = vst [vmem:[#allocation1 + $0x9] sm:$0xff] %v2005
      %s2443 = scalar_lea.vmem [#allocation1], 7
      %v2444 = vld [vmem:[%s2443] ss:$9 sm:$0xff]
      %v2446 = vmul.f32 %v2380, %v2444
      %2447 = vst [vmem:[#allocation1] sm:$0xff] %v1962
      %2448 = vst [vmem:[#allocation1 + $0x9] sm:$0xff] %v1963
      %s2449 = scalar_lea.vmem [#allocation1], 7
      %v2450 = vld [vmem:[%s2449] ss:$9 sm:$0xff]
      %v2452 = vmul.f32 %v2393, %v2450
      %v2453 = vadd.f32 %v2446, %v2452
      %v2455 = vperm.slane %v2440, 0
      %v2456 = vperm.slane %v2440, 1
      %v2459 = vmul.f32 %v2455, %v2048
      %v2460 = vmul.f32 %v2456, %v2049
      %v2462 = vperm.slane %v2453, 0
      %v2463 = vperm.slane %v2453, 1
      %v2466 = vmul.f32 %v2462, %v2090
      %v2467 = vmul.f32 %v2463, %v2091
      %v2468 = vsub.f32 %v2459, %v2466
      %v2469 = vsub.f32 %v2460, %v2467
      %v2470 = vmul.f32 %v2455, %v2090
      %v2471 = vmul.f32 %v2456, %v2091
      %v2472 = vmul.f32 %v2462, %v2048
      %v2473 = vmul.f32 %v2463, %v2049
      %v2474 = vadd.f32 %v2470, %v2472
      %v2475 = vadd.f32 %v2471, %v2473
      %v2476 = vmul.f32 %v1429, %v2468
      %v2477 = vmul.f32 %v1430, %v2469
      %2478 = vst [vmem:[%s606 + $0x60] sm:$0xff] %v2476
      %2479 = vst [vmem:[%s606 + $0x68] sm:$0xff] %v2477
      %v2480 = vmul.f32 %v1429, %v2474
      %v2481 = vmul.f32 %v1430, %v2475
      %2482 = vst [vmem:[%s622 + $0x60] sm:$0xff] %v2480
      %2483 = vst [vmem:[%s622 + $0x68] sm:$0xff] %v2481
      %2486 = vst [vmem:[#allocation1] sm:$0xff] %v1964
      %2487 = vst [vmem:[#allocation1 + $0x9] sm:$0xff] %v1965
      %s2488 = scalar_lea.vmem [#allocation1], 7
      %v2489 = vld [vmem:[%s2488] ss:$9 sm:$0xff]
      %v2491 = vmul.f32 %v2440, %v2489
      %2494 = vst [vmem:[#allocation1] sm:$0xff] %v2006
      %2495 = vst [vmem:[#allocation1 + $0x9] sm:$0xff] %v2007
      %s2496 = scalar_lea.vmem [#allocation1], 7
      %v2497 = vld [vmem:[%s2496] ss:$9 sm:$0xff]
      %v2499 = vmul.f32 %v2453, %v2497
      %v2500 = vsub.f32 %v2491, %v2499
      %2501 = vst [vmem:[#allocation1] sm:$0xff] %v2006
      %2502 = vst [vmem:[#allocation1 + $0x9] sm:$0xff] %v2007
      %s2503 = scalar_lea.vmem [#allocation1], 7
      %v2504 = vld [vmem:[%s2503] ss:$9 sm:$0xff]
      %v2506 = vmul.f32 %v2440, %v2504
      %2507 = vst [vmem:[#allocation1] sm:$0xff] %v1964
      %2508 = vst [vmem:[#allocation1 + $0x9] sm:$0xff] %v1965
      %s2509 = scalar_lea.vmem [#allocation1], 7
      %v2510 = vld [vmem:[%s2509] ss:$9 sm:$0xff]
      %v2512 = vmul.f32 %v2453, %v2510
      %v2513 = vadd.f32 %v2506, %v2512
      %v2514 = vmul.f32 %v2500, %v2500
      %v2515 = vmul.f32 %v2513, %v2513
      %v2516 = vadd.f32 %v2514, %v2515
      %v2517 = vmax.f32 %v2516, 1e-37
      %v2518 = vrsqrt.pop %v2517
      %v2519 = vmul.f32 %v2518, %v2517
      %v2520 = vmul.f32 %v2519, %v2518
      %v2521 = vmul.f32 0.5, %v2520
      %v2522 = vsub.f32 1.5, %v2521
      %v2523 = vmul.f32 %v2518, %v2522
      %vm2524 = vweird.f32 %v2517
      %vm2525 = vweird.f32 %v2518
      %vm2526 = vmor %vm2524, %vm2525
      %v2527 = vsel %vm2526, %v2518, %v2523
      %v2528 = vmul.f32 %v2500, %v2527
      %v2529 = vlaneseq
      %vm2530 = vcmp.ge.s32.totalorder %v2529, 0
      %vm2531 = vcmp.lt.s32.totalorder %v2529, 256
      %vm2532 = vmand %vm2530, %vm2531
      %2533 = vst.msk [vmem:[#allocation2] sm:$0x3] %vm2532, %v2528
      %v2534 = vmul.f32 %v2513, %v2527
      %2535 = vst.msk [vmem:[#allocation3] sm:$0x3] %vm2532, %v2534
      %s2536 = smul.u32 7, %s26
      %s2537 = smul.u32 2, %s25
      %p2538 = scmp.lt.s32.totalorder %s24, 1
      %s2539 = scalar_select %p2538, %s24, 1
      %p2540 = scmp.lt.s32.totalorder %s2536, 6
      %s2541 = scalar_select %p2540, %s2536, 6
      %p2542 = scmp.lt.s32.totalorder %s2537, 1
      %s2543 = scalar_select %p2542, %s2537, 1
      %s2544 = smul.addr %s2541, 2
      %s2545 = sadd.s32 %s2543, %s2544
      %s2546 = smul.addr %s2539, 14
      %s2547 = sadd.s32 %s2545, %s2546
      %s2548 = smul.addr %s2547, 8
      %s2549 = scalar_lea.vmem %s6, %s2548
      %s2550 = smul.u32 7, %s26
      %s2551 = smul.u32 2, %s25
      %p2552 = scmp.lt.s32.totalorder %s24, 1
      %s2553 = scalar_select %p2552, %s24, 1
      %p2554 = scmp.lt.s32.totalorder %s2550, 6
      %s2555 = scalar_select %p2554, %s2550, 6
      %p2556 = scmp.lt.s32.totalorder %s2551, 1
      %s2557 = scalar_select %p2556, %s2551, 1
      %s2558 = smul.addr %s2555, 2
      %s2559 = sadd.s32 %s2557, %s2558
      %s2560 = smul.addr %s2553, 14
      %s2561 = sadd.s32 %s2559, %s2560
      %s2562 = smul.addr %s2561, 8
      %s2563 = scalar_lea.vmem %s7, %s2562
      // Predicated region
      $region49: #{_phase_vocoder_impl.1} parent=43 // pred_check
        %p2564 = pneg %p236
      $region50: #{_phase_vocoder_impl.1} parent=43 // pred_check_branch
        %2566 = sbr.rel (%p2564) target = $region52
      $region51: #{_phase_vocoder_impl.1} parent=43 // pred_region
        %s2567 = smul.u32 7, %s26
        %s2568 = smul.u32 2, %s25
      $region52: #{_phase_vocoder_impl.1} parent=43 // pred_fallthru
        _
      // Predicated region
      $region53: #{_phase_vocoder_impl.1} parent=43 // pred_check
        %p2569 = pneg %p266
      $region54: #{_phase_vocoder_impl.1} parent=43 // pred_check_branch
        %2571 = sbr.rel (%p2569) target = $region56
      $region55: #{_phase_vocoder_impl.1} parent=43 // pred_region
        %s2572 = smul.u32 7, %s26
        %s2573 = smul.u32 2, %s25
      $region56: #{_phase_vocoder_impl.1} parent=43 // pred_fallthru
        _
    $region44: #{_phase_vocoder_impl.1} parent=5 // pred_fallthru
      _
    %p2574 = scmp.le.s32.totalorder 2, %s14
    // Predicated region
    $region57: #{_phase_vocoder_impl.1} parent=5 // pred_check
      %p2575 = pneg %p2574
    $region58: #{_phase_vocoder_impl.1} parent=5 // pred_check_branch
      %2577 = sbr.rel (%p2575) target = $region60
    $region59: #{_phase_vocoder_impl.1} parent=5 // pred_region
      %s2578 = ssub.s32 %s14, 2
      // Predicated region
      $region61: #{_phase_vocoder_impl.1} parent=59 // pred_check
        %p2579 = pneg %p242
      $region62: #{_phase_vocoder_impl.1} parent=59 // pred_check_branch
        %2581 = sbr.rel (%p2579) target = $region64
      $region63: #{_phase_vocoder_impl.1} parent=59 // pred_region
        %s2582 = smul.u32 7, %s29
        %s2583 = smul.u32 2, %s28
        %p2584 = scmp.lt.s32.totalorder %s27, 1
        %s2585 = scalar_select %p2584, %s27, 1
        %p2586 = scmp.lt.s32.totalorder %s2582, 6
        %s2587 = scalar_select %p2586, %s2582, 6
        %p2588 = scmp.lt.s32.totalorder %s2583, 1
        %s2589 = scalar_select %p2588, %s2583, 1
        %s2590 = smul.addr %s2587, 2
        %s2591 = sadd.s32 %s2589, %s2590
        %s2592 = smul.addr %s2585, 14
        %s2593 = sadd.s32 %s2591, %s2592
        %s2594 = smul.addr %s2593, 8
        %s2595 = scalar_lea.vmem %s6, %s2594
      $region64: #{_phase_vocoder_impl.1} parent=59 // pred_fallthru
        _
      // Predicated region
      $region65: #{_phase_vocoder_impl.1} parent=59 // pred_check
        %p2596 = pneg %p272
      $region66: #{_phase_vocoder_impl.1} parent=59 // pred_check_branch
        %2598 = sbr.rel (%p2596) target = $region68
      $region67: #{_phase_vocoder_impl.1} parent=59 // pred_region
        %s2599 = smul.u32 7, %s29
        %s2600 = smul.u32 2, %s28
        %p2601 = scmp.lt.s32.totalorder %s27, 1
        %s2602 = scalar_select %p2601, %s27, 1
        %p2603 = scmp.lt.s32.totalorder %s2599, 6
        %s2604 = scalar_select %p2603, %s2599, 6
        %p2605 = scmp.lt.s32.totalorder %s2600, 1
        %s2606 = scalar_select %p2605, %s2600, 1
        %s2607 = smul.addr %s2604, 2
        %s2608 = sadd.s32 %s2606, %s2607
        %s2609 = smul.addr %s2602, 14
        %s2610 = sadd.s32 %s2608, %s2609
        %s2611 = smul.addr %s2610, 8
        %s2612 = scalar_lea.vmem %s7, %s2611
      $region68: #{_phase_vocoder_impl.1} parent=59 // pred_fallthru
        _
    $region60: #{_phase_vocoder_impl.1} parent=5 // pred_fallthru
      _
  $region6: #{_phase_vocoder_impl.1} parent=0 // loop_footer
    %s18 = sadd.s32 1, %s14
  $region7: #{_phase_vocoder_impl.1} parent=0 // loop_footer_branch
    %13 = sbr.rel target = $region3
  $region8: #{_phase_vocoder_impl.1} parent=0 // loop_exit
    _

</llo_original>
